<compile_context>
chip_gen: v6e
topology: v6e:2x2x1
jax: 0.10.0
libtpu: 0.0.40
codegen_flags: <defaults>
</compile_context>

<pallas_src>
import numpy as np

import jax
import jax.numpy as jnp
from jax.experimental import pallas as pl
from jax.experimental.pallas import tpu as pltpu


# ------------------------------ fused kernel ------------------------------- #

def _fused_cnn_kernel(x_ref, w1_ref, b1_ref, se1_ref, so1_ref, pe1_ref, po1_ref,
                      w2_ref, b2_ref, se2_ref, so2_ref, pe2_ref, po2_ref,
                      wf1_ref, bf1_ref, wf2_ref, bf2_ref, wf3_ref, bf3_ref,
                      out_ref):
    """One grid step == one image.  Everything below lives in VMEM/vregs."""
    f32, bf16 = jnp.float32, jnp.bfloat16

    x = x_ref[0]                                     # (32, 96) f32, lane = w*3+ci

    # ---- conv1 (5x5, 3->6) + bias + ReLU : banded matmul per kernel row ----
    acc = jnp.zeros((28, 168), f32)                  # (OH, OW*6), lane = ow*6+co
    for kh in range(5):
        acc = acc + jnp.dot(x[kh:kh + 28, :].astype(bf16), w1_ref[kh],
                            preferred_element_type=f32)
    y1 = jnp.maximum(acc + b1_ref[...], 0.0)         # (28, 168) f32

    # ---- max-pool 2x2 / stride 2 (fused epilogue) ----
    y1b = y1.astype(bf16)
    c_even = jnp.dot(y1b, se1_ref[...], preferred_element_type=f32)
    c_odd = jnp.dot(y1b, so1_ref[...], preferred_element_type=f32)
    cmax = jnp.maximum(c_even, c_odd).astype(bf16)   # (28, 84): W pooled
    r_even = jnp.dot(pe1_ref[...], cmax, preferred_element_type=f32)
    r_odd = jnp.dot(po1_ref[...], cmax, preferred_element_type=f32)
    p1 = jnp.maximum(r_even, r_odd)                  # (14, 84), lane = w*6+c

    # ---- conv2 (5x5, 6->16) + bias + ReLU ----
    acc2 = jnp.zeros((10, 160), f32)                 # (OH, OW*16), lane = ow*16+co
    for kh in range(5):
        acc2 = acc2 + jnp.dot(p1[kh:kh + 10, :].astype(bf16), w2_ref[kh],
                              preferred_element_type=f32)
    y2 = jnp.maximum(acc2 + b2_ref[...], 0.0)        # (10, 160) f32

    # ---- max-pool 2x2 / stride 2 ----
    y2b = y2.astype(bf16)
    c_even = jnp.dot(y2b, se2_ref[...], preferred_element_type=f32)
    c_odd = jnp.dot(y2b, so2_ref[...], preferred_element_type=f32)
    cmax = jnp.maximum(c_even, c_odd).astype(bf16)   # (10, 80)
    r_even = jnp.dot(pe2_ref[...], cmax, preferred_element_type=f32)
    r_odd = jnp.dot(po2_ref[...], cmax, preferred_element_type=f32)
    p2 = jnp.maximum(r_even, r_odd)                  # (5, 80), lane = w*16+c

    # ---- fc1 (400->120): contraction split over the 5 spatial rows h ----
    f1 = jnp.zeros((1, 120), f32)
    for hh in range(5):
        f1 = f1 + jnp.dot(p2[hh:hh + 1, :].astype(bf16), wf1_ref[hh],
                          preferred_element_type=f32)
    a1 = jnp.maximum(f1 + bf1_ref[...], 0.0).astype(bf16)

    # ---- fc2 (120->84) + ReLU, fc3 (84->10) : stay in vregs ----
    a2 = jnp.maximum(jnp.dot(a1, wf2_ref[...], preferred_element_type=f32)
                     + bf2_ref[...], 0.0).astype(bf16)
    logits = (jnp.dot(a2, wf3_ref[...], preferred_element_type=f32)
              + bf3_ref[...])                        # (1, 10) f32

    out_ref[0] = logits.astype(out_ref.dtype)


# --------------------------- forward pass wrapper --------------------------- #

def example_cnn_forward(prep, x_nchw):
    """Full ExampleCNN forward as a single fused Pallas kernel call."""
    n, c, h, w = x_nchw.shape
    assert (c, h, w) == (3, 32, 32), "ExampleCNN expects (N, 3, 32, 32) inputs"

    # NCHW -> NHWC -> (N, H, W*C) fused-lane layout (tiny one-off layout op).
    x2d = jnp.transpose(x_nchw, (0, 2, 3, 1)).reshape(n, h, w * c)
    x2d = x2d.astype(jnp.float32)

    operands = (x2d,
                prep["w1"], prep["b1"], prep["se1"], prep["so1"],
                prep["pe1"], prep["po1"],
                prep["w2"], prep["b2"], prep["se2"], prep["so2"],
                prep["pe2"], prep["po2"],
                prep["wf1"], prep["bf1"], prep["wf2"], prep["bf2"],
                prep["wf3"], prep["bf3"])

    def _whole(a):  # full-array block, resident across the whole grid
        r = a.ndim
        return pl.BlockSpec(a.shape, lambda i, _r=r: (0,) * _r)

    in_specs = ([pl.BlockSpec((1, h, w * c), lambda i: (i, 0, 0))]
                + [_whole(a) for a in operands[1:]])

    out = pl.pallas_call(
        _fused_cnn_kernel,
        out_shape=jax.ShapeDtypeStruct((n, 1, 10), jnp.float32),
        grid=(n,),
        in_specs=in_specs,
        out_specs=pl.BlockSpec((1, 1, 10), lambda i: (i, 0, 0)),
        compiler_params=pltpu.CompilerParams(
            dimension_semantics=("parallel",)),
    )(*operands)
    return out.reshape(n, 10)


# ---------------------- one-time parameter re-layout ------------------------ #

def prepare_params(params):
    """Re-layout PyTorch-format parameters into kernel operands (runs once).

    conv -> per-kernel-row banded matrices for the fused (H, W*C) layout,
    pool -> 0/1 column/row selection matrices,
    fc1  -> reordered to consume the fused pooled activation (NCHW flatten order),
    fc2/fc3 -> transposed to (K, N).  Matmul operands bf16, biases f32.
    """
    def banded_conv(w_oihw, w_in):
        co_n, ci_n, kh_n, kw_n = w_oihw.shape
        ow_n = w_in - kw_n + 1
        wn = np.asarray(w_oihw, dtype=np.float32)
        band = np.zeros((kh_n, w_in * ci_n, ow_n * co_n), dtype=np.float32)
        for kh in range(kh_n):
            for kw in range(kw_n):
                blk = wn[:, :, kh, kw].T                       # (ci, co)
                for ow in range(ow_n):
                    r0, c0 = (ow + kw) * ci_n, ow * co_n
                    band[kh, r0:r0 + ci_n, c0:c0 + co_n] = blk
        return band

    def lane_pool_sel(ow_n, c_n):
        pw_n = ow_n // 2
        se = np.zeros((ow_n * c_n, pw_n * c_n), dtype=np.float32)
        so = np.zeros((ow_n * c_n, pw_n * c_n), dtype=np.float32)
        for pw in range(pw_n):
            for cc in range(c_n):
                se[(2 * pw) * c_n + cc, pw * c_n + cc] = 1.0
                so[(2 * pw + 1) * c_n + cc, pw * c_n + cc] = 1.0
        return se, so

    def row_pool_sel(oh_n):
        ph_n = oh_n // 2
        pe = np.zeros((ph_n, oh_n), dtype=np.float32)
        po = np.zeros((ph_n, oh_n), dtype=np.float32)
        for ph in range(ph_n):
            pe[ph, 2 * ph] = 1.0
            po[ph, 2 * ph + 1] = 1.0
        return pe, po

    # fc1 consumes PyTorch's NCHW flatten: feature index = c*25 + h*5 + w.
    fc1 = np.asarray(params["fc1_w"], dtype=np.float32)         # (120, 400)
    wf1 = np.zeros((5, 80, 120), dtype=np.float32)
    for hh in range(5):
        for ww in range(5):
            for cc in range(16):
                wf1[hh, ww * 16 + cc, :] = fc1[:, cc * 25 + hh * 5 + ww]

    se1, so1 = lane_pool_sel(28, 6)
    pe1, po1 = row_pool_sel(28)
    se2, so2 = lane_pool_sel(10, 16)
    pe2, po2 = row_pool_sel(10)

    bf16, f32 = jnp.bfloat16, jnp.float32
    return {
        "w1": jnp.asarray(banded_conv(params["conv1_w"], 32), dtype=bf16),
        "b1": jnp.asarray(np.tile(np.asarray(params["conv1_b"]), 28)[None, :],
                          dtype=f32),
        "se1": jnp.asarray(se1, dtype=bf16), "so1": jnp.asarray(so1, dtype=bf16),
        "pe1": jnp.asarray(pe1, dtype=bf16), "po1": jnp.asarray(po1, dtype=bf16),
        "w2": jnp.asarray(banded_conv(params["conv2_w"], 14), dtype=bf16),
        "b2": jnp.asarray(np.tile(np.asarray(params["conv2_b"]), 10)[None, :],
                          dtype=f32),
        "se2": jnp.asarray(se2, dtype=bf16), "so2": jnp.asarray(so2, dtype=bf16),
        "pe2": jnp.asarray(pe2, dtype=bf16), "po2": jnp.asarray(po2, dtype=bf16),
        "wf1": jnp.asarray(wf1, dtype=bf16),
        "bf1": jnp.asarray(np.asarray(params["fc1_b"])[None, :], dtype=f32),
        "wf2": jnp.asarray(np.asarray(params["fc2_w"]).T, dtype=bf16),
        "bf2": jnp.asarray(np.asarray(params["fc2_b"])[None, :], dtype=f32),
        "wf3": jnp.asarray(np.asarray(params["fc3_w"]).T, dtype=bf16),
        "bf3": jnp.asarray(np.asarray(params["fc3_b"])[None, :], dtype=f32),
    }


# --------------------------- init + f32 reference --------------------------- #

def init_params(key):
    """Deterministic PyTorch-style U(-1/sqrt(fan_in), 1/sqrt(fan_in)) init."""
    def u(k, shape, fan_in):
        bound = 1.0 / (fan_in ** 0.5)
        return jax.random.uniform(k, shape, jnp.float32, -bound, bound)
    ks = jax.random.split(key, 10)
    return {
        "conv1_w": u(ks[0], (6, 3, 5, 5), 3 * 5 * 5),
        "conv1_b": u(ks[1], (6,), 3 * 5 * 5),
        "conv2_w": u(ks[2], (16, 6, 5, 5), 6 * 5 * 5),
        "conv2_b": u(ks[3], (16,), 6 * 5 * 5),
        "fc1_w": u(ks[4], (120, 400), 400),
        "fc1_b": u(ks[5], (120,), 400),
        "fc2_w": u(ks[6], (84, 120), 120),
        "fc2_b": u(ks[7], (84,), 120),
        "fc3_w": u(ks[8], (10, 84), 84),
        "fc3_b": u(ks[9], (10,), 84),
    }


def reference_forward(params, x_nchw):
    """Pure-JAX f32 reference of the PyTorch forward (sanity check)."""
    def conv(x, w, b):
        y = jax.lax.conv_general_dilated(
            x, w, (1, 1), "VALID", dimension_numbers=("NCHW", "OIHW", "NCHW"))
        return jax.nn.relu(y + b[None, :, None, None])

    def pool(x):
        return jax.lax.reduce_window(x, -jnp.inf, jax.lax.max,
                                     (1, 1, 2, 2), (1, 1, 2, 2), "VALID")

    x = pool(conv(x_nchw, params["conv1_w"], params["conv1_b"]))
    x = pool(conv(x, params["conv2_w"], params["conv2_b"]))
    x = x.reshape(x.shape[0], -1)
    x = jax.nn.relu(x @ params["fc1_w"].T + params["fc1_b"])
    x = jax.nn.relu(x @ params["fc2_w"].T + params["fc2_b"])
    return x @ params["fc3_w"].T + params["fc3_b"]


# TODO(synk): train_step / optimizer / criterion are training-time PyTorch glue
# and are intentionally not translated (forward pass only).

if __name__ == "__main__":
    key = jax.random.PRNGKey(0)
    pkey, xkey = jax.random.split(key)
    params = init_params(pkey)
    prep = prepare_params(params)            # one-time weight re-layout

    # Input must be (N, 3, 32, 32) so that flatten yields 16*5*5 = 400 features.
    x = jax.random.normal(xkey, (2, 3, 32, 32), dtype=jnp.float32)

    fwd = jax.jit(example_cnn_forward)
    out = jax.block_until_ready(fwd(prep, x))
    assert out.shape == (2, 10), out.shape

    ref = reference_forward(params, x)
    max_err = float(jnp.max(jnp.abs(out - ref)))
    # bf16 MXU operands with f32 accumulation -> loose tolerance.
    assert max_err < 5e-2, f"mismatch vs reference: {max_err}"

    print("KERNEL_OK")
</pallas_src>

<mosaic_0001>
module attributes {stable_mosaic.version = 11 : i64} {
  func.func @_fused_cnn_kernel(%arg0: i32, %arg1: memref<1x32x96xf32, #tpu.memory_space<vmem>>, %arg2: memref<5x96x168xbf16, #tpu.memory_space<vmem>>, %arg3: memref<1x168xf32, #tpu.memory_space<vmem>>, %arg4: memref<168x84xbf16, #tpu.memory_space<vmem>>, %arg5: memref<168x84xbf16, #tpu.memory_space<vmem>>, %arg6: memref<14x28xbf16, #tpu.memory_space<vmem>>, %arg7: memref<14x28xbf16, #tpu.memory_space<vmem>>, %arg8: memref<5x84x160xbf16, #tpu.memory_space<vmem>>, %arg9: memref<1x160xf32, #tpu.memory_space<vmem>>, %arg10: memref<160x80xbf16, #tpu.memory_space<vmem>>, %arg11: memref<160x80xbf16, #tpu.memory_space<vmem>>, %arg12: memref<5x10xbf16, #tpu.memory_space<vmem>>, %arg13: memref<5x10xbf16, #tpu.memory_space<vmem>>, %arg14: memref<5x80x120xbf16, #tpu.memory_space<vmem>>, %arg15: memref<1x120xf32, #tpu.memory_space<vmem>>, %arg16: memref<120x84xbf16, #tpu.memory_space<vmem>>, %arg17: memref<1x84xf32, #tpu.memory_space<vmem>>, %arg18: memref<84x10xbf16, #tpu.memory_space<vmem>>, %arg19: memref<1x10xf32, #tpu.memory_space<vmem>>, %arg20: memref<1x1x10xf32, #tpu.memory_space<vmem>>) attributes {dimension_semantics = [#tpu.dimension_semantics<parallel>], iteration_bounds = array<i64: 2>, scalar_prefetch = 0 : i64, scratch_operands = 0 : i64, tpu.core_type = #tpu.core_type<tc>, window_params = [{transform_indices = @transform_0, window_bounds = array<i64: 1, 32, 96>}, {pipeline_mode = #tpu.pipeline_mode<synchronous>, transform_indices = @transform_1, window_bounds = array<i64: 5, 96, 168>}, {pipeline_mode = #tpu.pipeline_mode<synchronous>, transform_indices = @transform_2, window_bounds = array<i64: 1, 168>}, {pipeline_mode = #tpu.pipeline_mode<synchronous>, transform_indices = @transform_3, window_bounds = array<i64: 168, 84>}, {pipeline_mode = #tpu.pipeline_mode<synchronous>, transform_indices = @transform_4, window_bounds = array<i64: 168, 84>}, {pipeline_mode = #tpu.pipeline_mode<synchronous>, transform_indices = @transform_5, window_bounds = array<i64: 14, 28>}, {pipeline_mode = #tpu.pipeline_mode<synchronous>, transform_indices = @transform_6, window_bounds = array<i64: 14, 28>}, {pipeline_mode = #tpu.pipeline_mode<synchronous>, transform_indices = @transform_7, window_bounds = array<i64: 5, 84, 160>}, {pipeline_mode = #tpu.pipeline_mode<synchronous>, transform_indices = @transform_8, window_bounds = array<i64: 1, 160>}, {pipeline_mode = #tpu.pipeline_mode<synchronous>, transform_indices = @transform_9, window_bounds = array<i64: 160, 80>}, {pipeline_mode = #tpu.pipeline_mode<synchronous>, transform_indices = @transform_10, window_bounds = array<i64: 160, 80>}, {pipeline_mode = #tpu.pipeline_mode<synchronous>, transform_indices = @transform_11, window_bounds = array<i64: 5, 10>}, {pipeline_mode = #tpu.pipeline_mode<synchronous>, transform_indices = @transform_12, window_bounds = array<i64: 5, 10>}, {pipeline_mode = #tpu.pipeline_mode<synchronous>, transform_indices = @transform_13, window_bounds = array<i64: 5, 80, 120>}, {pipeline_mode = #tpu.pipeline_mode<synchronous>, transform_indices = @transform_14, window_bounds = array<i64: 1, 120>}, {pipeline_mode = #tpu.pipeline_mode<synchronous>, transform_indices = @transform_15, window_bounds = array<i64: 120, 84>}, {pipeline_mode = #tpu.pipeline_mode<synchronous>, transform_indices = @transform_16, window_bounds = array<i64: 1, 84>}, {pipeline_mode = #tpu.pipeline_mode<synchronous>, transform_indices = @transform_17, window_bounds = array<i64: 84, 10>}, {pipeline_mode = #tpu.pipeline_mode<synchronous>, transform_indices = @transform_18, window_bounds = array<i64: 1, 10>}, {transform_indices = @transform_19, window_bounds = array<i64: 1, 1, 10>}]} {
    %c0 = arith.constant 0 : index
    %c0_0 = arith.constant 0 : index
    %c0_1 = arith.constant 0 : index
    %0 = vector.load %arg1[%c0, %c0_0, %c0_1] : memref<1x32x96xf32, #tpu.memory_space<vmem>>, vector<1x32x96xf32>
    %1 = vector.shape_cast %0 : vector<1x32x96xf32> to vector<32x96xf32>
    %cst = arith.constant 0.000000e+00 : f32
    %2 = vector.broadcast %cst : f32 to vector<28x168xf32>
    %3 = vector.extract_strided_slice %1 {offsets = [0, 0], sizes = [28, 96], strides = [1, 1]} : vector<32x96xf32> to vector<28x96xf32>
    %4 = arith.truncf %3 : vector<28x96xf32> to vector<28x96xbf16>
    %c0_2 = arith.constant 0 : index
    %c0_3 = arith.constant 0 : index
    %c0_4 = arith.constant 0 : index
    %5 = vector.load %arg2[%c0_2, %c0_3, %c0_4] : memref<5x96x168xbf16, #tpu.memory_space<vmem>>, vector<1x96x168xbf16>
    %6 = vector.shape_cast %5 : vector<1x96x168xbf16> to vector<96x168xbf16>
    %cst_5 = arith.constant dense<0.000000e+00> : vector<28x168xf32>
    %7 = tpu.matmul %4, %6, %cst_5 {dimension_numbers = #tpu.dot_dimension_numbers<[1], [0], [0], [1], [0, 0, 1, 1], [], []>} : vector<28x96xbf16>, vector<96x168xbf16>, vector<28x168xf32> -> vector<28x168xf32>
    %8 = arith.addf %2, %7 : vector<28x168xf32>
    %9 = vector.extract_strided_slice %1 {offsets = [1, 0], sizes = [28, 96], strides = [1, 1]} : vector<32x96xf32> to vector<28x96xf32>
    %10 = arith.truncf %9 : vector<28x96xf32> to vector<28x96xbf16>
    %c1 = arith.constant 1 : index
    %c0_6 = arith.constant 0 : index
    %c0_7 = arith.constant 0 : index
    %11 = vector.load %arg2[%c1, %c0_6, %c0_7] : memref<5x96x168xbf16, #tpu.memory_space<vmem>>, vector<1x96x168xbf16>
    %12 = vector.shape_cast %11 : vector<1x96x168xbf16> to vector<96x168xbf16>
    %cst_8 = arith.constant dense<0.000000e+00> : vector<28x168xf32>
    %13 = tpu.matmul %10, %12, %cst_8 {dimension_numbers = #tpu.dot_dimension_numbers<[1], [0], [0], [1], [0, 0, 1, 1], [], []>} : vector<28x96xbf16>, vector<96x168xbf16>, vector<28x168xf32> -> vector<28x168xf32>
    %14 = arith.addf %8, %13 : vector<28x168xf32>
    %15 = vector.extract_strided_slice %1 {offsets = [2, 0], sizes = [28, 96], strides = [1, 1]} : vector<32x96xf32> to vector<28x96xf32>
    %16 = arith.truncf %15 : vector<28x96xf32> to vector<28x96xbf16>
    %c2 = arith.constant 2 : index
    %c0_9 = arith.constant 0 : index
    %c0_10 = arith.constant 0 : index
    %17 = vector.load %arg2[%c2, %c0_9, %c0_10] : memref<5x96x168xbf16, #tpu.memory_space<vmem>>, vector<1x96x168xbf16>
    %18 = vector.shape_cast %17 : vector<1x96x168xbf16> to vector<96x168xbf16>
    %cst_11 = arith.constant dense<0.000000e+00> : vector<28x168xf32>
    %19 = tpu.matmul %16, %18, %cst_11 {dimension_numbers = #tpu.dot_dimension_numbers<[1], [0], [0], [1], [0, 0, 1, 1], [], []>} : vector<28x96xbf16>, vector<96x168xbf16>, vector<28x168xf32> -> vector<28x168xf32>
    %20 = arith.addf %14, %19 : vector<28x168xf32>
    %21 = vector.extract_strided_slice %1 {offsets = [3, 0], sizes = [28, 96], strides = [1, 1]} : vector<32x96xf32> to vector<28x96xf32>
    %22 = arith.truncf %21 : vector<28x96xf32> to vector<28x96xbf16>
    %c3 = arith.constant 3 : index
    %c0_12 = arith.constant 0 : index
    %c0_13 = arith.constant 0 : index
    %23 = vector.load %arg2[%c3, %c0_12, %c0_13] : memref<5x96x168xbf16, #tpu.memory_space<vmem>>, vector<1x96x168xbf16>
    %24 = vector.shape_cast %23 : vector<1x96x168xbf16> to vector<96x168xbf16>
    %cst_14 = arith.constant dense<0.000000e+00> : vector<28x168xf32>
    %25 = tpu.matmul %22, %24, %cst_14 {dimension_numbers = #tpu.dot_dimension_numbers<[1], [0], [0], [1], [0, 0, 1, 1], [], []>} : vector<28x96xbf16>, vector<96x168xbf16>, vector<28x168xf32> -> vector<28x168xf32>
    %26 = arith.addf %20, %25 : vector<28x168xf32>
    %27 = vector.extract_strided_slice %1 {offsets = [4, 0], sizes = [28, 96], strides = [1, 1]} : vector<32x96xf32> to vector<28x96xf32>
    %28 = arith.truncf %27 : vector<28x96xf32> to vector<28x96xbf16>
    %c4 = arith.constant 4 : index
    %c0_15 = arith.constant 0 : index
    %c0_16 = arith.constant 0 : index
    %29 = vector.load %arg2[%c4, %c0_15, %c0_16] : memref<5x96x168xbf16, #tpu.memory_space<vmem>>, vector<1x96x168xbf16>
    %30 = vector.shape_cast %29 : vector<1x96x168xbf16> to vector<96x168xbf16>
    %cst_17 = arith.constant dense<0.000000e+00> : vector<28x168xf32>
    %31 = tpu.matmul %28, %30, %cst_17 {dimension_numbers = #tpu.dot_dimension_numbers<[1], [0], [0], [1], [0, 0, 1, 1], [], []>} : vector<28x96xbf16>, vector<96x168xbf16>, vector<28x168xf32> -> vector<28x168xf32>
    %32 = arith.addf %26, %31 : vector<28x168xf32>
    %c0_18 = arith.constant 0 : index
    %c0_19 = arith.constant 0 : index
    %33 = vector.load %arg3[%c0_18, %c0_19] : memref<1x168xf32, #tpu.memory_space<vmem>>, vector<1x168xf32>
    %34 = vector.broadcast %33 : vector<1x168xf32> to vector<28x168xf32>
    %35 = arith.addf %32, %34 : vector<28x168xf32>
    %cst_20 = arith.constant 0.000000e+00 : f32
    %36 = vector.broadcast %cst_20 : f32 to vector<28x168xf32>
    %37 = arith.maximumf %35, %36 : vector<28x168xf32>
    %38 = arith.truncf %37 : vector<28x168xf32> to vector<28x168xbf16>
    %c0_21 = arith.constant 0 : index
    %c0_22 = arith.constant 0 : index
    %39 = vector.load %arg4[%c0_21, %c0_22] : memref<168x84xbf16, #tpu.memory_space<vmem>>, vector<168x84xbf16>
    %cst_23 = arith.constant dense<0.000000e+00> : vector<28x84xf32>
    %40 = tpu.matmul %38, %39, %cst_23 {dimension_numbers = #tpu.dot_dimension_numbers<[1], [0], [0], [1], [0, 0, 1, 1], [], []>} : vector<28x168xbf16>, vector<168x84xbf16>, vector<28x84xf32> -> vector<28x84xf32>
    %c0_24 = arith.constant 0 : index
    %c0_25 = arith.constant 0 : index
    %41 = vector.load %arg5[%c0_24, %c0_25] : memref<168x84xbf16, #tpu.memory_space<vmem>>, vector<168x84xbf16>
    %cst_26 = arith.constant dense<0.000000e+00> : vector<28x84xf32>
    %42 = tpu.matmul %38, %41, %cst_26 {dimension_numbers = #tpu.dot_dimension_numbers<[1], [0], [0], [1], [0, 0, 1, 1], [], []>} : vector<28x168xbf16>, vector<168x84xbf16>, vector<28x84xf32> -> vector<28x84xf32>
    %43 = arith.maximumf %40, %42 : vector<28x84xf32>
    %44 = arith.truncf %43 : vector<28x84xf32> to vector<28x84xbf16>
    %c0_27 = arith.constant 0 : index
    %c0_28 = arith.constant 0 : index
    %45 = vector.load %arg6[%c0_27, %c0_28] : memref<14x28xbf16, #tpu.memory_space<vmem>>, vector<14x28xbf16>
    %cst_29 = arith.constant dense<0.000000e+00> : vector<14x84xf32>
    %46 = tpu.matmul %45, %44, %cst_29 {dimension_numbers = #tpu.dot_dimension_numbers<[1], [0], [0], [1], [0, 0, 1, 1], [], []>} : vector<14x28xbf16>, vector<28x84xbf16>, vector<14x84xf32> -> vector<14x84xf32>
    %c0_30 = arith.constant 0 : index
    %c0_31 = arith.constant 0 : index
    %47 = vector.load %arg7[%c0_30, %c0_31] : memref<14x28xbf16, #tpu.memory_space<vmem>>, vector<14x28xbf16>
    %cst_32 = arith.constant dense<0.000000e+00> : vector<14x84xf32>
    %48 = tpu.matmul %47, %44, %cst_32 {dimension_numbers = #tpu.dot_dimension_numbers<[1], [0], [0], [1], [0, 0, 1, 1], [], []>} : vector<14x28xbf16>, vector<28x84xbf16>, vector<14x84xf32> -> vector<14x84xf32>
    %49 = arith.maximumf %46, %48 : vector<14x84xf32>
    %cst_33 = arith.constant 0.000000e+00 : f32
    %50 = vector.broadcast %cst_33 : f32 to vector<10x160xf32>
    %51 = vector.extract_strided_slice %49 {offsets = [0, 0], sizes = [10, 84], strides = [1, 1]} : vector<14x84xf32> to vector<10x84xf32>
    %52 = arith.truncf %51 : vector<10x84xf32> to vector<10x84xbf16>
    %c0_34 = arith.constant 0 : index
    %c0_35 = arith.constant 0 : index
    %c0_36 = arith.constant 0 : index
    %53 = vector.load %arg8[%c0_34, %c0_35, %c0_36] : memref<5x84x160xbf16, #tpu.memory_space<vmem>>, vector<1x84x160xbf16>
    %54 = vector.shape_cast %53 : vector<1x84x160xbf16> to vector<84x160xbf16>
    %cst_37 = arith.constant dense<0.000000e+00> : vector<10x160xf32>
    %55 = tpu.matmul %52, %54, %cst_37 {dimension_numbers = #tpu.dot_dimension_numbers<[1], [0], [0], [1], [0, 0, 1, 1], [], []>} : vector<10x84xbf16>, vector<84x160xbf16>, vector<10x160xf32> -> vector<10x160xf32>
    %56 = arith.addf %50, %55 : vector<10x160xf32>
    %57 = vector.extract_strided_slice %49 {offsets = [1, 0], sizes = [10, 84], strides = [1, 1]} : vector<14x84xf32> to vector<10x84xf32>
    %58 = arith.truncf %57 : vector<10x84xf32> to vector<10x84xbf16>
    %c1_38 = arith.constant 1 : index
    %c0_39 = arith.constant 0 : index
    %c0_40 = arith.constant 0 : index
    %59 = vector.load %arg8[%c1_38, %c0_39, %c0_40] : memref<5x84x160xbf16, #tpu.memory_space<vmem>>, vector<1x84x160xbf16>
    %60 = vector.shape_cast %59 : vector<1x84x160xbf16> to vector<84x160xbf16>
    %cst_41 = arith.constant dense<0.000000e+00> : vector<10x160xf32>
    %61 = tpu.matmul %58, %60, %cst_41 {dimension_numbers = #tpu.dot_dimension_numbers<[1], [0], [0], [1], [0, 0, 1, 1], [], []>} : vector<10x84xbf16>, vector<84x160xbf16>, vector<10x160xf32> -> vector<10x160xf32>
    %62 = arith.addf %56, %61 : vector<10x160xf32>
    %63 = vector.extract_strided_slice %49 {offsets = [2, 0], sizes = [10, 84], strides = [1, 1]} : vector<14x84xf32> to vector<10x84xf32>
    %64 = arith.truncf %63 : vector<10x84xf32> to vector<10x84xbf16>
    %c2_42 = arith.constant 2 : index
    %c0_43 = arith.constant 0 : index
    %c0_44 = arith.constant 0 : index
    %65 = vector.load %arg8[%c2_42, %c0_43, %c0_44] : memref<5x84x160xbf16, #tpu.memory_space<vmem>>, vector<1x84x160xbf16>
    %66 = vector.shape_cast %65 : vector<1x84x160xbf16> to vector<84x160xbf16>
    %cst_45 = arith.constant dense<0.000000e+00> : vector<10x160xf32>
    %67 = tpu.matmul %64, %66, %cst_45 {dimension_numbers = #tpu.dot_dimension_numbers<[1], [0], [0], [1], [0, 0, 1, 1], [], []>} : vector<10x84xbf16>, vector<84x160xbf16>, vector<10x160xf32> -> vector<10x160xf32>
    %68 = arith.addf %62, %67 : vector<10x160xf32>
    %69 = vector.extract_strided_slice %49 {offsets = [3, 0], sizes = [10, 84], strides = [1, 1]} : vector<14x84xf32> to vector<10x84xf32>
    %70 = arith.truncf %69 : vector<10x84xf32> to vector<10x84xbf16>
    %c3_46 = arith.constant 3 : index
    %c0_47 = arith.constant 0 : index
    %c0_48 = arith.constant 0 : index
    %71 = vector.load %arg8[%c3_46, %c0_47, %c0_48] : memref<5x84x160xbf16, #tpu.memory_space<vmem>>, vector<1x84x160xbf16>
    %72 = vector.shape_cast %71 : vector<1x84x160xbf16> to vector<84x160xbf16>
    %cst_49 = arith.constant dense<0.000000e+00> : vector<10x160xf32>
    %73 = tpu.matmul %70, %72, %cst_49 {dimension_numbers = #tpu.dot_dimension_numbers<[1], [0], [0], [1], [0, 0, 1, 1], [], []>} : vector<10x84xbf16>, vector<84x160xbf16>, vector<10x160xf32> -> vector<10x160xf32>
    %74 = arith.addf %68, %73 : vector<10x160xf32>
    %75 = vector.extract_strided_slice %49 {offsets = [4, 0], sizes = [10, 84], strides = [1, 1]} : vector<14x84xf32> to vector<10x84xf32>
    %76 = arith.truncf %75 : vector<10x84xf32> to vector<10x84xbf16>
    %c4_50 = arith.constant 4 : index
    %c0_51 = arith.constant 0 : index
    %c0_52 = arith.constant 0 : index
    %77 = vector.load %arg8[%c4_50, %c0_51, %c0_52] : memref<5x84x160xbf16, #tpu.memory_space<vmem>>, vector<1x84x160xbf16>
    %78 = vector.shape_cast %77 : vector<1x84x160xbf16> to vector<84x160xbf16>
    %cst_53 = arith.constant dense<0.000000e+00> : vector<10x160xf32>
    %79 = tpu.matmul %76, %78, %cst_53 {dimension_numbers = #tpu.dot_dimension_numbers<[1], [0], [0], [1], [0, 0, 1, 1], [], []>} : vector<10x84xbf16>, vector<84x160xbf16>, vector<10x160xf32> -> vector<10x160xf32>
    %80 = arith.addf %74, %79 : vector<10x160xf32>
    %c0_54 = arith.constant 0 : index
    %c0_55 = arith.constant 0 : index
    %81 = vector.load %arg9[%c0_54, %c0_55] : memref<1x160xf32, #tpu.memory_space<vmem>>, vector<1x160xf32>
    %82 = vector.broadcast %81 : vector<1x160xf32> to vector<10x160xf32>
    %83 = arith.addf %80, %82 : vector<10x160xf32>
    %cst_56 = arith.constant 0.000000e+00 : f32
    %84 = vector.broadcast %cst_56 : f32 to vector<10x160xf32>
    %85 = arith.maximumf %83, %84 : vector<10x160xf32>
    %86 = arith.truncf %85 : vector<10x160xf32> to vector<10x160xbf16>
    %c0_57 = arith.constant 0 : index
    %c0_58 = arith.constant 0 : index
    %87 = vector.load %arg10[%c0_57, %c0_58] : memref<160x80xbf16, #tpu.memory_space<vmem>>, vector<160x80xbf16>
    %cst_59 = arith.constant dense<0.000000e+00> : vector<10x80xf32>
    %88 = tpu.matmul %86, %87, %cst_59 {dimension_numbers = #tpu.dot_dimension_numbers<[1], [0], [0], [1], [0, 0, 1, 1], [], []>} : vector<10x160xbf16>, vector<160x80xbf16>, vector<10x80xf32> -> vector<10x80xf32>
    %c0_60 = arith.constant 0 : index
    %c0_61 = arith.constant 0 : index
    %89 = vector.load %arg11[%c0_60, %c0_61] : memref<160x80xbf16, #tpu.memory_space<vmem>>, vector<160x80xbf16>
    %cst_62 = arith.constant dense<0.000000e+00> : vector<10x80xf32>
    %90 = tpu.matmul %86, %89, %cst_62 {dimension_numbers = #tpu.dot_dimension_numbers<[1], [0], [0], [1], [0, 0, 1, 1], [], []>} : vector<10x160xbf16>, vector<160x80xbf16>, vector<10x80xf32> -> vector<10x80xf32>
    %91 = arith.maximumf %88, %90 : vector<10x80xf32>
    %92 = arith.truncf %91 : vector<10x80xf32> to vector<10x80xbf16>
    %c0_63 = arith.constant 0 : index
    %c0_64 = arith.constant 0 : index
    %93 = vector.load %arg12[%c0_63, %c0_64] : memref<5x10xbf16, #tpu.memory_space<vmem>>, vector<5x10xbf16>
    %cst_65 = arith.constant dense<0.000000e+00> : vector<5x80xf32>
    %94 = tpu.matmul %93, %92, %cst_65 {dimension_numbers = #tpu.dot_dimension_numbers<[1], [0], [0], [1], [0, 0, 1, 1], [], []>} : vector<5x10xbf16>, vector<10x80xbf16>, vector<5x80xf32> -> vector<5x80xf32>
    %c0_66 = arith.constant 0 : index
    %c0_67 = arith.constant 0 : index
    %95 = vector.load %arg13[%c0_66, %c0_67] : memref<5x10xbf16, #tpu.memory_space<vmem>>, vector<5x10xbf16>
    %cst_68 = arith.constant dense<0.000000e+00> : vector<5x80xf32>
    %96 = tpu.matmul %95, %92, %cst_68 {dimension_numbers = #tpu.dot_dimension_numbers<[1], [0], [0], [1], [0, 0, 1, 1], [], []>} : vector<5x10xbf16>, vector<10x80xbf16>, vector<5x80xf32> -> vector<5x80xf32>
    %97 = arith.maximumf %94, %96 : vector<5x80xf32>
    %cst_69 = arith.constant 0.000000e+00 : f32
    %98 = vector.broadcast %cst_69 : f32 to vector<1x120xf32>
    %99 = vector.extract_strided_slice %97 {offsets = [0, 0], sizes = [1, 80], strides = [1, 1]} : vector<5x80xf32> to vector<1x80xf32>
    %100 = arith.truncf %99 : vector<1x80xf32> to vector<1x80xbf16>
    %c0_70 = arith.constant 0 : index
    %c0_71 = arith.constant 0 : index
    %c0_72 = arith.constant 0 : index
    %101 = vector.load %arg14[%c0_70, %c0_71, %c0_72] : memref<5x80x120xbf16, #tpu.memory_space<vmem>>, vector<1x80x120xbf16>
    %102 = vector.shape_cast %101 : vector<1x80x120xbf16> to vector<80x120xbf16>
    %cst_73 = arith.constant dense<0.000000e+00> : vector<1x120xf32>
    %103 = tpu.matmul %100, %102, %cst_73 {dimension_numbers = #tpu.dot_dimension_numbers<[1], [0], [0], [1], [0, 0, 1, 1], [], []>} : vector<1x80xbf16>, vector<80x120xbf16>, vector<1x120xf32> -> vector<1x120xf32>
    %104 = arith.addf %98, %103 : vector<1x120xf32>
    %105 = vector.extract_strided_slice %97 {offsets = [1, 0], sizes = [1, 80], strides = [1, 1]} : vector<5x80xf32> to vector<1x80xf32>
    %106 = arith.truncf %105 : vector<1x80xf32> to vector<1x80xbf16>
    %c1_74 = arith.constant 1 : index
    %c0_75 = arith.constant 0 : index
    %c0_76 = arith.constant 0 : index
    %107 = vector.load %arg14[%c1_74, %c0_75, %c0_76] : memref<5x80x120xbf16, #tpu.memory_space<vmem>>, vector<1x80x120xbf16>
    %108 = vector.shape_cast %107 : vector<1x80x120xbf16> to vector<80x120xbf16>
    %cst_77 = arith.constant dense<0.000000e+00> : vector<1x120xf32>
    %109 = tpu.matmul %106, %108, %cst_77 {dimension_numbers = #tpu.dot_dimension_numbers<[1], [0], [0], [1], [0, 0, 1, 1], [], []>} : vector<1x80xbf16>, vector<80x120xbf16>, vector<1x120xf32> -> vector<1x120xf32>
    %110 = arith.addf %104, %109 : vector<1x120xf32>
    %111 = vector.extract_strided_slice %97 {offsets = [2, 0], sizes = [1, 80], strides = [1, 1]} : vector<5x80xf32> to vector<1x80xf32>
    %112 = arith.truncf %111 : vector<1x80xf32> to vector<1x80xbf16>
    %c2_78 = arith.constant 2 : index
    %c0_79 = arith.constant 0 : index
    %c0_80 = arith.constant 0 : index
    %113 = vector.load %arg14[%c2_78, %c0_79, %c0_80] : memref<5x80x120xbf16, #tpu.memory_space<vmem>>, vector<1x80x120xbf16>
    %114 = vector.shape_cast %113 : vector<1x80x120xbf16> to vector<80x120xbf16>
    %cst_81 = arith.constant dense<0.000000e+00> : vector<1x120xf32>
    %115 = tpu.matmul %112, %114, %cst_81 {dimension_numbers = #tpu.dot_dimension_numbers<[1], [0], [0], [1], [0, 0, 1, 1], [], []>} : vector<1x80xbf16>, vector<80x120xbf16>, vector<1x120xf32> -> vector<1x120xf32>
    %116 = arith.addf %110, %115 : vector<1x120xf32>
    %117 = vector.extract_strided_slice %97 {offsets = [3, 0], sizes = [1, 80], strides = [1, 1]} : vector<5x80xf32> to vector<1x80xf32>
    %118 = arith.truncf %117 : vector<1x80xf32> to vector<1x80xbf16>
    %c3_82 = arith.constant 3 : index
    %c0_83 = arith.constant 0 : index
    %c0_84 = arith.constant 0 : index
    %119 = vector.load %arg14[%c3_82, %c0_83, %c0_84] : memref<5x80x120xbf16, #tpu.memory_space<vmem>>, vector<1x80x120xbf16>
    %120 = vector.shape_cast %119 : vector<1x80x120xbf16> to vector<80x120xbf16>
    %cst_85 = arith.constant dense<0.000000e+00> : vector<1x120xf32>
    %121 = tpu.matmul %118, %120, %cst_85 {dimension_numbers = #tpu.dot_dimension_numbers<[1], [0], [0], [1], [0, 0, 1, 1], [], []>} : vector<1x80xbf16>, vector<80x120xbf16>, vector<1x120xf32> -> vector<1x120xf32>
    %122 = arith.addf %116, %121 : vector<1x120xf32>
    %123 = vector.extract_strided_slice %97 {offsets = [4, 0], sizes = [1, 80], strides = [1, 1]} : vector<5x80xf32> to vector<1x80xf32>
    %124 = arith.truncf %123 : vector<1x80xf32> to vector<1x80xbf16>
    %c4_86 = arith.constant 4 : index
    %c0_87 = arith.constant 0 : index
    %c0_88 = arith.constant 0 : index
    %125 = vector.load %arg14[%c4_86, %c0_87, %c0_88] : memref<5x80x120xbf16, #tpu.memory_space<vmem>>, vector<1x80x120xbf16>
    %126 = vector.shape_cast %125 : vector<1x80x120xbf16> to vector<80x120xbf16>
    %cst_89 = arith.constant dense<0.000000e+00> : vector<1x120xf32>
    %127 = tpu.matmul %124, %126, %cst_89 {dimension_numbers = #tpu.dot_dimension_numbers<[1], [0], [0], [1], [0, 0, 1, 1], [], []>} : vector<1x80xbf16>, vector<80x120xbf16>, vector<1x120xf32> -> vector<1x120xf32>
    %128 = arith.addf %122, %127 : vector<1x120xf32>
    %c0_90 = arith.constant 0 : index
    %c0_91 = arith.constant 0 : index
    %129 = vector.load %arg15[%c0_90, %c0_91] : memref<1x120xf32, #tpu.memory_space<vmem>>, vector<1x120xf32>
    %130 = arith.addf %128, %129 : vector<1x120xf32>
    %cst_92 = arith.constant 0.000000e+00 : f32
    %131 = vector.broadcast %cst_92 : f32 to vector<1x120xf32>
    %132 = arith.maximumf %130, %131 : vector<1x120xf32>
    %133 = arith.truncf %132 : vector<1x120xf32> to vector<1x120xbf16>
    %c0_93 = arith.constant 0 : index
    %c0_94 = arith.constant 0 : index
    %134 = vector.load %arg16[%c0_93, %c0_94] : memref<120x84xbf16, #tpu.memory_space<vmem>>, vector<120x84xbf16>
    %cst_95 = arith.constant dense<0.000000e+00> : vector<1x84xf32>
    %135 = tpu.matmul %133, %134, %cst_95 {dimension_numbers = #tpu.dot_dimension_numbers<[1], [0], [0], [1], [0, 0, 1, 1], [], []>} : vector<1x120xbf16>, vector<120x84xbf16>, vector<1x84xf32> -> vector<1x84xf32>
    %c0_96 = arith.constant 0 : index
    %c0_97 = arith.constant 0 : index
    %136 = vector.load %arg17[%c0_96, %c0_97] : memref<1x84xf32, #tpu.memory_space<vmem>>, vector<1x84xf32>
    %137 = arith.addf %135, %136 : vector<1x84xf32>
    %cst_98 = arith.constant 0.000000e+00 : f32
    %138 = vector.broadcast %cst_98 : f32 to vector<1x84xf32>
    %139 = arith.maximumf %137, %138 : vector<1x84xf32>
    %140 = arith.truncf %139 : vector<1x84xf32> to vector<1x84xbf16>
    %c0_99 = arith.constant 0 : index
    %c0_100 = arith.constant 0 : index
    %141 = vector.load %arg18[%c0_99, %c0_100] : memref<84x10xbf16, #tpu.memory_space<vmem>>, vector<84x10xbf16>
    %cst_101 = arith.constant dense<0.000000e+00> : vector<1x10xf32>
    %142 = tpu.matmul %140, %141, %cst_101 {dimension_numbers = #tpu.dot_dimension_numbers<[1], [0], [0], [1], [0, 0, 1, 1], [], []>} : vector<1x84xbf16>, vector<84x10xbf16>, vector<1x10xf32> -> vector<1x10xf32>
    %c0_102 = arith.constant 0 : index
    %c0_103 = arith.constant 0 : index
    %143 = vector.load %arg19[%c0_102, %c0_103] : memref<1x10xf32, #tpu.memory_space<vmem>>, vector<1x10xf32>
    %144 = arith.addf %142, %143 : vector<1x10xf32>
    %c0_104 = arith.constant 0 : index
    %c0_105 = arith.constant 0 : index
    %c0_106 = arith.constant 0 : index
    %145 = vector.load %arg20[%c0_104, %c0_105, %c0_106] : memref<1x1x10xf32, #tpu.memory_space<vmem>>, vector<1x1x10xf32>
    %146 = vector.shape_cast %145 : vector<1x1x10xf32> to vector<1x10xf32>
    %147 = vector.shape_cast %144 : vector<1x10xf32> to vector<1x1x10xf32>
    tpu.vector_store %arg20[%c0_104, %c0_105, %c0_106], %147 {strides = array<i32>} : memref<1x1x10xf32, #tpu.memory_space<vmem>>, vector<1x1x10xf32>,
    return
  }
  func.func @transform_0(%arg0: i32) -> (i32, i32, i32) {
    %c0_i32 = arith.constant 0 : i32
    %c0_i32_0 = arith.constant 0 : i32
    %c0_i32_1 = arith.constant 0 : i32
    return %arg0, %c0_i32, %c0_i32_0 : i32, i32, i32
  }
  func.func @transform_1(%arg0: i32) -> (i32, i32, i32) {
    %c0_i32 = arith.constant 0 : i32
    %c0_i32_0 = arith.constant 0 : i32
    %c0_i32_1 = arith.constant 0 : i32
    %c0_i32_2 = arith.constant 0 : i32
    return %c0_i32, %c0_i32_0, %c0_i32_1 : i32, i32, i32
  }
  func.func @transform_2(%arg0: i32) -> (i32, i32) {
    %c0_i32 = arith.constant 0 : i32
    %c0_i32_0 = arith.constant 0 : i32
    %c0_i32_1 = arith.constant 0 : i32
    return %c0_i32, %c0_i32_0 : i32, i32
  }
  func.func @transform_3(%arg0: i32) -> (i32, i32) {
    %c0_i32 = arith.constant 0 : i32
    %c0_i32_0 = arith.constant 0 : i32
    %c0_i32_1 = arith.constant 0 : i32
    return %c0_i32, %c0_i32_0 : i32, i32
  }
  func.func @transform_4(%arg0: i32) -> (i32, i32) {
    %c0_i32 = arith.constant 0 : i32
    %c0_i32_0 = arith.constant 0 : i32
    %c0_i32_1 = arith.constant 0 : i32
    return %c0_i32, %c0_i32_0 : i32, i32
  }
  func.func @transform_5(%arg0: i32) -> (i32, i32) {
    %c0_i32 = arith.constant 0 : i32
    %c0_i32_0 = arith.constant 0 : i32
    %c0_i32_1 = arith.constant 0 : i32
    return %c0_i32, %c0_i32_0 : i32, i32
  }
  func.func @transform_6(%arg0: i32) -> (i32, i32) {
    %c0_i32 = arith.constant 0 : i32
    %c0_i32_0 = arith.constant 0 : i32
    %c0_i32_1 = arith.constant 0 : i32
    return %c0_i32, %c0_i32_0 : i32, i32
  }
  func.func @transform_7(%arg0: i32) -> (i32, i32, i32) {
    %c0_i32 = arith.constant 0 : i32
    %c0_i32_0 = arith.constant 0 : i32
    %c0_i32_1 = arith.constant 0 : i32
    %c0_i32_2 = arith.constant 0 : i32
    return %c0_i32, %c0_i32_0, %c0_i32_1 : i32, i32, i32
  }
  func.func @transform_8(%arg0: i32) -> (i32, i32) {
    %c0_i32 = arith.constant 0 : i32
    %c0_i32_0 = arith.constant 0 : i32
    %c0_i32_1 = arith.constant 0 : i32
    return %c0_i32, %c0_i32_0 : i32, i32
  }
  func.func @transform_9(%arg0: i32) -> (i32, i32) {
    %c0_i32 = arith.constant 0 : i32
    %c0_i32_0 = arith.constant 0 : i32
    %c0_i32_1 = arith.constant 0 : i32
    return %c0_i32, %c0_i32_0 : i32, i32
  }
  func.func @transform_10(%arg0: i32) -> (i32, i32) {
    %c0_i32 = arith.constant 0 : i32
    %c0_i32_0 = arith.constant 0 : i32
    %c0_i32_1 = arith.constant 0 : i32
    return %c0_i32, %c0_i32_0 : i32, i32
  }
  func.func @transform_11(%arg0: i32) -> (i32, i32) {
    %c0_i32 = arith.constant 0 : i32
    %c0_i32_0 = arith.constant 0 : i32
    %c0_i32_1 = arith.constant 0 : i32
    return %c0_i32, %c0_i32_0 : i32, i32
  }
  func.func @transform_12(%arg0: i32) -> (i32, i32) {
    %c0_i32 = arith.constant 0 : i32
    %c0_i32_0 = arith.constant 0 : i32
    %c0_i32_1 = arith.constant 0 : i32
    return %c0_i32, %c0_i32_0 : i32, i32
  }
  func.func @transform_13(%arg0: i32) -> (i32, i32, i32) {
    %c0_i32 = arith.constant 0 : i32
    %c0_i32_0 = arith.constant 0 : i32
    %c0_i32_1 = arith.constant 0 : i32
    %c0_i32_2 = arith.constant 0 : i32
    return %c0_i32, %c0_i32_0, %c0_i32_1 : i32, i32, i32
  }
  func.func @transform_14(%arg0: i32) -> (i32, i32) {
    %c0_i32 = arith.constant 0 : i32
    %c0_i32_0 = arith.constant 0 : i32
    %c0_i32_1 = arith.constant 0 : i32
    return %c0_i32, %c0_i32_0 : i32, i32
  }
  func.func @transform_15(%arg0: i32) -> (i32, i32) {
    %c0_i32 = arith.constant 0 : i32
    %c0_i32_0 = arith.constant 0 : i32
    %c0_i32_1 = arith.constant 0 : i32
    return %c0_i32, %c0_i32_0 : i32, i32
  }
  func.func @transform_16(%arg0: i32) -> (i32, i32) {
    %c0_i32 = arith.constant 0 : i32
    %c0_i32_0 = arith.constant 0 : i32
    %c0_i32_1 = arith.constant 0 : i32
    return %c0_i32, %c0_i32_0 : i32, i32
  }
  func.func @transform_17(%arg0: i32) -> (i32, i32) {
    %c0_i32 = arith.constant 0 : i32
    %c0_i32_0 = arith.constant 0 : i32
    %c0_i32_1 = arith.constant 0 : i32
    return %c0_i32, %c0_i32_0 : i32, i32
  }
  func.func @transform_18(%arg0: i32) -> (i32, i32) {
    %c0_i32 = arith.constant 0 : i32
    %c0_i32_0 = arith.constant 0 : i32
    %c0_i32_1 = arith.constant 0 : i32
    return %c0_i32, %c0_i32_0 : i32, i32
  }
  func.func @transform_19(%arg0: i32) -> (i32, i32, i32) {
    %c0_i32 = arith.constant 0 : i32
    %c0_i32_0 = arith.constant 0 : i32
    %c0_i32_1 = arith.constant 0 : i32
    return %arg0, %c0_i32, %c0_i32_0 : i32, i32, i32
  }
}

</mosaic_0001>

<llo_original>
// kernel: example_cnn_forward.1
$region0: #{example_cnn_forward.1}
  #allocation0 [shape = 'u32[]', space=smem, size = 0x4, offset = 0x4, fixed_abs, tag = 'smem constant byte address 0x4 - core index']
  #allocation1 [shape = 'u32[144,128]{1,0:T(1,128)}', space=vmem, size = 0x12000, scoped, tag = 'internal scratch']
  %s0 = inlined_call_operand.vmem [shape: f32[2,32,96], index: 0, kind: input, shape index: {}]
  %s1 = inlined_call_operand.vmem [shape: bf16[5,96,168], index: 1, kind: input, shape index: {}]
  %s2 = inlined_call_operand.vmem [shape: f32[1,168], index: 2, kind: input, shape index: {}]
  %s3 = inlined_call_operand.vmem [shape: bf16[168,84], index: 3, kind: input, shape index: {}]
  %s4 = inlined_call_operand.vmem [shape: bf16[168,84], index: 4, kind: input, shape index: {}]
  %s5 = inlined_call_operand.vmem [shape: bf16[14,28], index: 5, kind: input, shape index: {}]
  %s6 = inlined_call_operand.vmem [shape: bf16[14,28], index: 6, kind: input, shape index: {}]
  %s7 = inlined_call_operand.vmem [shape: bf16[5,84,160], index: 7, kind: input, shape index: {}]
  %s8 = inlined_call_operand.vmem [shape: f32[1,160], index: 8, kind: input, shape index: {}]
  %s9 = inlined_call_operand.vmem [shape: bf16[160,80], index: 9, kind: input, shape index: {}]
  %s10 = inlined_call_operand.vmem [shape: bf16[160,80], index: 10, kind: input, shape index: {}]
  %s11 = inlined_call_operand.vmem [shape: bf16[5,10], index: 11, kind: input, shape index: {}]
  %s12 = inlined_call_operand.vmem [shape: bf16[5,10], index: 12, kind: input, shape index: {}]
  %s13 = inlined_call_operand.vmem [shape: bf16[5,80,120], index: 13, kind: input, shape index: {}]
  %s14 = inlined_call_operand.vmem [shape: f32[1,120], index: 14, kind: input, shape index: {}]
  %s15 = inlined_call_operand.vmem [shape: bf16[120,84], index: 15, kind: input, shape index: {}]
  %s16 = inlined_call_operand.vmem [shape: f32[1,84], index: 16, kind: input, shape index: {}]
  %s17 = inlined_call_operand.vmem [shape: bf16[84,10], index: 17, kind: input, shape index: {}]
  %s18 = inlined_call_operand.vmem [shape: f32[1,10], index: 18, kind: input, shape index: {}]
  %s19 = inlined_call_operand.hbm [shape: f32[2,1,10], index: 19, kind: output, shape index: {}]
  %s20 = sld [smem:[#allocation0]]
  $region109: #{example_cnn_forward.1} parent=0
    _
  %s22 = ssub.s32 1, %s20
  %s23 = scalar_select 0, %s22, %s20
  $region1: #{example_cnn_forward.1} parent=0
    #allocation2 [shape = 'u8[1024]{0}', space=vmem, size = 0x400, scoped, tag = 'output window, operand 0']
    #allocation3 [shape = 's32[2]{0}', space=sflag, size = 0x8, scoped, tag = 'scoped memory for example_cnn_forward.1']
    %24 = vsyncpa [#allocation3], 0
    %s25 = scalar_lea.sflag [#allocation3], 1
    %26 = vsyncpa %s25, 0
    loop: start=0, step=1, limit=4
    $region2: #{example_cnn_forward.1} parent=1 // loop_pre_header
      _
    $region3: #{example_cnn_forward.1} parent=1 // loop_header
      %s28 = sphi 0, %s32
      %p29 = scmp.ge.s32.totalorder %s28, 4
      %s38 = sphi 0, %s40
      %s41 = sphi 0, %s38
      %s42 = sphi 0, %s41
      %s58 = sphi 0, %s42
      %s62 = sphi 0, %s62
      %s64 = sphi 0, %s62
      %s65 = sphi 0, %s64
      %s79 = sphi 0, %s65
      %s83 = sphi 0, %s83
      %s85 = sphi 0, %s83
      %s86 = sphi 0, %s85
      %s100 = sphi 0, %s86
      %s104 = sphi 0, %s104
      %s106 = sphi 0, %s104
      %s107 = sphi 0, %s106
      %s121 = sphi 0, %s107
      %s125 = sphi 0, %s125
      %s127 = sphi 0, %s125
      %s128 = sphi 0, %s127
      %s142 = sphi 0, %s128
      %s146 = sphi 0, %s146
      %s148 = sphi 0, %s146
      %s149 = sphi 0, %s148
      %s163 = sphi 0, %s149
      %s167 = sphi 0, %s167
      %s169 = sphi 0, %s167
      %s170 = sphi 0, %s169
      %s184 = sphi 0, %s170
      %s188 = sphi 0, %s188
      %s190 = sphi 0, %s188
      %s191 = sphi 0, %s190
      %s205 = sphi 0, %s191
      %s209 = sphi 0, %s209
      %s211 = sphi 0, %s209
      %s212 = sphi 0, %s211
      %s226 = sphi 0, %s212
      %s230 = sphi 0, %s230
      %s232 = sphi 0, %s230
      %s233 = sphi 0, %s232
      %s247 = sphi 0, %s233
      %s251 = sphi 0, %s251
      %s253 = sphi 0, %s251
      %s254 = sphi 0, %s253
      %s268 = sphi 0, %s254
      %s272 = sphi 0, %s272
      %s274 = sphi 0, %s272
      %s275 = sphi 0, %s274
      %s289 = sphi 0, %s275
      %s293 = sphi 0, %s293
      %s295 = sphi 0, %s293
      %s296 = sphi 0, %s295
      %s310 = sphi 0, %s296
      %s314 = sphi 0, %s314
      %s316 = sphi 0, %s314
      %s317 = sphi 0, %s316
      %s331 = sphi 0, %s317
      %s335 = sphi 0, %s335
      %s337 = sphi 0, %s335
      %s338 = sphi 0, %s337
      %s352 = sphi 0, %s338
      %s356 = sphi 0, %s356
      %s358 = sphi 0, %s356
      %s359 = sphi 0, %s358
      %s373 = sphi 0, %s359
      %s377 = sphi 0, %s377
      %s379 = sphi 0, %s377
      %s380 = sphi 0, %s379
      %s394 = sphi 0, %s380
      %s398 = sphi 0, %s398
      %s400 = sphi 0, %s398
      %s401 = sphi 0, %s400
      %s415 = sphi 0, %s401
      %s419 = sphi 0, %s419
      %s421 = sphi 0, %s419
      %s422 = sphi 0, %s421
      %s436 = sphi 0, %s422
      %s442 = sphi 0, %s444
      %s445 = sphi 0, %s442
      %s446 = sphi 0, %s445
      %s462 = sphi 0, %s446
    $region4: #{example_cnn_forward.1} parent=1 // loop_header_branch
      %31 = sbr.rel (%p29) target = $region8
    $region5: #{example_cnn_forward.1} parent=1 // loop_body
      %s33 = ssub.s32 %s28, 1
      %s34 = ssub.s32 %s28, 2
      %s35 = sadd.s32 %s28, 1
      %s36 = ssub.s32 %s28, %s35
      %p37 = scmp.eq.s32.totalorder %s36, 0
      %s39 = sadd.s32 %s38, 1
      %s40 = scalar_select %p37, %s38, %s39
      %p43 = pneg %p37
      %p44 = scmp.eq.s32.totalorder %s28, 1
      %p45 = por %p43, %p44
      %p46 = scmp.ne.s32.totalorder %s38, %s41
      %p47 = scmp.eq.s32.totalorder %s28, 0
      %p48 = por %p46, %p47
      %p49 = scmp.ne.s32.totalorder %s38, %s41
      %p50 = scmp.eq.s32.totalorder %s33, 1
      %p51 = por %p49, %p50
      %p52 = scmp.ne.s32.totalorder %s41, %s42
      %p53 = scmp.eq.s32.totalorder %s33, 0
      %p54 = por %p52, %p53
      %p55 = scmp.ne.s32.totalorder %s41, %s42
      %p56 = scmp.eq.s32.totalorder %s34, 1
      %p57 = por %p55, %p56
      %p59 = scmp.ne.s32.totalorder %s42, %s58
      %p60 = scmp.eq.s32.totalorder %s34, 0
      %p61 = por %p59, %p60
      %s63 = sadd.s32 %s62, 1
      %p66 = scmp.eq.s32.totalorder %s28, 1
      %p67 = scmp.ne.s32.totalorder %s62, %s64
      %p68 = scmp.eq.s32.totalorder %s28, 0
      %p69 = por %p67, %p68
      %p70 = scmp.ne.s32.totalorder %s62, %s64
      %p71 = scmp.eq.s32.totalorder %s33, 1
      %p72 = por %p70, %p71
      %p73 = scmp.ne.s32.totalorder %s64, %s65
      %p74 = scmp.eq.s32.totalorder %s33, 0
      %p75 = por %p73, %p74
      %p76 = scmp.ne.s32.totalorder %s64, %s65
      %p77 = scmp.eq.s32.totalorder %s34, 1
      %p78 = por %p76, %p77
      %p80 = scmp.ne.s32.totalorder %s65, %s79
      %p81 = scmp.eq.s32.totalorder %s34, 0
      %p82 = por %p80, %p81
      %s84 = sadd.s32 %s83, 1
      %p87 = scmp.eq.s32.totalorder %s28, 1
      %p88 = scmp.ne.s32.totalorder %s83, %s85
      %p89 = scmp.eq.s32.totalorder %s28, 0
      %p90 = por %p88, %p89
      %p91 = scmp.ne.s32.totalorder %s83, %s85
      %p92 = scmp.eq.s32.totalorder %s33, 1
      %p93 = por %p91, %p92
      %p94 = scmp.ne.s32.totalorder %s85, %s86
      %p95 = scmp.eq.s32.totalorder %s33, 0
      %p96 = por %p94, %p95
      %p97 = scmp.ne.s32.totalorder %s85, %s86
      %p98 = scmp.eq.s32.totalorder %s34, 1
      %p99 = por %p97, %p98
      %p101 = scmp.ne.s32.totalorder %s86, %s100
      %p102 = scmp.eq.s32.totalorder %s34, 0
      %p103 = por %p101, %p102
      %s105 = sadd.s32 %s104, 1
      %p108 = scmp.eq.s32.totalorder %s28, 1
      %p109 = scmp.ne.s32.totalorder %s104, %s106
      %p110 = scmp.eq.s32.totalorder %s28, 0
      %p111 = por %p109, %p110
      %p112 = scmp.ne.s32.totalorder %s104, %s106
      %p113 = scmp.eq.s32.totalorder %s33, 1
      %p114 = por %p112, %p113
      %p115 = scmp.ne.s32.totalorder %s106, %s107
      %p116 = scmp.eq.s32.totalorder %s33, 0
      %p117 = por %p115, %p116
      %p118 = scmp.ne.s32.totalorder %s106, %s107
      %p119 = scmp.eq.s32.totalorder %s34, 1
      %p120 = por %p118, %p119
      %p122 = scmp.ne.s32.totalorder %s107, %s121
      %p123 = scmp.eq.s32.totalorder %s34, 0
      %p124 = por %p122, %p123
      %s126 = sadd.s32 %s125, 1
      %p129 = scmp.eq.s32.totalorder %s28, 1
      %p130 = scmp.ne.s32.totalorder %s125, %s127
      %p131 = scmp.eq.s32.totalorder %s28, 0
      %p132 = por %p130, %p131
      %p133 = scmp.ne.s32.totalorder %s125, %s127
      %p134 = scmp.eq.s32.totalorder %s33, 1
      %p135 = por %p133, %p134
      %p136 = scmp.ne.s32.totalorder %s127, %s128
      %p137 = scmp.eq.s32.totalorder %s33, 0
      %p138 = por %p136, %p137
      %p139 = scmp.ne.s32.totalorder %s127, %s128
      %p140 = scmp.eq.s32.totalorder %s34, 1
      %p141 = por %p139, %p140
      %p143 = scmp.ne.s32.totalorder %s128, %s142
      %p144 = scmp.eq.s32.totalorder %s34, 0
      %p145 = por %p143, %p144
      %s147 = sadd.s32 %s146, 1
      %p150 = scmp.eq.s32.totalorder %s28, 1
      %p151 = scmp.ne.s32.totalorder %s146, %s148
      %p152 = scmp.eq.s32.totalorder %s28, 0
      %p153 = por %p151, %p152
      %p154 = scmp.ne.s32.totalorder %s146, %s148
      %p155 = scmp.eq.s32.totalorder %s33, 1
      %p156 = por %p154, %p155
      %p157 = scmp.ne.s32.totalorder %s148, %s149
      %p158 = scmp.eq.s32.totalorder %s33, 0
      %p159 = por %p157, %p158
      %p160 = scmp.ne.s32.totalorder %s148, %s149
      %p161 = scmp.eq.s32.totalorder %s34, 1
      %p162 = por %p160, %p161
      %p164 = scmp.ne.s32.totalorder %s149, %s163
      %p165 = scmp.eq.s32.totalorder %s34, 0
      %p166 = por %p164, %p165
      %s168 = sadd.s32 %s167, 1
      %p171 = scmp.eq.s32.totalorder %s28, 1
      %p172 = scmp.ne.s32.totalorder %s167, %s169
      %p173 = scmp.eq.s32.totalorder %s28, 0
      %p174 = por %p172, %p173
      %p175 = scmp.ne.s32.totalorder %s167, %s169
      %p176 = scmp.eq.s32.totalorder %s33, 1
      %p177 = por %p175, %p176
      %p178 = scmp.ne.s32.totalorder %s169, %s170
      %p179 = scmp.eq.s32.totalorder %s33, 0
      %p180 = por %p178, %p179
      %p181 = scmp.ne.s32.totalorder %s169, %s170
      %p182 = scmp.eq.s32.totalorder %s34, 1
      %p183 = por %p181, %p182
      %p185 = scmp.ne.s32.totalorder %s170, %s184
      %p186 = scmp.eq.s32.totalorder %s34, 0
      %p187 = por %p185, %p186
      %s189 = sadd.s32 %s188, 1
      %p192 = scmp.eq.s32.totalorder %s28, 1
      %p193 = scmp.ne.s32.totalorder %s188, %s190
      %p194 = scmp.eq.s32.totalorder %s28, 0
      %p195 = por %p193, %p194
      %p196 = scmp.ne.s32.totalorder %s188, %s190
      %p197 = scmp.eq.s32.totalorder %s33, 1
      %p198 = por %p196, %p197
      %p199 = scmp.ne.s32.totalorder %s190, %s191
      %p200 = scmp.eq.s32.totalorder %s33, 0
      %p201 = por %p199, %p200
      %p202 = scmp.ne.s32.totalorder %s190, %s191
      %p203 = scmp.eq.s32.totalorder %s34, 1
      %p204 = por %p202, %p203
      %p206 = scmp.ne.s32.totalorder %s191, %s205
      %p207 = scmp.eq.s32.totalorder %s34, 0
      %p208 = por %p206, %p207
      %s210 = sadd.s32 %s209, 1
      %p213 = scmp.eq.s32.totalorder %s28, 1
      %p214 = scmp.ne.s32.totalorder %s209, %s211
      %p215 = scmp.eq.s32.totalorder %s28, 0
      %p216 = por %p214, %p215
      %p217 = scmp.ne.s32.totalorder %s209, %s211
      %p218 = scmp.eq.s32.totalorder %s33, 1
      %p219 = por %p217, %p218
      %p220 = scmp.ne.s32.totalorder %s211, %s212
      %p221 = scmp.eq.s32.totalorder %s33, 0
      %p222 = por %p220, %p221
      %p223 = scmp.ne.s32.totalorder %s211, %s212
      %p224 = scmp.eq.s32.totalorder %s34, 1
      %p225 = por %p223, %p224
      %p227 = scmp.ne.s32.totalorder %s212, %s226
      %p228 = scmp.eq.s32.totalorder %s34, 0
      %p229 = por %p227, %p228
      %s231 = sadd.s32 %s230, 1
      %p234 = scmp.eq.s32.totalorder %s28, 1
      %p235 = scmp.ne.s32.totalorder %s230, %s232
      %p236 = scmp.eq.s32.totalorder %s28, 0
      %p237 = por %p235, %p236
      %p238 = scmp.ne.s32.totalorder %s230, %s232
      %p239 = scmp.eq.s32.totalorder %s33, 1
      %p240 = por %p238, %p239
      %p241 = scmp.ne.s32.totalorder %s232, %s233
      %p242 = scmp.eq.s32.totalorder %s33, 0
      %p243 = por %p241, %p242
      %p244 = scmp.ne.s32.totalorder %s232, %s233
      %p245 = scmp.eq.s32.totalorder %s34, 1
      %p246 = por %p244, %p245
      %p248 = scmp.ne.s32.totalorder %s233, %s247
      %p249 = scmp.eq.s32.totalorder %s34, 0
      %p250 = por %p248, %p249
      %s252 = sadd.s32 %s251, 1
      %p255 = scmp.eq.s32.totalorder %s28, 1
      %p256 = scmp.ne.s32.totalorder %s251, %s253
      %p257 = scmp.eq.s32.totalorder %s28, 0
      %p258 = por %p256, %p257
      %p259 = scmp.ne.s32.totalorder %s251, %s253
      %p260 = scmp.eq.s32.totalorder %s33, 1
      %p261 = por %p259, %p260
      %p262 = scmp.ne.s32.totalorder %s253, %s254
      %p263 = scmp.eq.s32.totalorder %s33, 0
      %p264 = por %p262, %p263
      %p265 = scmp.ne.s32.totalorder %s253, %s254
      %p266 = scmp.eq.s32.totalorder %s34, 1
      %p267 = por %p265, %p266
      %p269 = scmp.ne.s32.totalorder %s254, %s268
      %p270 = scmp.eq.s32.totalorder %s34, 0
      %p271 = por %p269, %p270
      %s273 = sadd.s32 %s272, 1
      %p276 = scmp.eq.s32.totalorder %s28, 1
      %p277 = scmp.ne.s32.totalorder %s272, %s274
      %p278 = scmp.eq.s32.totalorder %s28, 0
      %p279 = por %p277, %p278
      %p280 = scmp.ne.s32.totalorder %s272, %s274
      %p281 = scmp.eq.s32.totalorder %s33, 1
      %p282 = por %p280, %p281
      %p283 = scmp.ne.s32.totalorder %s274, %s275
      %p284 = scmp.eq.s32.totalorder %s33, 0
      %p285 = por %p283, %p284
      %p286 = scmp.ne.s32.totalorder %s274, %s275
      %p287 = scmp.eq.s32.totalorder %s34, 1
      %p288 = por %p286, %p287
      %p290 = scmp.ne.s32.totalorder %s275, %s289
      %p291 = scmp.eq.s32.totalorder %s34, 0
      %p292 = por %p290, %p291
      %s294 = sadd.s32 %s293, 1
      %p297 = scmp.eq.s32.totalorder %s28, 1
      %p298 = scmp.ne.s32.totalorder %s293, %s295
      %p299 = scmp.eq.s32.totalorder %s28, 0
      %p300 = por %p298, %p299
      %p301 = scmp.ne.s32.totalorder %s293, %s295
      %p302 = scmp.eq.s32.totalorder %s33, 1
      %p303 = por %p301, %p302
      %p304 = scmp.ne.s32.totalorder %s295, %s296
      %p305 = scmp.eq.s32.totalorder %s33, 0
      %p306 = por %p304, %p305
      %p307 = scmp.ne.s32.totalorder %s295, %s296
      %p308 = scmp.eq.s32.totalorder %s34, 1
      %p309 = por %p307, %p308
      %p311 = scmp.ne.s32.totalorder %s296, %s310
      %p312 = scmp.eq.s32.totalorder %s34, 0
      %p313 = por %p311, %p312
      %s315 = sadd.s32 %s314, 1
      %p318 = scmp.eq.s32.totalorder %s28, 1
      %p319 = scmp.ne.s32.totalorder %s314, %s316
      %p320 = scmp.eq.s32.totalorder %s28, 0
      %p321 = por %p319, %p320
      %p322 = scmp.ne.s32.totalorder %s314, %s316
      %p323 = scmp.eq.s32.totalorder %s33, 1
      %p324 = por %p322, %p323
      %p325 = scmp.ne.s32.totalorder %s316, %s317
      %p326 = scmp.eq.s32.totalorder %s33, 0
      %p327 = por %p325, %p326
      %p328 = scmp.ne.s32.totalorder %s316, %s317
      %p329 = scmp.eq.s32.totalorder %s34, 1
      %p330 = por %p328, %p329
      %p332 = scmp.ne.s32.totalorder %s317, %s331
      %p333 = scmp.eq.s32.totalorder %s34, 0
      %p334 = por %p332, %p333
      %s336 = sadd.s32 %s335, 1
      %p339 = scmp.eq.s32.totalorder %s28, 1
      %p340 = scmp.ne.s32.totalorder %s335, %s337
      %p341 = scmp.eq.s32.totalorder %s28, 0
      %p342 = por %p340, %p341
      %p343 = scmp.ne.s32.totalorder %s335, %s337
      %p344 = scmp.eq.s32.totalorder %s33, 1
      %p345 = por %p343, %p344
      %p346 = scmp.ne.s32.totalorder %s337, %s338
      %p347 = scmp.eq.s32.totalorder %s33, 0
      %p348 = por %p346, %p347
      %p349 = scmp.ne.s32.totalorder %s337, %s338
      %p350 = scmp.eq.s32.totalorder %s34, 1
      %p351 = por %p349, %p350
      %p353 = scmp.ne.s32.totalorder %s338, %s352
      %p354 = scmp.eq.s32.totalorder %s34, 0
      %p355 = por %p353, %p354
      %s357 = sadd.s32 %s356, 1
      %p360 = scmp.eq.s32.totalorder %s28, 1
      %p361 = scmp.ne.s32.totalorder %s356, %s358
      %p362 = scmp.eq.s32.totalorder %s28, 0
      %p363 = por %p361, %p362
      %p364 = scmp.ne.s32.totalorder %s356, %s358
      %p365 = scmp.eq.s32.totalorder %s33, 1
      %p366 = por %p364, %p365
      %p367 = scmp.ne.s32.totalorder %s358, %s359
      %p368 = scmp.eq.s32.totalorder %s33, 0
      %p369 = por %p367, %p368
      %p370 = scmp.ne.s32.totalorder %s358, %s359
      %p371 = scmp.eq.s32.totalorder %s34, 1
      %p372 = por %p370, %p371
      %p374 = scmp.ne.s32.totalorder %s359, %s373
      %p375 = scmp.eq.s32.totalorder %s34, 0
      %p376 = por %p374, %p375
      %s378 = sadd.s32 %s377, 1
      %p381 = scmp.eq.s32.totalorder %s28, 1
      %p382 = scmp.ne.s32.totalorder %s377, %s379
      %p383 = scmp.eq.s32.totalorder %s28, 0
      %p384 = por %p382, %p383
      %p385 = scmp.ne.s32.totalorder %s377, %s379
      %p386 = scmp.eq.s32.totalorder %s33, 1
      %p387 = por %p385, %p386
      %p388 = scmp.ne.s32.totalorder %s379, %s380
      %p389 = scmp.eq.s32.totalorder %s33, 0
      %p390 = por %p388, %p389
      %p391 = scmp.ne.s32.totalorder %s379, %s380
      %p392 = scmp.eq.s32.totalorder %s34, 1
      %p393 = por %p391, %p392
      %p395 = scmp.ne.s32.totalorder %s380, %s394
      %p396 = scmp.eq.s32.totalorder %s34, 0
      %p397 = por %p395, %p396
      %s399 = sadd.s32 %s398, 1
      %p402 = scmp.eq.s32.totalorder %s28, 1
      %p403 = scmp.ne.s32.totalorder %s398, %s400
      %p404 = scmp.eq.s32.totalorder %s28, 0
      %p405 = por %p403, %p404
      %p406 = scmp.ne.s32.totalorder %s398, %s400
      %p407 = scmp.eq.s32.totalorder %s33, 1
      %p408 = por %p406, %p407
      %p409 = scmp.ne.s32.totalorder %s400, %s401
      %p410 = scmp.eq.s32.totalorder %s33, 0
      %p411 = por %p409, %p410
      %p412 = scmp.ne.s32.totalorder %s400, %s401
      %p413 = scmp.eq.s32.totalorder %s34, 1
      %p414 = por %p412, %p413
      %p416 = scmp.ne.s32.totalorder %s401, %s415
      %p417 = scmp.eq.s32.totalorder %s34, 0
      %p418 = por %p416, %p417
      %s420 = sadd.s32 %s419, 1
      %p423 = scmp.eq.s32.totalorder %s28, 1
      %p424 = scmp.ne.s32.totalorder %s419, %s421
      %p425 = scmp.eq.s32.totalorder %s28, 0
      %p426 = por %p424, %p425
      %p427 = scmp.ne.s32.totalorder %s419, %s421
      %p428 = scmp.eq.s32.totalorder %s33, 1
      %p429 = por %p427, %p428
      %p430 = scmp.ne.s32.totalorder %s421, %s422
      %p431 = scmp.eq.s32.totalorder %s33, 0
      %p432 = por %p430, %p431
      %p433 = scmp.ne.s32.totalorder %s421, %s422
      %p434 = scmp.eq.s32.totalorder %s34, 1
      %p435 = por %p433, %p434
      %p437 = scmp.ne.s32.totalorder %s422, %s436
      %p438 = scmp.eq.s32.totalorder %s34, 0
      %p439 = por %p437, %p438
      %s440 = ssub.s32 %s28, %s35
      %p441 = scmp.eq.s32.totalorder %s440, 0
      %s443 = sadd.s32 %s442, 1
      %s444 = scalar_select %p441, %s442, %s443
      %p447 = pneg %p441
      %p448 = scmp.eq.s32.totalorder %s28, 1
      %p449 = por %p447, %p448
      %p450 = scmp.ne.s32.totalorder %s442, %s445
      %p451 = scmp.eq.s32.totalorder %s28, 0
      %p452 = por %p450, %p451
      %p453 = scmp.ne.s32.totalorder %s442, %s445
      %p454 = scmp.eq.s32.totalorder %s33, 1
      %p455 = por %p453, %p454
      %p456 = scmp.ne.s32.totalorder %s445, %s446
      %p457 = scmp.eq.s32.totalorder %s33, 0
      %p458 = por %p456, %p457
      %p459 = scmp.ne.s32.totalorder %s445, %s446
      %p460 = scmp.eq.s32.totalorder %s34, 1
      %p461 = por %p459, %p460
      %p463 = scmp.ne.s32.totalorder %s446, %s462
      %p464 = scmp.eq.s32.totalorder %s34, 0
      %p465 = por %p463, %p464
      %p466 = scmp.le.s32.totalorder 1, %s28
      %p467 = scmp.lt.s32.totalorder %s28, 3
      %p468 = pnand %p466, %p467
      %p469 = pneg %p468
      // Predicated region
      $region9: #{example_cnn_forward.1} parent=5 // pred_check
        _
      $region10: #{example_cnn_forward.1} parent=5 // pred_check_branch
        %471 = sbr.rel (%p468) target = $region12
      $region11: #{example_cnn_forward.1} parent=5 // pred_region
        %s472 = ssub.s32 %s28, 1
        // Predicated region
        $region13: #{example_cnn_forward.1} parent=11 // pred_check
          %p473 = pneg %p75
        $region14: #{example_cnn_forward.1} parent=11 // pred_check_branch
          %475 = sbr.rel (%p473) target = $region16
        $region15: #{example_cnn_forward.1} parent=11 // pred_region
          _
        $region16: #{example_cnn_forward.1} parent=11 // pred_fallthru
          _
        // Predicated region
        $region17: #{example_cnn_forward.1} parent=11 // pred_check
          %p476 = pneg %p96
        $region18: #{example_cnn_forward.1} parent=11 // pred_check_branch
          %478 = sbr.rel (%p476) target = $region20
        $region19: #{example_cnn_forward.1} parent=11 // pred_region
          _
        $region20: #{example_cnn_forward.1} parent=11 // pred_fallthru
          _
        // Predicated region
        $region21: #{example_cnn_forward.1} parent=11 // pred_check
          %p479 = pneg %p117
        $region22: #{example_cnn_forward.1} parent=11 // pred_check_branch
          %481 = sbr.rel (%p479) target = $region24
        $region23: #{example_cnn_forward.1} parent=11 // pred_region
          _
        $region24: #{example_cnn_forward.1} parent=11 // pred_fallthru
          _
        // Predicated region
        $region25: #{example_cnn_forward.1} parent=11 // pred_check
          %p482 = pneg %p138
        $region26: #{example_cnn_forward.1} parent=11 // pred_check_branch
          %484 = sbr.rel (%p482) target = $region28
        $region27: #{example_cnn_forward.1} parent=11 // pred_region
          _
        $region28: #{example_cnn_forward.1} parent=11 // pred_fallthru
          _
        // Predicated region
        $region29: #{example_cnn_forward.1} parent=11 // pred_check
          %p485 = pneg %p159
        $region30: #{example_cnn_forward.1} parent=11 // pred_check_branch
          %487 = sbr.rel (%p485) target = $region32
        $region31: #{example_cnn_forward.1} parent=11 // pred_region
          _
        $region32: #{example_cnn_forward.1} parent=11 // pred_fallthru
          _
        // Predicated region
        $region33: #{example_cnn_forward.1} parent=11 // pred_check
          %p488 = pneg %p180
        $region34: #{example_cnn_forward.1} parent=11 // pred_check_branch
          %490 = sbr.rel (%p488) target = $region36
        $region35: #{example_cnn_forward.1} parent=11 // pred_region
          _
        $region36: #{example_cnn_forward.1} parent=11 // pred_fallthru
          _
        // Predicated region
        $region37: #{example_cnn_forward.1} parent=11 // pred_check
          %p491 = pneg %p201
        $region38: #{example_cnn_forward.1} parent=11 // pred_check_branch
          %493 = sbr.rel (%p491) target = $region40
        $region39: #{example_cnn_forward.1} parent=11 // pred_region
          _
        $region40: #{example_cnn_forward.1} parent=11 // pred_fallthru
          _
        // Predicated region
        $region41: #{example_cnn_forward.1} parent=11 // pred_check
          %p494 = pneg %p222
        $region42: #{example_cnn_forward.1} parent=11 // pred_check_branch
          %496 = sbr.rel (%p494) target = $region44
        $region43: #{example_cnn_forward.1} parent=11 // pred_region
          _
        $region44: #{example_cnn_forward.1} parent=11 // pred_fallthru
          _
        // Predicated region
        $region45: #{example_cnn_forward.1} parent=11 // pred_check
          %p497 = pneg %p243
        $region46: #{example_cnn_forward.1} parent=11 // pred_check_branch
          %499 = sbr.rel (%p497) target = $region48
        $region47: #{example_cnn_forward.1} parent=11 // pred_region
          _
        $region48: #{example_cnn_forward.1} parent=11 // pred_fallthru
          _
        // Predicated region
        $region49: #{example_cnn_forward.1} parent=11 // pred_check
          %p500 = pneg %p264
        $region50: #{example_cnn_forward.1} parent=11 // pred_check_branch
          %502 = sbr.rel (%p500) target = $region52
        $region51: #{example_cnn_forward.1} parent=11 // pred_region
          _
        $region52: #{example_cnn_forward.1} parent=11 // pred_fallthru
          _
        // Predicated region
        $region53: #{example_cnn_forward.1} parent=11 // pred_check
          %p503 = pneg %p285
        $region54: #{example_cnn_forward.1} parent=11 // pred_check_branch
          %505 = sbr.rel (%p503) target = $region56
        $region55: #{example_cnn_forward.1} parent=11 // pred_region
          _
        $region56: #{example_cnn_forward.1} parent=11 // pred_fallthru
          _
        // Predicated region
        $region57: #{example_cnn_forward.1} parent=11 // pred_check
          %p506 = pneg %p306
        $region58: #{example_cnn_forward.1} parent=11 // pred_check_branch
          %508 = sbr.rel (%p506) target = $region60
        $region59: #{example_cnn_forward.1} parent=11 // pred_region
          _
        $region60: #{example_cnn_forward.1} parent=11 // pred_fallthru
          _
        // Predicated region
        $region61: #{example_cnn_forward.1} parent=11 // pred_check
          %p509 = pneg %p327
        $region62: #{example_cnn_forward.1} parent=11 // pred_check_branch
          %511 = sbr.rel (%p509) target = $region64
        $region63: #{example_cnn_forward.1} parent=11 // pred_region
          _
        $region64: #{example_cnn_forward.1} parent=11 // pred_fallthru
          _
        // Predicated region
        $region65: #{example_cnn_forward.1} parent=11 // pred_check
          %p512 = pneg %p348
        $region66: #{example_cnn_forward.1} parent=11 // pred_check_branch
          %514 = sbr.rel (%p512) target = $region68
        $region67: #{example_cnn_forward.1} parent=11 // pred_region
          _
        $region68: #{example_cnn_forward.1} parent=11 // pred_fallthru
          _
        // Predicated region
        $region69: #{example_cnn_forward.1} parent=11 // pred_check
          %p515 = pneg %p369
        $region70: #{example_cnn_forward.1} parent=11 // pred_check_branch
          %517 = sbr.rel (%p515) target = $region72
        $region71: #{example_cnn_forward.1} parent=11 // pred_region
          _
        $region72: #{example_cnn_forward.1} parent=11 // pred_fallthru
          _
        // Predicated region
        $region73: #{example_cnn_forward.1} parent=11 // pred_check
          %p518 = pneg %p390
        $region74: #{example_cnn_forward.1} parent=11 // pred_check_branch
          %520 = sbr.rel (%p518) target = $region76
        $region75: #{example_cnn_forward.1} parent=11 // pred_region
          _
        $region76: #{example_cnn_forward.1} parent=11 // pred_fallthru
          _
        // Predicated region
        $region77: #{example_cnn_forward.1} parent=11 // pred_check
          %p521 = pneg %p411
        $region78: #{example_cnn_forward.1} parent=11 // pred_check_branch
          %523 = sbr.rel (%p521) target = $region80
        $region79: #{example_cnn_forward.1} parent=11 // pred_region
          _
        $region80: #{example_cnn_forward.1} parent=11 // pred_fallthru
          _
        // Predicated region
        $region81: #{example_cnn_forward.1} parent=11 // pred_check
          %p524 = pneg %p432
        $region82: #{example_cnn_forward.1} parent=11 // pred_check_branch
          %526 = sbr.rel (%p524) target = $region84
        $region83: #{example_cnn_forward.1} parent=11 // pred_region
          _
        $region84: #{example_cnn_forward.1} parent=11 // pred_fallthru
          _
      $region12: #{example_cnn_forward.1} parent=5 // pred_fallthru
        _
      %p527 = scmp.lt.s32.totalorder %s28, 2
      // Predicated region
      $region85: #{example_cnn_forward.1} parent=5 // pred_check
        %p528 = pneg %p527
      $region86: #{example_cnn_forward.1} parent=5 // pred_check_branch
        %530 = sbr.rel (%p528) target = $region88
      $region87: #{example_cnn_forward.1} parent=5 // pred_region
        // Predicated region
        $region89: #{example_cnn_forward.1} parent=87 // pred_check
          %p531 = pneg %p48
        $region90: #{example_cnn_forward.1} parent=87 // pred_check_branch
          %533 = sbr.rel (%p531) target = $region92
        $region91: #{example_cnn_forward.1} parent=87 // pred_region
          %p534 = scmp.lt.s32.totalorder %s28, 1
          %s535 = scalar_select %p534, %s28, 1
          %s536 = smul.addr %s535, 4
          %s537 = smul.addr %s536, 8
          %s538 = scalar_lea.vmem %s0, %s537
        $region92: #{example_cnn_forward.1} parent=87 // pred_fallthru
          _
      $region88: #{example_cnn_forward.1} parent=5 // pred_fallthru
        _
      %p539 = scmp.le.s32.totalorder 1, %s28
      %p540 = scmp.lt.s32.totalorder %s28, 3
      %p541 = pnand %p539, %p540
      %p542 = pneg %p541
      // Predicated region
      $region93: #{example_cnn_forward.1} parent=5 // pred_check
        _
      $region94: #{example_cnn_forward.1} parent=5 // pred_check_branch
        %544 = sbr.rel (%p541) target = $region96
      $region95: #{example_cnn_forward.1} parent=5 // pred_region
        %s545 = ssub.s32 %s28, 1
        %p546 = scmp.lt.s32.totalorder %s33, 1
        %s547 = scalar_select %p546, %s33, 1
        %s548 = smul.addr %s547, 4
        %s549 = smul.addr %s548, 8
        %s550 = scalar_lea.vmem %s0, %s549
        %p551 = pneg %p54
        %p552 = pneg %p51
        %p553 = pneg %p75
        %p554 = pneg %p72
        %p555 = pneg %p96
        %p556 = pneg %p93
        %p557 = pneg %p117
        %p558 = pneg %p114
        %p559 = pneg %p138
        %p560 = pneg %p135
        %p561 = pneg %p159
        %p562 = pneg %p156
        %p563 = pneg %p180
        %p564 = pneg %p177
        %p565 = pneg %p201
        %p566 = pneg %p198
        %p567 = pneg %p222
        %p568 = pneg %p219
        %p569 = pneg %p243
        %p570 = pneg %p240
        %p571 = pneg %p264
        %p572 = pneg %p261
        %p573 = pneg %p285
        %p574 = pneg %p282
        %p575 = pneg %p306
        %p576 = pneg %p303
        %p577 = pneg %p327
        %p578 = pneg %p324
        %p579 = pneg %p348
        %p580 = pneg %p345
        %p581 = pneg %p369
        %p582 = pneg %p366
        %p583 = pneg %p390
        %p584 = pneg %p387
        %p585 = pneg %p411
        %p586 = pneg %p408
        %p587 = pneg %p432
        %p588 = pneg %p429
        %p589 = pneg %p458
        %p590 = pneg %p455
        %s591 = sand.u32 %s445, 1
        %s592 = scalar_lea.sflag [#allocation3], %s591
        %s593 = sand.u32 %s445, 1
        %s594 = scalar_lea.vmem [#allocation2], %s593
        %p595 = scmp.lt.s32.totalorder %s33, 1
        %s596 = scalar_select %p595, %s33, 1
        %s597 = smul.addr %s596, 4
        %s598 = smul.addr %s597, 8
        %s599 = scalar_lea.vmem %s0, %s598
        %v601 = vld [vmem:[%s599] sm:$0xff]
        %v602 = vld [vmem:[%s599 + $0x8] sm:$0xff]
        %v603 = vld [vmem:[%s599 + $0x10] sm:$0xff]
        %v604 = vld [vmem:[%s599 + $0x18] sm:$0xff]
        %v605 = vpack.c.bf16 %v602, %v601
        %v606 = vpack.c.bf16 %v604, %v603
        %v607 = vld [vmem:[%s1] sm:$0xff]
        %v608 = vld [vmem:[%s1 + $0x8] sm:$0xff]
        %v609 = vld [vmem:[%s1 + $0x10] sm:$0xff]
        %v610 = vld [vmem:[%s1 + $0x18] sm:$0xff]
        %v611 = vld [vmem:[%s1 + $0x20] sm:$0xff]
        %v612 = vld [vmem:[%s1 + $0x28] sm:$0xff]
        %v613 = vld [vmem:[%s1 + $0x30] sm:$0xff]
        %v614 = vld [vmem:[%s1 + $0x38] sm:$0xff]
        %v615 = vld [vmem:[%s1 + $0x40] sm:$0xff]
        %v616 = vld [vmem:[%s1 + $0x48] sm:$0xff]
        %v617 = vld [vmem:[%s1 + $0x50] sm:$0xff]
        %v618 = vld [vmem:[%s1 + $0x58] sm:$0xff]
        %s619 = scalar_lea.vmem %s1, 96
        %v620 = vld [vmem:[%s619] sm:$0xff]
        %v621 = vld [vmem:[%s619 + $0x8] sm:$0xff]
        %v622 = vld [vmem:[%s619 + $0x10] sm:$0xff]
        %v623 = vld [vmem:[%s619 + $0x18] sm:$0xff]
        %v624 = vld [vmem:[%s619 + $0x20] sm:$0xff]
        %v625 = vld [vmem:[%s619 + $0x28] sm:$0xff]
        %v626 = vld [vmem:[%s619 + $0x30] sm:$0xff]
        %v627 = vld [vmem:[%s619 + $0x38] sm:$0xff]
        %v628 = vld [vmem:[%s619 + $0x40] sm:$0xff]
        %v629 = vld [vmem:[%s619 + $0x48] sm:$0xff]
        %v630 = vld [vmem:[%s619 + $0x50] sm:$0xff]
        %v631 = vld [vmem:[%s619 + $0x58] sm:$0xff]
        %vm632 = vsmask.f32 7424
        %v634 = vshrl.u32 %v605, 16
        %v636 = vshll.u32 %v605, 16
        %v638 = vrot.slane %v636, 1
        %v639 = vor.u32 %v634, %v638
        %v641 = vshll.u32 %v606, 16
        %v643 = vrot.slane %v641, 1
        %v644 = vsel %vm632, %v639, %v643
        %v645 = vshrl.u32 %v606, 16
        %v647 = vor.u32 %v645, %v643
        %v660 = vunpack.c.l.b16 %v620
        %v661 = vunpack.c.h.b16 %v620
        %v662 = vunpack.c.l.b16 %v621
        %v663 = vunpack.c.h.b16 %v621
        %v664 = vunpack.c.l.b16 %v622
        %v665 = vunpack.c.h.b16 %v622
        %v666 = vunpack.c.l.b16 %v623
        %v667 = vunpack.c.h.b16 %v623
        %v668 = vunpack.c.l.b16 %v624
        %v669 = vunpack.c.h.b16 %v624
        %v670 = vunpack.c.l.b16 %v625
        %v671 = vunpack.c.h.b16 %v625
        %v672 = vunpack.c.l.b16 %v626
        %v673 = vunpack.c.h.b16 %v626
        %v674 = vunpack.c.l.b16 %v627
        %v675 = vunpack.c.h.b16 %v627
        %v676 = vunpack.c.l.b16 %v628
        %v677 = vunpack.c.h.b16 %v628
        %v678 = vunpack.c.l.b16 %v629
        %v679 = vunpack.c.h.b16 %v629
        %v680 = vunpack.c.l.b16 %v630
        %v681 = vunpack.c.h.b16 %v630
        %v682 = vunpack.c.l.b16 %v631
        %v683 = vunpack.c.h.b16 %v631
        %v684 = vpack.c.b16 %v662, %v660
        %v685 = vpack.c.b16 %v663, %v661
        %v686 = vpack.c.b16 %v666, %v664
        %v687 = vpack.c.b16 %v667, %v665
        %v688 = vpack.c.b16 %v670, %v668
        %v689 = vpack.c.b16 %v671, %v669
        %v690 = vpack.c.b16 %v674, %v672
        %v691 = vpack.c.b16 %v675, %v673
        %v692 = vpack.c.b16 %v678, %v676
        %v693 = vpack.c.b16 %v679, %v677
        %v694 = vpack.c.b16 %v682, %v680
        %v695 = vpack.c.b16 %v683, %v681
        %vm708 = vcmask 785408
        %v710 = vsel %vm708, %v644, 0
        %v713 = vsel %vm708, %v647, 0
        %715 = vmatprep.subr.bf16.mxu0 0
        %716 = vmatpush1.bf16.msra.mxu0 0
        %717 = vmatprep.subr.bf16.mxu0 0
        %718 = vmatpush1.bf16.msra.mxu0 0
        %719 = vmatprep.subr.bf16.mxu0 %v695
        %720 = vmatpush1.bf16.msra.mxu0 %v694
        %721 = vmatprep.subr.bf16.mxu0 %v693
        %722 = vmatpush1.bf16.msra.mxu0 %v692
        %723 = vmatprep.subr.bf16.mxu0 %v691
        %724 = vmatpush1.bf16.msra.mxu0 %v690
        %725 = vmatprep.subr.bf16.mxu0 %v689
        %726 = vmatpush1.bf16.msra.mxu0 %v688
        %727 = vmatprep.subr.bf16.mxu0 %v687
        %728 = vmatpush1.bf16.msra.mxu0 %v686
        %729 = vmatprep.subr.bf16.mxu0 %v685
        %730 = vmatpush1.bf16.msra.mxu0 %v684
        %731 = vmatprep.subr.bf16.mxu0 0
        %732 = vmatpush2.bf16.msra.mxu0 0
        %733 = vmatprep.subr.bf16.mxu0 0
        %734 = vmatpush2.bf16.msra.mxu0 0
        %735 = vmatprep.subr.bf16.mxu0 0
        %736 = vmatpush2.bf16.msra.mxu0 0
        %737 = vmatprep.subr.bf16.mxu0 0
        %738 = vmatpush2.bf16.msra.mxu0 0
        %739 = vmatprep.subr.bf16.mxu0 0
        %740 = vmatpush2.bf16.msra.mxu0 0
        %741 = vmatprep.subr.bf16.mxu0 0
        %742 = vmatpush2.bf16.msra.mxu0 0
        %743 = vmatprep.subr.bf16.mxu0 0
        %744 = vmatpush2.bf16.msra.mxu0 0
        %745 = vmatprep.subr.bf16.mxu0 0
        %746 = vmatpush2.bf16.msra.mxu0 0
        %747 = vmatprep.mubr.bf16.mxu0 0
        %748 = vmatmul.mubr.bf16.gmra.mxu0 %v710
        %v749 = vpop.f32.mrf.mxu0
        %v750 = vadd.f32 0.0, %v749
        %v751 = vpop.f32.mrf.mxu0
        %v752 = vadd.f32 0.0, %v751
        %v753 = vpop.f32.mrf.mxu0
        %v754 = vadd.f32 0.0, %v753
        %v755 = vpop.f32.mrf.mxu0
        %v756 = vadd.f32 0.0, %v755
        %757 = vmatprep.mubr.bf16.mxu0 0
        %758 = vmatmul.mubr.bf16.gmra.mxu0 %v713
        %v759 = vpop.f32.mrf.mxu0
        %v760 = vadd.f32 0.0, %v759
        %v761 = vpop.f32.mrf.mxu0
        %v762 = vadd.f32 0.0, %v761
        %v763 = vpop.f32.mrf.mxu0
        %v764 = vadd.f32 0.0, %v763
        %v765 = vpop.f32.mrf.mxu0
        %v766 = vadd.f32 0.0, %v765
        %767 = vdwg.mxu0
        %v780 = vunpack.c.l.b16 %v607
        %v781 = vunpack.c.h.b16 %v607
        %v782 = vunpack.c.l.b16 %v608
        %v783 = vunpack.c.h.b16 %v608
        %v784 = vunpack.c.l.b16 %v609
        %v785 = vunpack.c.h.b16 %v609
        %v786 = vunpack.c.l.b16 %v610
        %v787 = vunpack.c.h.b16 %v610
        %v788 = vunpack.c.l.b16 %v611
        %v789 = vunpack.c.h.b16 %v611
        %v790 = vunpack.c.l.b16 %v612
        %v791 = vunpack.c.h.b16 %v612
        %v792 = vunpack.c.l.b16 %v613
        %v793 = vunpack.c.h.b16 %v613
        %v794 = vunpack.c.l.b16 %v614
        %v795 = vunpack.c.h.b16 %v614
        %v796 = vunpack.c.l.b16 %v615
        %v797 = vunpack.c.h.b16 %v615
        %v798 = vunpack.c.l.b16 %v616
        %v799 = vunpack.c.h.b16 %v616
        %v800 = vunpack.c.l.b16 %v617
        %v801 = vunpack.c.h.b16 %v617
        %v802 = vunpack.c.l.b16 %v618
        %v803 = vunpack.c.h.b16 %v618
        %v804 = vpack.c.b16 %v782, %v780
        %v805 = vpack.c.b16 %v783, %v781
        %v806 = vpack.c.b16 %v786, %v784
        %v807 = vpack.c.b16 %v787, %v785
        %v808 = vpack.c.b16 %v790, %v788
        %v809 = vpack.c.b16 %v791, %v789
        %v810 = vpack.c.b16 %v794, %v792
        %v811 = vpack.c.b16 %v795, %v793
        %v812 = vpack.c.b16 %v798, %v796
        %v813 = vpack.c.b16 %v799, %v797
        %v814 = vpack.c.b16 %v802, %v800
        %v815 = vpack.c.b16 %v803, %v801
        %v828 = vsel %vm708, %v605, 0
        %v830 = vsel %vm708, %v606, 0
        %832 = vmatprep.subr.bf16.mxu0 0
        %833 = vmatpush1.bf16.msra.mxu0 0
        %834 = vmatprep.subr.bf16.mxu0 0
        %835 = vmatpush1.bf16.msra.mxu0 0
        %836 = vmatprep.subr.bf16.mxu0 %v815
        %837 = vmatpush1.bf16.msra.mxu0 %v814
        %838 = vmatprep.subr.bf16.mxu0 %v813
        %839 = vmatpush1.bf16.msra.mxu0 %v812
        %840 = vmatprep.subr.bf16.mxu0 %v811
        %841 = vmatpush1.bf16.msra.mxu0 %v810
        %842 = vmatprep.subr.bf16.mxu0 %v809
        %843 = vmatpush1.bf16.msra.mxu0 %v808
        %844 = vmatprep.subr.bf16.mxu0 %v807
        %845 = vmatpush1.bf16.msra.mxu0 %v806
        %846 = vmatprep.subr.bf16.mxu0 %v805
        %847 = vmatpush1.bf16.msra.mxu0 %v804
        %848 = vmatprep.subr.bf16.mxu0 0
        %849 = vmatpush2.bf16.msra.mxu0 0
        %850 = vmatprep.subr.bf16.mxu0 0
        %851 = vmatpush2.bf16.msra.mxu0 0
        %852 = vmatprep.subr.bf16.mxu0 0
        %853 = vmatpush2.bf16.msra.mxu0 0
        %854 = vmatprep.subr.bf16.mxu0 0
        %855 = vmatpush2.bf16.msra.mxu0 0
        %856 = vmatprep.subr.bf16.mxu0 0
        %857 = vmatpush2.bf16.msra.mxu0 0
        %858 = vmatprep.subr.bf16.mxu0 0
        %859 = vmatpush2.bf16.msra.mxu0 0
        %860 = vmatprep.subr.bf16.mxu0 0
        %861 = vmatpush2.bf16.msra.mxu0 0
        %862 = vmatprep.subr.bf16.mxu0 0
        %863 = vmatpush2.bf16.msra.mxu0 0
        %864 = vmatprep.mubr.bf16.mxu0 0
        %865 = vmatmul.mubr.bf16.gmra.mxu0 %v828
        %v866 = vpop.f32.mrf.mxu0
        %v867 = vadd.f32 %v750, %v866
        %v868 = vpop.f32.mrf.mxu0
        %v869 = vadd.f32 %v752, %v868
        %v870 = vpop.f32.mrf.mxu0
        %v871 = vadd.f32 %v754, %v870
        %v872 = vpop.f32.mrf.mxu0
        %v873 = vadd.f32 %v756, %v872
        %874 = vmatprep.mubr.bf16.mxu0 0
        %875 = vmatmul.mubr.bf16.gmra.mxu0 %v830
        %v876 = vpop.f32.mrf.mxu0
        %v877 = vadd.f32 %v760, %v876
        %v878 = vpop.f32.mrf.mxu0
        %v879 = vadd.f32 %v762, %v878
        %v880 = vpop.f32.mrf.mxu0
        %v881 = vadd.f32 %v764, %v880
        %v882 = vpop.f32.mrf.mxu0
        %v883 = vadd.f32 %v766, %v882
        %884 = vdwg.mxu0
        %s885 = scalar_lea.vmem %s1, 192
        %v886 = vld [vmem:[%s885] sm:$0xff]
        %v887 = vld [vmem:[%s885 + $0x8] sm:$0xff]
        %v888 = vld [vmem:[%s885 + $0x10] sm:$0xff]
        %v889 = vld [vmem:[%s885 + $0x18] sm:$0xff]
        %v890 = vld [vmem:[%s885 + $0x20] sm:$0xff]
        %v891 = vld [vmem:[%s885 + $0x28] sm:$0xff]
        %v892 = vld [vmem:[%s885 + $0x30] sm:$0xff]
        %v893 = vld [vmem:[%s885 + $0x38] sm:$0xff]
        %v894 = vld [vmem:[%s885 + $0x40] sm:$0xff]
        %v895 = vld [vmem:[%s885 + $0x48] sm:$0xff]
        %v896 = vld [vmem:[%s885 + $0x50] sm:$0xff]
        %v897 = vld [vmem:[%s885 + $0x58] sm:$0xff]
        %vm900 = vcmask 1046528
        %v901 = vrot.slane %v605, 1
        %v902 = vrot.slane %v606, 1
        %v903 = vsel %vm900, %v901, %v902
        %v916 = vunpack.c.l.b16 %v886
        %v917 = vunpack.c.h.b16 %v886
        %v918 = vunpack.c.l.b16 %v887
        %v919 = vunpack.c.h.b16 %v887
        %v920 = vunpack.c.l.b16 %v888
        %v921 = vunpack.c.h.b16 %v888
        %v922 = vunpack.c.l.b16 %v889
        %v923 = vunpack.c.h.b16 %v889
        %v924 = vunpack.c.l.b16 %v890
        %v925 = vunpack.c.h.b16 %v890
        %v926 = vunpack.c.l.b16 %v891
        %v927 = vunpack.c.h.b16 %v891
        %v928 = vunpack.c.l.b16 %v892
        %v929 = vunpack.c.h.b16 %v892
        %v930 = vunpack.c.l.b16 %v893
        %v931 = vunpack.c.h.b16 %v893
        %v932 = vunpack.c.l.b16 %v894
        %v933 = vunpack.c.h.b16 %v894
        %v934 = vunpack.c.l.b16 %v895
        %v935 = vunpack.c.h.b16 %v895
        %v936 = vunpack.c.l.b16 %v896
        %v937 = vunpack.c.h.b16 %v896
        %v938 = vunpack.c.l.b16 %v897
        %v939 = vunpack.c.h.b16 %v897
        %v940 = vpack.c.b16 %v918, %v916
        %v941 = vpack.c.b16 %v919, %v917
        %v942 = vpack.c.b16 %v922, %v920
        %v943 = vpack.c.b16 %v923, %v921
        %v944 = vpack.c.b16 %v926, %v924
        %v945 = vpack.c.b16 %v927, %v925
        %v946 = vpack.c.b16 %v930, %v928
        %v947 = vpack.c.b16 %v931, %v929
        %v948 = vpack.c.b16 %v934, %v932
        %v949 = vpack.c.b16 %v935, %v933
        %v950 = vpack.c.b16 %v938, %v936
        %v951 = vpack.c.b16 %v939, %v937
        %v965 = vsel %vm708, %v903, 0
        %v968 = vsel %vm708, %v902, 0
        %970 = vmatprep.subr.bf16.mxu0 0
        %971 = vmatpush1.bf16.msra.mxu0 0
        %972 = vmatprep.subr.bf16.mxu0 0
        %973 = vmatpush1.bf16.msra.mxu0 0
        %974 = vmatprep.subr.bf16.mxu0 %v951
        %975 = vmatpush1.bf16.msra.mxu0 %v950
        %976 = vmatprep.subr.bf16.mxu0 %v949
        %977 = vmatpush1.bf16.msra.mxu0 %v948
        %978 = vmatprep.subr.bf16.mxu0 %v947
        %979 = vmatpush1.bf16.msra.mxu0 %v946
        %980 = vmatprep.subr.bf16.mxu0 %v945
        %981 = vmatpush1.bf16.msra.mxu0 %v944
        %982 = vmatprep.subr.bf16.mxu0 %v943
        %983 = vmatpush1.bf16.msra.mxu0 %v942
        %984 = vmatprep.subr.bf16.mxu0 %v941
        %985 = vmatpush1.bf16.msra.mxu0 %v940
        %986 = vmatprep.subr.bf16.mxu0 0
        %987 = vmatpush2.bf16.msra.mxu0 0
        %988 = vmatprep.subr.bf16.mxu0 0
        %989 = vmatpush2.bf16.msra.mxu0 0
        %990 = vmatprep.subr.bf16.mxu0 0
        %991 = vmatpush2.bf16.msra.mxu0 0
        %992 = vmatprep.subr.bf16.mxu0 0
        %993 = vmatpush2.bf16.msra.mxu0 0
        %994 = vmatprep.subr.bf16.mxu0 0
        %995 = vmatpush2.bf16.msra.mxu0 0
        %996 = vmatprep.subr.bf16.mxu0 0
        %997 = vmatpush2.bf16.msra.mxu0 0
        %998 = vmatprep.subr.bf16.mxu0 0
        %999 = vmatpush2.bf16.msra.mxu0 0
        %1000 = vmatprep.subr.bf16.mxu0 0
        %1001 = vmatpush2.bf16.msra.mxu0 0
        %1002 = vmatprep.mubr.bf16.mxu0 0
        %1003 = vmatmul.mubr.bf16.gmra.mxu0 %v965
        %v1004 = vpop.f32.mrf.mxu0
        %v1005 = vadd.f32 0.0, %v1004
        %v1006 = vpop.f32.mrf.mxu0
        %v1007 = vadd.f32 0.0, %v1006
        %v1008 = vpop.f32.mrf.mxu0
        %v1009 = vadd.f32 0.0, %v1008
        %v1010 = vpop.f32.mrf.mxu0
        %v1011 = vadd.f32 0.0, %v1010
        %1012 = vmatprep.mubr.bf16.mxu0 0
        %1013 = vmatmul.mubr.bf16.gmra.mxu0 %v968
        %v1014 = vpop.f32.mrf.mxu0
        %v1015 = vadd.f32 0.0, %v1014
        %v1016 = vpop.f32.mrf.mxu0
        %v1017 = vadd.f32 0.0, %v1016
        %v1018 = vpop.f32.mrf.mxu0
        %v1019 = vadd.f32 0.0, %v1018
        %v1020 = vpop.f32.mrf.mxu0
        %v1021 = vadd.f32 0.0, %v1020
        %1022 = vdwg.mxu0
        %v1023 = vadd.f32 %v867, %v1005
        %v1024 = vadd.f32 %v869, %v1007
        %v1025 = vadd.f32 %v871, %v1009
        %v1026 = vadd.f32 %v873, %v1011
        %v1027 = vadd.f32 %v877, %v1015
        %v1028 = vadd.f32 %v879, %v1017
        %v1029 = vadd.f32 %v881, %v1019
        %v1030 = vadd.f32 %v883, %v1021
        %s1031 = scalar_lea.vmem %s1, 288
        %v1032 = vld [vmem:[%s1031] sm:$0xff]
        %v1033 = vld [vmem:[%s1031 + $0x8] sm:$0xff]
        %v1034 = vld [vmem:[%s1031 + $0x10] sm:$0xff]
        %v1035 = vld [vmem:[%s1031 + $0x18] sm:$0xff]
        %v1036 = vld [vmem:[%s1031 + $0x20] sm:$0xff]
        %v1037 = vld [vmem:[%s1031 + $0x28] sm:$0xff]
        %v1038 = vld [vmem:[%s1031 + $0x30] sm:$0xff]
        %v1039 = vld [vmem:[%s1031 + $0x38] sm:$0xff]
        %v1040 = vld [vmem:[%s1031 + $0x40] sm:$0xff]
        %v1041 = vld [vmem:[%s1031 + $0x48] sm:$0xff]
        %v1042 = vld [vmem:[%s1031 + $0x50] sm:$0xff]
        %v1043 = vld [vmem:[%s1031 + $0x58] sm:$0xff]
        %vm1044 = vsmask.f32 6400
        %v1045 = vrot.slane %v634, 1
        %v1046 = vrot.slane %v636, 2
        %v1047 = vor.u32 %v1045, %v1046
        %v1048 = vrot.slane %v645, 1
        %v1049 = vrot.slane %v641, 2
        %v1050 = vor.u32 %v1048, %v1049
        %v1051 = vsel %vm1044, %v1047, %v1050
        %v1064 = vunpack.c.l.b16 %v1032
        %v1065 = vunpack.c.h.b16 %v1032
        %v1066 = vunpack.c.l.b16 %v1033
        %v1067 = vunpack.c.h.b16 %v1033
        %v1068 = vunpack.c.l.b16 %v1034
        %v1069 = vunpack.c.h.b16 %v1034
        %v1070 = vunpack.c.l.b16 %v1035
        %v1071 = vunpack.c.h.b16 %v1035
        %v1072 = vunpack.c.l.b16 %v1036
        %v1073 = vunpack.c.h.b16 %v1036
        %v1074 = vunpack.c.l.b16 %v1037
        %v1075 = vunpack.c.h.b16 %v1037
        %v1076 = vunpack.c.l.b16 %v1038
        %v1077 = vunpack.c.h.b16 %v1038
        %v1078 = vunpack.c.l.b16 %v1039
        %v1079 = vunpack.c.h.b16 %v1039
        %v1080 = vunpack.c.l.b16 %v1040
        %v1081 = vunpack.c.h.b16 %v1040
        %v1082 = vunpack.c.l.b16 %v1041
        %v1083 = vunpack.c.h.b16 %v1041
        %v1084 = vunpack.c.l.b16 %v1042
        %v1085 = vunpack.c.h.b16 %v1042
        %v1086 = vunpack.c.l.b16 %v1043
        %v1087 = vunpack.c.h.b16 %v1043
        %v1088 = vpack.c.b16 %v1066, %v1064
        %v1089 = vpack.c.b16 %v1067, %v1065
        %v1090 = vpack.c.b16 %v1070, %v1068
        %v1091 = vpack.c.b16 %v1071, %v1069
        %v1092 = vpack.c.b16 %v1074, %v1072
        %v1093 = vpack.c.b16 %v1075, %v1073
        %v1094 = vpack.c.b16 %v1078, %v1076
        %v1095 = vpack.c.b16 %v1079, %v1077
        %v1096 = vpack.c.b16 %v1082, %v1080
        %v1097 = vpack.c.b16 %v1083, %v1081
        %v1098 = vpack.c.b16 %v1086, %v1084
        %v1099 = vpack.c.b16 %v1087, %v1085
        %v1113 = vsel %vm708, %v1051, 0
        %v1116 = vsel %vm708, %v1050, 0
        %1118 = vmatprep.subr.bf16.mxu0 0
        %1119 = vmatpush1.bf16.msra.mxu0 0
        %1120 = vmatprep.subr.bf16.mxu0 0
        %1121 = vmatpush1.bf16.msra.mxu0 0
        %1122 = vmatprep.subr.bf16.mxu0 %v1099
        %1123 = vmatpush1.bf16.msra.mxu0 %v1098
        %1124 = vmatprep.subr.bf16.mxu0 %v1097
        %1125 = vmatpush1.bf16.msra.mxu0 %v1096
        %1126 = vmatprep.subr.bf16.mxu0 %v1095
        %1127 = vmatpush1.bf16.msra.mxu0 %v1094
        %1128 = vmatprep.subr.bf16.mxu0 %v1093
        %1129 = vmatpush1.bf16.msra.mxu0 %v1092
        %1130 = vmatprep.subr.bf16.mxu0 %v1091
        %1131 = vmatpush1.bf16.msra.mxu0 %v1090
        %1132 = vmatprep.subr.bf16.mxu0 %v1089
        %1133 = vmatpush1.bf16.msra.mxu0 %v1088
        %1134 = vmatprep.subr.bf16.mxu0 0
        %1135 = vmatpush2.bf16.msra.mxu0 0
        %1136 = vmatprep.subr.bf16.mxu0 0
        %1137 = vmatpush2.bf16.msra.mxu0 0
        %1138 = vmatprep.subr.bf16.mxu0 0
        %1139 = vmatpush2.bf16.msra.mxu0 0
        %1140 = vmatprep.subr.bf16.mxu0 0
        %1141 = vmatpush2.bf16.msra.mxu0 0
        %1142 = vmatprep.subr.bf16.mxu0 0
        %1143 = vmatpush2.bf16.msra.mxu0 0
        %1144 = vmatprep.subr.bf16.mxu0 0
        %1145 = vmatpush2.bf16.msra.mxu0 0
        %1146 = vmatprep.subr.bf16.mxu0 0
        %1147 = vmatpush2.bf16.msra.mxu0 0
        %1148 = vmatprep.subr.bf16.mxu0 0
        %1149 = vmatpush2.bf16.msra.mxu0 0
        %1150 = vmatprep.mubr.bf16.mxu0 0
        %1151 = vmatmul.mubr.bf16.gmra.mxu0 %v1113
        %v1152 = vpop.f32.mrf.mxu0
        %v1153 = vadd.f32 0.0, %v1152
        %v1154 = vpop.f32.mrf.mxu0
        %v1155 = vadd.f32 0.0, %v1154
        %v1156 = vpop.f32.mrf.mxu0
        %v1157 = vadd.f32 0.0, %v1156
        %v1158 = vpop.f32.mrf.mxu0
        %v1159 = vadd.f32 0.0, %v1158
        %1160 = vmatprep.mubr.bf16.mxu0 0
        %1161 = vmatmul.mubr.bf16.gmra.mxu0 %v1116
        %v1162 = vpop.f32.mrf.mxu0
        %v1163 = vadd.f32 0.0, %v1162
        %v1164 = vpop.f32.mrf.mxu0
        %v1165 = vadd.f32 0.0, %v1164
        %v1166 = vpop.f32.mrf.mxu0
        %v1167 = vadd.f32 0.0, %v1166
        %v1168 = vpop.f32.mrf.mxu0
        %v1169 = vadd.f32 0.0, %v1168
        %1170 = vdwg.mxu0
        %v1171 = vadd.f32 %v1023, %v1153
        %v1172 = vadd.f32 %v1024, %v1155
        %v1173 = vadd.f32 %v1025, %v1157
        %v1174 = vadd.f32 %v1026, %v1159
        %v1175 = vadd.f32 %v1027, %v1163
        %v1176 = vadd.f32 %v1028, %v1165
        %v1177 = vadd.f32 %v1029, %v1167
        %v1178 = vadd.f32 %v1030, %v1169
        %s1179 = scalar_lea.vmem %s1, 384
        %v1180 = vld [vmem:[%s1179] sm:$0xff]
        %v1181 = vld [vmem:[%s1179 + $0x8] sm:$0xff]
        %v1182 = vld [vmem:[%s1179 + $0x10] sm:$0xff]
        %v1183 = vld [vmem:[%s1179 + $0x18] sm:$0xff]
        %v1184 = vld [vmem:[%s1179 + $0x20] sm:$0xff]
        %v1185 = vld [vmem:[%s1179 + $0x28] sm:$0xff]
        %v1186 = vld [vmem:[%s1179 + $0x30] sm:$0xff]
        %v1187 = vld [vmem:[%s1179 + $0x38] sm:$0xff]
        %v1188 = vld [vmem:[%s1179 + $0x40] sm:$0xff]
        %v1189 = vld [vmem:[%s1179 + $0x48] sm:$0xff]
        %v1190 = vld [vmem:[%s1179 + $0x50] sm:$0xff]
        %v1191 = vld [vmem:[%s1179 + $0x58] sm:$0xff]
        %vm1192 = vcmask 1045504
        %v1193 = vrot.slane %v605, 2
        %v1194 = vrot.slane %v606, 2
        %v1195 = vsel %vm1192, %v1193, %v1194
        %v1208 = vunpack.c.l.b16 %v1180
        %v1209 = vunpack.c.h.b16 %v1180
        %v1210 = vunpack.c.l.b16 %v1181
        %v1211 = vunpack.c.h.b16 %v1181
        %v1212 = vunpack.c.l.b16 %v1182
        %v1213 = vunpack.c.h.b16 %v1182
        %v1214 = vunpack.c.l.b16 %v1183
        %v1215 = vunpack.c.h.b16 %v1183
        %v1216 = vunpack.c.l.b16 %v1184
        %v1217 = vunpack.c.h.b16 %v1184
        %v1218 = vunpack.c.l.b16 %v1185
        %v1219 = vunpack.c.h.b16 %v1185
        %v1220 = vunpack.c.l.b16 %v1186
        %v1221 = vunpack.c.h.b16 %v1186
        %v1222 = vunpack.c.l.b16 %v1187
        %v1223 = vunpack.c.h.b16 %v1187
        %v1224 = vunpack.c.l.b16 %v1188
        %v1225 = vunpack.c.h.b16 %v1188
        %v1226 = vunpack.c.l.b16 %v1189
        %v1227 = vunpack.c.h.b16 %v1189
        %v1228 = vunpack.c.l.b16 %v1190
        %v1229 = vunpack.c.h.b16 %v1190
        %v1230 = vunpack.c.l.b16 %v1191
        %v1231 = vunpack.c.h.b16 %v1191
        %v1232 = vpack.c.b16 %v1210, %v1208
        %v1233 = vpack.c.b16 %v1211, %v1209
        %v1234 = vpack.c.b16 %v1214, %v1212
        %v1235 = vpack.c.b16 %v1215, %v1213
        %v1236 = vpack.c.b16 %v1218, %v1216
        %v1237 = vpack.c.b16 %v1219, %v1217
        %v1238 = vpack.c.b16 %v1222, %v1220
        %v1239 = vpack.c.b16 %v1223, %v1221
        %v1240 = vpack.c.b16 %v1226, %v1224
        %v1241 = vpack.c.b16 %v1227, %v1225
        %v1242 = vpack.c.b16 %v1230, %v1228
        %v1243 = vpack.c.b16 %v1231, %v1229
        %v1257 = vsel %vm708, %v1195, 0
        %v1260 = vsel %vm708, %v1194, 0
        %1262 = vmatprep.subr.bf16.mxu0 0
        %1263 = vmatpush1.bf16.msra.mxu0 0
        %1264 = vmatprep.subr.bf16.mxu0 0
        %1265 = vmatpush1.bf16.msra.mxu0 0
        %1266 = vmatprep.subr.bf16.mxu0 %v1243
        %1267 = vmatpush1.bf16.msra.mxu0 %v1242
        %1268 = vmatprep.subr.bf16.mxu0 %v1241
        %1269 = vmatpush1.bf16.msra.mxu0 %v1240
        %1270 = vmatprep.subr.bf16.mxu0 %v1239
        %1271 = vmatpush1.bf16.msra.mxu0 %v1238
        %1272 = vmatprep.subr.bf16.mxu0 %v1237
        %1273 = vmatpush1.bf16.msra.mxu0 %v1236
        %1274 = vmatprep.subr.bf16.mxu0 %v1235
        %1275 = vmatpush1.bf16.msra.mxu0 %v1234
        %1276 = vmatprep.subr.bf16.mxu0 %v1233
        %1277 = vmatpush1.bf16.msra.mxu0 %v1232
        %1278 = vmatprep.subr.bf16.mxu0 0
        %1279 = vmatpush2.bf16.msra.mxu0 0
        %1280 = vmatprep.subr.bf16.mxu0 0
        %1281 = vmatpush2.bf16.msra.mxu0 0
        %1282 = vmatprep.subr.bf16.mxu0 0
        %1283 = vmatpush2.bf16.msra.mxu0 0
        %1284 = vmatprep.subr.bf16.mxu0 0
        %1285 = vmatpush2.bf16.msra.mxu0 0
        %1286 = vmatprep.subr.bf16.mxu0 0
        %1287 = vmatpush2.bf16.msra.mxu0 0
        %1288 = vmatprep.subr.bf16.mxu0 0
        %1289 = vmatpush2.bf16.msra.mxu0 0
        %1290 = vmatprep.subr.bf16.mxu0 0
        %1291 = vmatpush2.bf16.msra.mxu0 0
        %1292 = vmatprep.subr.bf16.mxu0 0
        %1293 = vmatpush2.bf16.msra.mxu0 0
        %1294 = vmatprep.mubr.bf16.mxu0 0
        %1295 = vmatmul.mubr.bf16.gmra.mxu0 %v1257
        %v1296 = vpop.f32.mrf.mxu0
        %v1297 = vadd.f32 0.0, %v1296
        %v1298 = vpop.f32.mrf.mxu0
        %v1299 = vadd.f32 0.0, %v1298
        %v1300 = vpop.f32.mrf.mxu0
        %v1301 = vadd.f32 0.0, %v1300
        %v1302 = vpop.f32.mrf.mxu0
        %v1303 = vadd.f32 0.0, %v1302
        %1304 = vmatprep.mubr.bf16.mxu0 0
        %1305 = vmatmul.mubr.bf16.gmra.mxu0 %v1260
        %v1306 = vpop.f32.mrf.mxu0
        %v1307 = vadd.f32 0.0, %v1306
        %v1308 = vpop.f32.mrf.mxu0
        %v1309 = vadd.f32 0.0, %v1308
        %v1310 = vpop.f32.mrf.mxu0
        %v1311 = vadd.f32 0.0, %v1310
        %v1312 = vpop.f32.mrf.mxu0
        %v1313 = vadd.f32 0.0, %v1312
        %1314 = vdwg.mxu0
        %v1315 = vadd.f32 %v1171, %v1297
        %v1316 = vadd.f32 %v1172, %v1299
        %v1317 = vadd.f32 %v1173, %v1301
        %v1318 = vadd.f32 %v1174, %v1303
        %v1319 = vadd.f32 %v1175, %v1307
        %v1320 = vadd.f32 %v1176, %v1309
        %v1321 = vadd.f32 %v1177, %v1311
        %v1322 = vadd.f32 %v1178, %v1313
        %v1323 = vld [vmem:[%s2] sm:$0x3]
        %v1325 = vlaneseq
        %v1326 = vshrl.u32 %v1325, 7
        %v1327 = vsub.s32 0, %v1326
        %v1328 = vrot.slane %v1323, %v1327
        %v1329 = vlaneseq
        %v1330 = vshrl.u32 %v1329, 7
        %v1331 = vsub.s32 1, %v1330
        %v1332 = vrot.slane %v1323, %v1331
        %v1335 = vadd.f32 %v1315, %v1328
        %v1336 = vadd.f32 %v1316, %v1332
        %v1337 = vadd.f32 %v1317, %v1328
        %v1338 = vadd.f32 %v1318, %v1332
        %v1339 = vadd.f32 %v1319, %v1328
        %v1340 = vadd.f32 %v1320, %v1332
        %v1341 = vadd.f32 %v1321, %v1328
        %v1342 = vadd.f32 %v1322, %v1332
        %v1343 = vmax.f32 %v1335, 0.0
        %v1344 = vmax.f32 %v1336, 0.0
        %v1345 = vmax.f32 %v1337, 0.0
        %v1346 = vmax.f32 %v1338, 0.0
        %v1347 = vmax.f32 %v1339, 0.0
        %v1348 = vmax.f32 %v1340, 0.0
        %v1349 = vmax.f32 %v1341, 0.0
        %v1350 = vmax.f32 %v1342, 0.0
        %v1351 = vpack.c.bf16 %v1345, %v1343
        %v1352 = vpack.c.bf16 %v1346, %v1344
        %v1353 = vpack.c.bf16 %v1349, %v1347
        %v1354 = vpack.c.bf16 %v1350, %v1348
        %v1355 = vld [vmem:[%s3] sm:$0xf]
        %v1356 = vld [vmem:[%s3 + $0x4] sm:$0xf]
        %v1357 = vld [vmem:[%s3 + $0x8] sm:$0xf]
        %v1358 = vld [vmem:[%s3 + $0xc] sm:$0xf]
        %v1359 = vld [vmem:[%s3 + $0x10] sm:$0xf]
        %v1360 = vld [vmem:[%s3 + $0x14] sm:$0xf]
        %v1361 = vld [vmem:[%s3 + $0x18] sm:$0xf]
        %v1362 = vld [vmem:[%s3 + $0x1c] sm:$0xf]
        %v1363 = vld [vmem:[%s3 + $0x20] sm:$0xf]
        %v1364 = vld [vmem:[%s3 + $0x24] sm:$0xf]
        %v1365 = vld [vmem:[%s3 + $0x28] sm:$0xf]
        %v1366 = vld [vmem:[%s3 + $0x2c] sm:$0xf]
        %v1367 = vld [vmem:[%s3 + $0x30] sm:$0xf]
        %v1368 = vld [vmem:[%s3 + $0x34] sm:$0xf]
        %v1369 = vld [vmem:[%s3 + $0x38] sm:$0xf]
        %v1370 = vld [vmem:[%s3 + $0x3c] sm:$0xf]
        %v1371 = vld [vmem:[%s3 + $0x40] sm:$0xf]
        %v1372 = vld [vmem:[%s3 + $0x44] sm:$0xf]
        %v1373 = vld [vmem:[%s3 + $0x48] sm:$0xf]
        %v1374 = vld [vmem:[%s3 + $0x4c] sm:$0xf]
        %v1375 = vld [vmem:[%s3 + $0x50] sm:$0xf]
        %v1397 = vunpack.c.l.b16 %v1355
        %v1398 = vunpack.c.l.b16 %v1356
        %v1399 = vunpack.c.l.b16 %v1357
        %v1400 = vunpack.c.l.b16 %v1358
        %v1401 = vunpack.c.l.b16 %v1359
        %v1402 = vunpack.c.l.b16 %v1360
        %v1403 = vunpack.c.l.b16 %v1361
        %v1404 = vunpack.c.l.b16 %v1362
        %v1405 = vunpack.c.l.b16 %v1363
        %v1406 = vunpack.c.l.b16 %v1364
        %v1407 = vunpack.c.l.b16 %v1365
        %v1408 = vunpack.c.l.b16 %v1366
        %v1409 = vunpack.c.l.b16 %v1367
        %v1410 = vunpack.c.l.b16 %v1368
        %v1411 = vunpack.c.l.b16 %v1369
        %v1412 = vunpack.c.l.b16 %v1370
        %v1413 = vunpack.c.l.b16 %v1371
        %v1414 = vunpack.c.l.b16 %v1372
        %v1415 = vunpack.c.l.b16 %v1373
        %v1416 = vunpack.c.l.b16 %v1374
        %v1417 = vunpack.c.l.b16 %v1375
        %v1418 = vpack.c.b16 %v1398, %v1397
        %v1419 = vpack.c.b16 %v1400, %v1399
        %v1420 = vpack.c.b16 %v1402, %v1401
        %v1421 = vpack.c.b16 %v1404, %v1403
        %v1422 = vpack.c.b16 %v1406, %v1405
        %v1423 = vpack.c.b16 %v1408, %v1407
        %v1424 = vpack.c.b16 %v1410, %v1409
        %v1425 = vpack.c.b16 %v1412, %v1411
        %v1426 = vpack.c.b16 %v1414, %v1413
        %v1427 = vpack.c.b16 %v1416, %v1415
        %v1428 = vpack.c.b16 %v1417, %v1417
        %vm1439 = vcmask 326656
        %v1441 = vsel %vm1439, %v1352, 0
        %v1444 = vsel %vm1439, %v1354, 0
        %vm1446 = vcmask 1043456
        %v1448 = vsel %vm1446, %v1428, 0
        %1450 = vmatprep.subr.bf16.mxu0 0
        %1451 = vmatpush1.bf16.msra.mxu0 %v1425
        %1452 = vmatprep.subr.bf16.mxu0 0
        %1453 = vmatpush1.bf16.msra.mxu0 %v1424
        %1454 = vmatprep.subr.bf16.mxu0 0
        %1455 = vmatpush1.bf16.msra.mxu0 %v1423
        %1456 = vmatprep.subr.bf16.mxu0 0
        %1457 = vmatpush1.bf16.msra.mxu0 %v1422
        %1458 = vmatprep.subr.bf16.mxu0 0
        %1459 = vmatpush1.bf16.msra.mxu0 %v1421
        %1460 = vmatprep.subr.bf16.mxu0 0
        %1461 = vmatpush1.bf16.msra.mxu0 %v1420
        %1462 = vmatprep.subr.bf16.mxu0 0
        %1463 = vmatpush1.bf16.msra.mxu0 %v1419
        %1464 = vmatprep.subr.bf16.mxu0 0
        %1465 = vmatpush1.bf16.msra.mxu0 %v1418
        %1466 = vmatprep.subr.bf16.mxu0 0
        %1467 = vmatpush2.bf16.msra.mxu0 0
        %1468 = vmatprep.subr.bf16.mxu0 0
        %1469 = vmatpush2.bf16.msra.mxu0 0
        %1470 = vmatprep.subr.bf16.mxu0 0
        %1471 = vmatpush2.bf16.msra.mxu0 0
        %1472 = vmatprep.subr.bf16.mxu0 0
        %1473 = vmatpush2.bf16.msra.mxu0 0
        %1474 = vmatprep.subr.bf16.mxu0 0
        %1475 = vmatpush2.bf16.msra.mxu0 0
        %1476 = vmatprep.subr.bf16.mxu0 0
        %1477 = vmatpush2.bf16.msra.mxu0 %v1448
        %1478 = vmatprep.subr.bf16.mxu0 0
        %1479 = vmatpush2.bf16.msra.mxu0 %v1427
        %1480 = vmatprep.subr.bf16.mxu0 0
        %1481 = vmatpush2.bf16.msra.mxu0 %v1426
        %1482 = vmatprep.mubr.bf16.mxu0 %v1441
        %1483 = vmatmul.mubr.bf16.gmra.mxu0 %v1351
        %v1484 = vpop.f32.mrf.mxu0
        %v1485 = vadd.f32 0.0, %v1484
        %v1486 = vpop.f32.mrf.mxu0
        %v1487 = vpop.f32.mrf.mxu0
        %v1488 = vadd.f32 0.0, %v1487
        %v1489 = vpop.f32.mrf.mxu0
        %1490 = vmatprep.mubr.bf16.mxu0 %v1444
        %1491 = vmatmul.mubr.bf16.gmra.mxu0 %v1353
        %v1492 = vpop.f32.mrf.mxu0
        %v1493 = vadd.f32 0.0, %v1492
        %v1494 = vpop.f32.mrf.mxu0
        %v1495 = vpop.f32.mrf.mxu0
        %v1496 = vadd.f32 0.0, %v1495
        %v1497 = vpop.f32.mrf.mxu0
        %1498 = vdwg.mxu0
        %v1499 = vld [vmem:[%s4] sm:$0xf]
        %v1500 = vld [vmem:[%s4 + $0x4] sm:$0xf]
        %v1501 = vld [vmem:[%s4 + $0x8] sm:$0xf]
        %v1502 = vld [vmem:[%s4 + $0xc] sm:$0xf]
        %v1503 = vld [vmem:[%s4 + $0x10] sm:$0xf]
        %v1504 = vld [vmem:[%s4 + $0x14] sm:$0xf]
        %v1505 = vld [vmem:[%s4 + $0x18] sm:$0xf]
        %v1506 = vld [vmem:[%s4 + $0x1c] sm:$0xf]
        %v1507 = vld [vmem:[%s4 + $0x20] sm:$0xf]
        %v1508 = vld [vmem:[%s4 + $0x24] sm:$0xf]
        %v1509 = vld [vmem:[%s4 + $0x28] sm:$0xf]
        %v1510 = vld [vmem:[%s4 + $0x2c] sm:$0xf]
        %v1511 = vld [vmem:[%s4 + $0x30] sm:$0xf]
        %v1512 = vld [vmem:[%s4 + $0x34] sm:$0xf]
        %v1513 = vld [vmem:[%s4 + $0x38] sm:$0xf]
        %v1514 = vld [vmem:[%s4 + $0x3c] sm:$0xf]
        %v1515 = vld [vmem:[%s4 + $0x40] sm:$0xf]
        %v1516 = vld [vmem:[%s4 + $0x44] sm:$0xf]
        %v1517 = vld [vmem:[%s4 + $0x48] sm:$0xf]
        %v1518 = vld [vmem:[%s4 + $0x4c] sm:$0xf]
        %v1519 = vld [vmem:[%s4 + $0x50] sm:$0xf]
        %v1541 = vunpack.c.l.b16 %v1499
        %v1542 = vunpack.c.l.b16 %v1500
        %v1543 = vunpack.c.l.b16 %v1501
        %v1544 = vunpack.c.l.b16 %v1502
        %v1545 = vunpack.c.l.b16 %v1503
        %v1546 = vunpack.c.l.b16 %v1504
        %v1547 = vunpack.c.l.b16 %v1505
        %v1548 = vunpack.c.l.b16 %v1506
        %v1549 = vunpack.c.l.b16 %v1507
        %v1550 = vunpack.c.l.b16 %v1508
        %v1551 = vunpack.c.l.b16 %v1509
        %v1552 = vunpack.c.l.b16 %v1510
        %v1553 = vunpack.c.l.b16 %v1511
        %v1554 = vunpack.c.l.b16 %v1512
        %v1555 = vunpack.c.l.b16 %v1513
        %v1556 = vunpack.c.l.b16 %v1514
        %v1557 = vunpack.c.l.b16 %v1515
        %v1558 = vunpack.c.l.b16 %v1516
        %v1559 = vunpack.c.l.b16 %v1517
        %v1560 = vunpack.c.l.b16 %v1518
        %v1561 = vunpack.c.l.b16 %v1519
        %v1562 = vpack.c.b16 %v1542, %v1541
        %v1563 = vpack.c.b16 %v1544, %v1543
        %v1564 = vpack.c.b16 %v1546, %v1545
        %v1565 = vpack.c.b16 %v1548, %v1547
        %v1566 = vpack.c.b16 %v1550, %v1549
        %v1567 = vpack.c.b16 %v1552, %v1551
        %v1568 = vpack.c.b16 %v1554, %v1553
        %v1569 = vpack.c.b16 %v1556, %v1555
        %v1570 = vpack.c.b16 %v1558, %v1557
        %v1571 = vpack.c.b16 %v1560, %v1559
        %v1572 = vpack.c.b16 %v1561, %v1561
        %v1584 = vsel %vm1446, %v1572, 0
        %1586 = vmatprep.subr.bf16.mxu0 0
        %1587 = vmatpush1.bf16.msra.mxu0 %v1569
        %1588 = vmatprep.subr.bf16.mxu0 0
        %1589 = vmatpush1.bf16.msra.mxu0 %v1568
        %1590 = vmatprep.subr.bf16.mxu0 0
        %1591 = vmatpush1.bf16.msra.mxu0 %v1567
        %1592 = vmatprep.subr.bf16.mxu0 0
        %1593 = vmatpush1.bf16.msra.mxu0 %v1566
        %1594 = vmatprep.subr.bf16.mxu0 0
        %1595 = vmatpush1.bf16.msra.mxu0 %v1565
        %1596 = vmatprep.subr.bf16.mxu0 0
        %1597 = vmatpush1.bf16.msra.mxu0 %v1564
        %1598 = vmatprep.subr.bf16.mxu0 0
        %1599 = vmatpush1.bf16.msra.mxu0 %v1563
        %1600 = vmatprep.subr.bf16.mxu0 0
        %1601 = vmatpush1.bf16.msra.mxu0 %v1562
        %1602 = vmatprep.subr.bf16.mxu0 0
        %1603 = vmatpush2.bf16.msra.mxu0 0
        %1604 = vmatprep.subr.bf16.mxu0 0
        %1605 = vmatpush2.bf16.msra.mxu0 0
        %1606 = vmatprep.subr.bf16.mxu0 0
        %1607 = vmatpush2.bf16.msra.mxu0 0
        %1608 = vmatprep.subr.bf16.mxu0 0
        %1609 = vmatpush2.bf16.msra.mxu0 0
        %1610 = vmatprep.subr.bf16.mxu0 0
        %1611 = vmatpush2.bf16.msra.mxu0 0
        %1612 = vmatprep.subr.bf16.mxu0 0
        %1613 = vmatpush2.bf16.msra.mxu0 %v1584
        %1614 = vmatprep.subr.bf16.mxu0 0
        %1615 = vmatpush2.bf16.msra.mxu0 %v1571
        %1616 = vmatprep.subr.bf16.mxu0 0
        %1617 = vmatpush2.bf16.msra.mxu0 %v1570
        %1618 = vmatprep.mubr.bf16.mxu0 %v1441
        %1619 = vmatmul.mubr.bf16.gmra.mxu0 %v1351
        %v1620 = vpop.f32.mrf.mxu0
        %v1621 = vadd.f32 0.0, %v1620
        %v1622 = vpop.f32.mrf.mxu0
        %v1623 = vpop.f32.mrf.mxu0
        %v1624 = vadd.f32 0.0, %v1623
        %v1625 = vpop.f32.mrf.mxu0
        %1626 = vmatprep.mubr.bf16.mxu0 %v1444
        %1627 = vmatmul.mubr.bf16.gmra.mxu0 %v1353
        %v1628 = vpop.f32.mrf.mxu0
        %v1629 = vadd.f32 0.0, %v1628
        %v1630 = vpop.f32.mrf.mxu0
        %v1631 = vpop.f32.mrf.mxu0
        %v1632 = vadd.f32 0.0, %v1631
        %v1633 = vpop.f32.mrf.mxu0
        %1634 = vdwg.mxu0
        %v1635 = vmax.f32 %v1485, %v1621
        %v1636 = vmax.f32 %v1488, %v1624
        %v1637 = vmax.f32 %v1493, %v1629
        %v1638 = vmax.f32 %v1496, %v1632
        %v1639 = vpack.c.bf16 %v1636, %v1635
        %v1640 = vpack.c.bf16 %v1638, %v1637
        %v1641 = vld [vmem:[%s5] sm:$0xf]
        %v1642 = vld [vmem:[%s5 + $0x4] sm:$0x7]
        %v1645 = vunpack.c.l.b16 %v1641
        %v1646 = vunpack.c.l.b16 %v1642
        %v1647 = vpack.c.b16 %v1646, %v1645
        %vm1648 = vcmask 228352
        %v1650 = vsel %vm1648, %v1647, 0
        %vm1652 = vcmask 1045504
        %v1654 = vsel %vm1652, %v1640, 0
        %1656 = vmatprep.subr.bf16.mxu0 0
        %1657 = vmatpush1.bf16.msra.mxu0 0
        %1658 = vmatprep.subr.bf16.mxu0 0
        %1659 = vmatpush1.bf16.msra.mxu0 0
        %1660 = vmatprep.subr.bf16.mxu0 0
        %1661 = vmatpush1.bf16.msra.mxu0 0
        %1662 = vmatprep.subr.bf16.mxu0 0
        %1663 = vmatpush1.bf16.msra.mxu0 0
        %1664 = vmatprep.subr.bf16.mxu0 0
        %1665 = vmatpush1.bf16.msra.mxu0 0
        %1666 = vmatprep.subr.bf16.mxu0 0
        %1667 = vmatpush1.bf16.msra.mxu0 0
        %1668 = vmatprep.subr.bf16.mxu0 0
        %1669 = vmatpush1.bf16.msra.mxu0 %v1654
        %1670 = vmatprep.subr.bf16.mxu0 0
        %1671 = vmatpush1.bf16.msra.mxu0 %v1639
        %1672 = vmatprep.subr.bf16.mxu0 0
        %1673 = vmatpush2.bf16.msra.mxu0 0
        %1674 = vmatprep.subr.bf16.mxu0 0
        %1675 = vmatpush2.bf16.msra.mxu0 0
        %1676 = vmatprep.subr.bf16.mxu0 0
        %1677 = vmatpush2.bf16.msra.mxu0 0
        %1678 = vmatprep.subr.bf16.mxu0 0
        %1679 = vmatpush2.bf16.msra.mxu0 0
        %1680 = vmatprep.subr.bf16.mxu0 0
        %1681 = vmatpush2.bf16.msra.mxu0 0
        %1682 = vmatprep.subr.bf16.mxu0 0
        %1683 = vmatpush2.bf16.msra.mxu0 0
        %1684 = vmatprep.subr.bf16.mxu0 0
        %1685 = vmatpush2.bf16.msra.mxu0 0
        %1686 = vmatprep.subr.bf16.mxu0 0
        %1687 = vmatpush2.bf16.msra.mxu0 0
        %1688 = vmatprep.mubr.bf16.mxu0 0
        %1689 = vmatmul.mubr.bf16.gmra.mxu0 %v1650
        %v1690 = vpop.f32.mrf.mxu0
        %v1691 = vadd.f32 0.0, %v1690
        %v1692 = vpop.f32.mrf.mxu0
        %v1693 = vpop.f32.mrf.mxu0
        %v1694 = vadd.f32 0.0, %v1693
        %v1695 = vpop.f32.mrf.mxu0
        %1696 = vdwg.mxu0
        %v1697 = vld [vmem:[%s6] sm:$0xf]
        %v1698 = vld [vmem:[%s6 + $0x4] sm:$0x7]
        %v1701 = vunpack.c.l.b16 %v1697
        %v1702 = vunpack.c.l.b16 %v1698
        %v1703 = vpack.c.b16 %v1702, %v1701
        %v1705 = vsel %vm1648, %v1703, 0
        %1707 = vmatprep.subr.bf16.mxu0 0
        %1708 = vmatpush1.bf16.msra.mxu0 0
        %1709 = vmatprep.subr.bf16.mxu0 0
        %1710 = vmatpush1.bf16.msra.mxu0 0
        %1711 = vmatprep.subr.bf16.mxu0 0
        %1712 = vmatpush1.bf16.msra.mxu0 0
        %1713 = vmatprep.subr.bf16.mxu0 0
        %1714 = vmatpush1.bf16.msra.mxu0 0
        %1715 = vmatprep.subr.bf16.mxu0 0
        %1716 = vmatpush1.bf16.msra.mxu0 0
        %1717 = vmatprep.subr.bf16.mxu0 0
        %1718 = vmatpush1.bf16.msra.mxu0 0
        %1719 = vmatprep.subr.bf16.mxu0 0
        %1720 = vmatpush1.bf16.msra.mxu0 %v1654
        %1721 = vmatprep.subr.bf16.mxu0 0
        %1722 = vmatpush1.bf16.msra.mxu0 %v1639
        %1723 = vmatprep.subr.bf16.mxu0 0
        %1724 = vmatpush2.bf16.msra.mxu0 0
        %1725 = vmatprep.subr.bf16.mxu0 0
        %1726 = vmatpush2.bf16.msra.mxu0 0
        %1727 = vmatprep.subr.bf16.mxu0 0
        %1728 = vmatpush2.bf16.msra.mxu0 0
        %1729 = vmatprep.subr.bf16.mxu0 0
        %1730 = vmatpush2.bf16.msra.mxu0 0
        %1731 = vmatprep.subr.bf16.mxu0 0
        %1732 = vmatpush2.bf16.msra.mxu0 0
        %1733 = vmatprep.subr.bf16.mxu0 0
        %1734 = vmatpush2.bf16.msra.mxu0 0
        %1735 = vmatprep.subr.bf16.mxu0 0
        %1736 = vmatpush2.bf16.msra.mxu0 0
        %1737 = vmatprep.subr.bf16.mxu0 0
        %1738 = vmatpush2.bf16.msra.mxu0 0
        %1739 = vmatprep.mubr.bf16.mxu0 0
        %1740 = vmatmul.mubr.bf16.gmra.mxu0 %v1705
        %v1741 = vpop.f32.mrf.mxu0
        %v1742 = vadd.f32 0.0, %v1741
        %v1743 = vpop.f32.mrf.mxu0
        %v1744 = vpop.f32.mrf.mxu0
        %v1745 = vadd.f32 0.0, %v1744
        %v1746 = vpop.f32.mrf.mxu0
        %1747 = vdwg.mxu0
        %v1748 = vmax.f32 %v1691, %v1742
        %v1749 = vmax.f32 %v1694, %v1745
        %v1750 = vpack.c.bf16 %v1749, %v1748
        %v1751 = vld [vmem:[%s7] sm:$0xff]
        %v1752 = vld [vmem:[%s7 + $0x8] sm:$0xff]
        %v1753 = vld [vmem:[%s7 + $0x10] sm:$0xff]
        %v1754 = vld [vmem:[%s7 + $0x18] sm:$0xff]
        %v1755 = vld [vmem:[%s7 + $0x20] sm:$0xff]
        %v1756 = vld [vmem:[%s7 + $0x28] sm:$0xff]
        %v1757 = vld [vmem:[%s7 + $0x30] sm:$0xff]
        %v1758 = vld [vmem:[%s7 + $0x38] sm:$0xff]
        %v1759 = vld [vmem:[%s7 + $0x40] sm:$0xff]
        %v1760 = vld [vmem:[%s7 + $0x48] sm:$0xff]
        %v1761 = vld [vmem:[%s7 + $0x50] sm:$0x33]
        %s1762 = scalar_lea.vmem %s7, 88
        %v1763 = vld [vmem:[%s1762] sm:$0xff]
        %v1764 = vld [vmem:[%s1762 + $0x8] sm:$0xff]
        %v1765 = vld [vmem:[%s1762 + $0x10] sm:$0xff]
        %v1766 = vld [vmem:[%s1762 + $0x18] sm:$0xff]
        %v1767 = vld [vmem:[%s1762 + $0x20] sm:$0xff]
        %v1768 = vld [vmem:[%s1762 + $0x28] sm:$0xff]
        %v1769 = vld [vmem:[%s1762 + $0x30] sm:$0xff]
        %v1770 = vld [vmem:[%s1762 + $0x38] sm:$0xff]
        %v1771 = vld [vmem:[%s1762 + $0x40] sm:$0xff]
        %v1772 = vld [vmem:[%s1762 + $0x48] sm:$0xff]
        %v1773 = vld [vmem:[%s1762 + $0x50] sm:$0x33]
        %v1775 = vshrl.u32 %v1750, 16
        %v1777 = vshll.u32 %v1750, 16
        %v1779 = vrot.slane %v1777, 1
        %v1780 = vor.u32 %v1775, %v1779
        %v1792 = vunpack.c.l.b16 %v1763
        %v1793 = vunpack.c.h.b16 %v1763
        %v1794 = vunpack.c.l.b16 %v1764
        %v1795 = vunpack.c.h.b16 %v1764
        %v1796 = vunpack.c.l.b16 %v1765
        %v1797 = vunpack.c.h.b16 %v1765
        %v1798 = vunpack.c.l.b16 %v1766
        %v1799 = vunpack.c.h.b16 %v1766
        %v1800 = vunpack.c.l.b16 %v1767
        %v1801 = vunpack.c.h.b16 %v1767
        %v1802 = vunpack.c.l.b16 %v1768
        %v1803 = vunpack.c.h.b16 %v1768
        %v1804 = vunpack.c.l.b16 %v1769
        %v1805 = vunpack.c.h.b16 %v1769
        %v1806 = vunpack.c.l.b16 %v1770
        %v1807 = vunpack.c.h.b16 %v1770
        %v1808 = vunpack.c.l.b16 %v1771
        %v1809 = vunpack.c.h.b16 %v1771
        %v1810 = vunpack.c.l.b16 %v1772
        %v1811 = vunpack.c.h.b16 %v1772
        %v1812 = vunpack.c.l.b16 %v1773
        %v1813 = vunpack.c.h.b16 %v1773
        %v1814 = vpack.c.b16 %v1794, %v1792
        %v1815 = vpack.c.b16 %v1795, %v1793
        %v1816 = vpack.c.b16 %v1798, %v1796
        %v1817 = vpack.c.b16 %v1799, %v1797
        %v1818 = vpack.c.b16 %v1802, %v1800
        %v1819 = vpack.c.b16 %v1803, %v1801
        %v1820 = vpack.c.b16 %v1806, %v1804
        %v1821 = vpack.c.b16 %v1807, %v1805
        %v1822 = vpack.c.b16 %v1810, %v1808
        %v1823 = vpack.c.b16 %v1811, %v1809
        %v1824 = vpack.c.b16 %v1812, %v1812
        %v1825 = vpack.c.b16 %v1813, %v1813
        %vm1836 = vcmask 687104
        %v1838 = vsel %vm1836, %v1780, 0
        %vm1840 = vcmask 1041408
        %v1842 = vsel %vm1840, %v1824, 0
        %v1845 = vsel %vm1840, %v1825, 0
        %1847 = vmatprep.subr.bf16.mxu0 0
        %1848 = vmatpush1.bf16.msra.mxu0 0
        %1849 = vmatprep.subr.bf16.mxu0 0
        %1850 = vmatpush1.bf16.msra.mxu0 0
        %1851 = vmatprep.subr.bf16.mxu0 %v1845
        %1852 = vmatpush1.bf16.msra.mxu0 %v1842
        %1853 = vmatprep.subr.bf16.mxu0 %v1823
        %1854 = vmatpush1.bf16.msra.mxu0 %v1822
        %1855 = vmatprep.subr.bf16.mxu0 %v1821
        %1856 = vmatpush1.bf16.msra.mxu0 %v1820
        %1857 = vmatprep.subr.bf16.mxu0 %v1819
        %1858 = vmatpush1.bf16.msra.mxu0 %v1818
        %1859 = vmatprep.subr.bf16.mxu0 %v1817
        %1860 = vmatpush1.bf16.msra.mxu0 %v1816
        %1861 = vmatprep.subr.bf16.mxu0 %v1815
        %1862 = vmatpush1.bf16.msra.mxu0 %v1814
        %1863 = vmatprep.subr.bf16.mxu0 0
        %1864 = vmatpush2.bf16.msra.mxu0 0
        %1865 = vmatprep.subr.bf16.mxu0 0
        %1866 = vmatpush2.bf16.msra.mxu0 0
        %1867 = vmatprep.subr.bf16.mxu0 0
        %1868 = vmatpush2.bf16.msra.mxu0 0
        %1869 = vmatprep.subr.bf16.mxu0 0
        %1870 = vmatpush2.bf16.msra.mxu0 0
        %1871 = vmatprep.subr.bf16.mxu0 0
        %1872 = vmatpush2.bf16.msra.mxu0 0
        %1873 = vmatprep.subr.bf16.mxu0 0
        %1874 = vmatpush2.bf16.msra.mxu0 0
        %1875 = vmatprep.subr.bf16.mxu0 0
        %1876 = vmatpush2.bf16.msra.mxu0 0
        %1877 = vmatprep.subr.bf16.mxu0 0
        %1878 = vmatpush2.bf16.msra.mxu0 0
        %1879 = vmatprep.mubr.bf16.mxu0 0
        %1880 = vmatmul.mubr.bf16.gmra.mxu0 %v1838
        %v1881 = vpop.f32.mrf.mxu0
        %v1882 = vadd.f32 0.0, %v1881
        %v1883 = vpop.f32.mrf.mxu0
        %v1884 = vadd.f32 0.0, %v1883
        %v1885 = vpop.f32.mrf.mxu0
        %v1886 = vadd.f32 0.0, %v1885
        %v1887 = vpop.f32.mrf.mxu0
        %v1888 = vadd.f32 0.0, %v1887
        %1889 = vdwg.mxu0
        %v1901 = vunpack.c.l.b16 %v1751
        %v1902 = vunpack.c.h.b16 %v1751
        %v1903 = vunpack.c.l.b16 %v1752
        %v1904 = vunpack.c.h.b16 %v1752
        %v1905 = vunpack.c.l.b16 %v1753
        %v1906 = vunpack.c.h.b16 %v1753
        %v1907 = vunpack.c.l.b16 %v1754
        %v1908 = vunpack.c.h.b16 %v1754
        %v1909 = vunpack.c.l.b16 %v1755
        %v1910 = vunpack.c.h.b16 %v1755
        %v1911 = vunpack.c.l.b16 %v1756
        %v1912 = vunpack.c.h.b16 %v1756
        %v1913 = vunpack.c.l.b16 %v1757
        %v1914 = vunpack.c.h.b16 %v1757
        %v1915 = vunpack.c.l.b16 %v1758
        %v1916 = vunpack.c.h.b16 %v1758
        %v1917 = vunpack.c.l.b16 %v1759
        %v1918 = vunpack.c.h.b16 %v1759
        %v1919 = vunpack.c.l.b16 %v1760
        %v1920 = vunpack.c.h.b16 %v1760
        %v1921 = vunpack.c.l.b16 %v1761
        %v1922 = vunpack.c.h.b16 %v1761
        %v1923 = vpack.c.b16 %v1903, %v1901
        %v1924 = vpack.c.b16 %v1904, %v1902
        %v1925 = vpack.c.b16 %v1907, %v1905
        %v1926 = vpack.c.b16 %v1908, %v1906
        %v1927 = vpack.c.b16 %v1911, %v1909
        %v1928 = vpack.c.b16 %v1912, %v1910
        %v1929 = vpack.c.b16 %v1915, %v1913
        %v1930 = vpack.c.b16 %v1916, %v1914
        %v1931 = vpack.c.b16 %v1919, %v1917
        %v1932 = vpack.c.b16 %v1920, %v1918
        %v1933 = vpack.c.b16 %v1921, %v1921
        %v1934 = vpack.c.b16 %v1922, %v1922
        %v1945 = vsel %vm1836, %v1750, 0
        %v1948 = vsel %vm1840, %v1933, 0
        %v1951 = vsel %vm1840, %v1934, 0
        %1953 = vmatprep.subr.bf16.mxu0 0
        %1954 = vmatpush1.bf16.msra.mxu0 0
        %1955 = vmatprep.subr.bf16.mxu0 0
        %1956 = vmatpush1.bf16.msra.mxu0 0
        %1957 = vmatprep.subr.bf16.mxu0 %v1951
        %1958 = vmatpush1.bf16.msra.mxu0 %v1948
        %1959 = vmatprep.subr.bf16.mxu0 %v1932
        %1960 = vmatpush1.bf16.msra.mxu0 %v1931
        %1961 = vmatprep.subr.bf16.mxu0 %v1930
        %1962 = vmatpush1.bf16.msra.mxu0 %v1929
        %1963 = vmatprep.subr.bf16.mxu0 %v1928
        %1964 = vmatpush1.bf16.msra.mxu0 %v1927
        %1965 = vmatprep.subr.bf16.mxu0 %v1926
        %1966 = vmatpush1.bf16.msra.mxu0 %v1925
        %1967 = vmatprep.subr.bf16.mxu0 %v1924
        %1968 = vmatpush1.bf16.msra.mxu0 %v1923
        %1969 = vmatprep.subr.bf16.mxu0 0
        %1970 = vmatpush2.bf16.msra.mxu0 0
        %1971 = vmatprep.subr.bf16.mxu0 0
        %1972 = vmatpush2.bf16.msra.mxu0 0
        %1973 = vmatprep.subr.bf16.mxu0 0
        %1974 = vmatpush2.bf16.msra.mxu0 0
        %1975 = vmatprep.subr.bf16.mxu0 0
        %1976 = vmatpush2.bf16.msra.mxu0 0
        %1977 = vmatprep.subr.bf16.mxu0 0
        %1978 = vmatpush2.bf16.msra.mxu0 0
        %1979 = vmatprep.subr.bf16.mxu0 0
        %1980 = vmatpush2.bf16.msra.mxu0 0
        %1981 = vmatprep.subr.bf16.mxu0 0
        %1982 = vmatpush2.bf16.msra.mxu0 0
        %1983 = vmatprep.subr.bf16.mxu0 0
        %1984 = vmatpush2.bf16.msra.mxu0 0
        %1985 = vmatprep.mubr.bf16.mxu0 0
        %1986 = vmatmul.mubr.bf16.gmra.mxu0 %v1945
        %v1987 = vpop.f32.mrf.mxu0
        %v1988 = vadd.f32 %v1882, %v1987
        %v1989 = vpop.f32.mrf.mxu0
        %v1990 = vadd.f32 %v1884, %v1989
        %v1991 = vpop.f32.mrf.mxu0
        %v1992 = vadd.f32 %v1886, %v1991
        %v1993 = vpop.f32.mrf.mxu0
        %v1994 = vadd.f32 %v1888, %v1993
        %1995 = vdwg.mxu0
        %s1996 = scalar_lea.vmem %s7, 176
        %v1997 = vld [vmem:[%s1996] sm:$0xff]
        %v1998 = vld [vmem:[%s1996 + $0x8] sm:$0xff]
        %v1999 = vld [vmem:[%s1996 + $0x10] sm:$0xff]
        %v2000 = vld [vmem:[%s1996 + $0x18] sm:$0xff]
        %v2001 = vld [vmem:[%s1996 + $0x20] sm:$0xff]
        %v2002 = vld [vmem:[%s1996 + $0x28] sm:$0xff]
        %v2003 = vld [vmem:[%s1996 + $0x30] sm:$0xff]
        %v2004 = vld [vmem:[%s1996 + $0x38] sm:$0xff]
        %v2005 = vld [vmem:[%s1996 + $0x40] sm:$0xff]
        %v2006 = vld [vmem:[%s1996 + $0x48] sm:$0xff]
        %v2007 = vld [vmem:[%s1996 + $0x50] sm:$0x33]
        %v2009 = vrot.slane %v1750, 1
        %v2021 = vunpack.c.l.b16 %v1997
        %v2022 = vunpack.c.h.b16 %v1997
        %v2023 = vunpack.c.l.b16 %v1998
        %v2024 = vunpack.c.h.b16 %v1998
        %v2025 = vunpack.c.l.b16 %v1999
        %v2026 = vunpack.c.h.b16 %v1999
        %v2027 = vunpack.c.l.b16 %v2000
        %v2028 = vunpack.c.h.b16 %v2000
        %v2029 = vunpack.c.l.b16 %v2001
        %v2030 = vunpack.c.h.b16 %v2001
        %v2031 = vunpack.c.l.b16 %v2002
        %v2032 = vunpack.c.h.b16 %v2002
        %v2033 = vunpack.c.l.b16 %v2003
        %v2034 = vunpack.c.h.b16 %v2003
        %v2035 = vunpack.c.l.b16 %v2004
        %v2036 = vunpack.c.h.b16 %v2004
        %v2037 = vunpack.c.l.b16 %v2005
        %v2038 = vunpack.c.h.b16 %v2005
        %v2039 = vunpack.c.l.b16 %v2006
        %v2040 = vunpack.c.h.b16 %v2006
        %v2041 = vunpack.c.l.b16 %v2007
        %v2042 = vunpack.c.h.b16 %v2007
        %v2043 = vpack.c.b16 %v2023, %v2021
        %v2044 = vpack.c.b16 %v2024, %v2022
        %v2045 = vpack.c.b16 %v2027, %v2025
        %v2046 = vpack.c.b16 %v2028, %v2026
        %v2047 = vpack.c.b16 %v2031, %v2029
        %v2048 = vpack.c.b16 %v2032, %v2030
        %v2049 = vpack.c.b16 %v2035, %v2033
        %v2050 = vpack.c.b16 %v2036, %v2034
        %v2051 = vpack.c.b16 %v2039, %v2037
        %v2052 = vpack.c.b16 %v2040, %v2038
        %v2053 = vpack.c.b16 %v2041, %v2041
        %v2054 = vpack.c.b16 %v2042, %v2042
        %v2066 = vsel %vm1836, %v2009, 0
        %v2069 = vsel %vm1840, %v2053, 0
        %v2072 = vsel %vm1840, %v2054, 0
        %2074 = vmatprep.subr.bf16.mxu0 0
        %2075 = vmatpush1.bf16.msra.mxu0 0
        %2076 = vmatprep.subr.bf16.mxu0 0
        %2077 = vmatpush1.bf16.msra.mxu0 0
        %2078 = vmatprep.subr.bf16.mxu0 %v2072
        %2079 = vmatpush1.bf16.msra.mxu0 %v2069
        %2080 = vmatprep.subr.bf16.mxu0 %v2052
        %2081 = vmatpush1.bf16.msra.mxu0 %v2051
        %2082 = vmatprep.subr.bf16.mxu0 %v2050
        %2083 = vmatpush1.bf16.msra.mxu0 %v2049
        %2084 = vmatprep.subr.bf16.mxu0 %v2048
        %2085 = vmatpush1.bf16.msra.mxu0 %v2047
        %2086 = vmatprep.subr.bf16.mxu0 %v2046
        %2087 = vmatpush1.bf16.msra.mxu0 %v2045
        %2088 = vmatprep.subr.bf16.mxu0 %v2044
        %2089 = vmatpush1.bf16.msra.mxu0 %v2043
        %2090 = vmatprep.subr.bf16.mxu0 0
        %2091 = vmatpush2.bf16.msra.mxu0 0
        %2092 = vmatprep.subr.bf16.mxu0 0
        %2093 = vmatpush2.bf16.msra.mxu0 0
        %2094 = vmatprep.subr.bf16.mxu0 0
        %2095 = vmatpush2.bf16.msra.mxu0 0
        %2096 = vmatprep.subr.bf16.mxu0 0
        %2097 = vmatpush2.bf16.msra.mxu0 0
        %2098 = vmatprep.subr.bf16.mxu0 0
        %2099 = vmatpush2.bf16.msra.mxu0 0
        %2100 = vmatprep.subr.bf16.mxu0 0
        %2101 = vmatpush2.bf16.msra.mxu0 0
        %2102 = vmatprep.subr.bf16.mxu0 0
        %2103 = vmatpush2.bf16.msra.mxu0 0
        %2104 = vmatprep.subr.bf16.mxu0 0
        %2105 = vmatpush2.bf16.msra.mxu0 0
        %2106 = vmatprep.mubr.bf16.mxu0 0
        %2107 = vmatmul.mubr.bf16.gmra.mxu0 %v2066
        %v2108 = vpop.f32.mrf.mxu0
        %v2109 = vadd.f32 0.0, %v2108
        %v2110 = vpop.f32.mrf.mxu0
        %v2111 = vadd.f32 0.0, %v2110
        %v2112 = vpop.f32.mrf.mxu0
        %v2113 = vadd.f32 0.0, %v2112
        %v2114 = vpop.f32.mrf.mxu0
        %v2115 = vadd.f32 0.0, %v2114
        %2116 = vdwg.mxu0
        %v2117 = vadd.f32 %v1988, %v2109
        %v2118 = vadd.f32 %v1990, %v2111
        %v2119 = vadd.f32 %v1992, %v2113
        %v2120 = vadd.f32 %v1994, %v2115
        %s2121 = scalar_lea.vmem %s7, 264
        %v2122 = vld [vmem:[%s2121] sm:$0xff]
        %v2123 = vld [vmem:[%s2121 + $0x8] sm:$0xff]
        %v2124 = vld [vmem:[%s2121 + $0x10] sm:$0xff]
        %v2125 = vld [vmem:[%s2121 + $0x18] sm:$0xff]
        %v2126 = vld [vmem:[%s2121 + $0x20] sm:$0xff]
        %v2127 = vld [vmem:[%s2121 + $0x28] sm:$0xff]
        %v2128 = vld [vmem:[%s2121 + $0x30] sm:$0xff]
        %v2129 = vld [vmem:[%s2121 + $0x38] sm:$0xff]
        %v2130 = vld [vmem:[%s2121 + $0x40] sm:$0xff]
        %v2131 = vld [vmem:[%s2121 + $0x48] sm:$0xff]
        %v2132 = vld [vmem:[%s2121 + $0x50] sm:$0x33]
        %v2133 = vrot.slane %v1775, 1
        %v2134 = vrot.slane %v1777, 2
        %v2135 = vor.u32 %v2133, %v2134
        %v2147 = vunpack.c.l.b16 %v2122
        %v2148 = vunpack.c.h.b16 %v2122
        %v2149 = vunpack.c.l.b16 %v2123
        %v2150 = vunpack.c.h.b16 %v2123
        %v2151 = vunpack.c.l.b16 %v2124
        %v2152 = vunpack.c.h.b16 %v2124
        %v2153 = vunpack.c.l.b16 %v2125
        %v2154 = vunpack.c.h.b16 %v2125
        %v2155 = vunpack.c.l.b16 %v2126
        %v2156 = vunpack.c.h.b16 %v2126
        %v2157 = vunpack.c.l.b16 %v2127
        %v2158 = vunpack.c.h.b16 %v2127
        %v2159 = vunpack.c.l.b16 %v2128
        %v2160 = vunpack.c.h.b16 %v2128
        %v2161 = vunpack.c.l.b16 %v2129
        %v2162 = vunpack.c.h.b16 %v2129
        %v2163 = vunpack.c.l.b16 %v2130
        %v2164 = vunpack.c.h.b16 %v2130
        %v2165 = vunpack.c.l.b16 %v2131
        %v2166 = vunpack.c.h.b16 %v2131
        %v2167 = vunpack.c.l.b16 %v2132
        %v2168 = vunpack.c.h.b16 %v2132
        %v2169 = vpack.c.b16 %v2149, %v2147
        %v2170 = vpack.c.b16 %v2150, %v2148
        %v2171 = vpack.c.b16 %v2153, %v2151
        %v2172 = vpack.c.b16 %v2154, %v2152
        %v2173 = vpack.c.b16 %v2157, %v2155
        %v2174 = vpack.c.b16 %v2158, %v2156
        %v2175 = vpack.c.b16 %v2161, %v2159
        %v2176 = vpack.c.b16 %v2162, %v2160
        %v2177 = vpack.c.b16 %v2165, %v2163
        %v2178 = vpack.c.b16 %v2166, %v2164
        %v2179 = vpack.c.b16 %v2167, %v2167
        %v2180 = vpack.c.b16 %v2168, %v2168
        %v2192 = vsel %vm1836, %v2135, 0
        %v2195 = vsel %vm1840, %v2179, 0
        %v2198 = vsel %vm1840, %v2180, 0
        %2200 = vmatprep.subr.bf16.mxu0 0
        %2201 = vmatpush1.bf16.msra.mxu0 0
        %2202 = vmatprep.subr.bf16.mxu0 0
        %2203 = vmatpush1.bf16.msra.mxu0 0
        %2204 = vmatprep.subr.bf16.mxu0 %v2198
        %2205 = vmatpush1.bf16.msra.mxu0 %v2195
        %2206 = vmatprep.subr.bf16.mxu0 %v2178
        %2207 = vmatpush1.bf16.msra.mxu0 %v2177
        %2208 = vmatprep.subr.bf16.mxu0 %v2176
        %2209 = vmatpush1.bf16.msra.mxu0 %v2175
        %2210 = vmatprep.subr.bf16.mxu0 %v2174
        %2211 = vmatpush1.bf16.msra.mxu0 %v2173
        %2212 = vmatprep.subr.bf16.mxu0 %v2172
        %2213 = vmatpush1.bf16.msra.mxu0 %v2171
        %2214 = vmatprep.subr.bf16.mxu0 %v2170
        %2215 = vmatpush1.bf16.msra.mxu0 %v2169
        %2216 = vmatprep.subr.bf16.mxu0 0
        %2217 = vmatpush2.bf16.msra.mxu0 0
        %2218 = vmatprep.subr.bf16.mxu0 0
        %2219 = vmatpush2.bf16.msra.mxu0 0
        %2220 = vmatprep.subr.bf16.mxu0 0
        %2221 = vmatpush2.bf16.msra.mxu0 0
        %2222 = vmatprep.subr.bf16.mxu0 0
        %2223 = vmatpush2.bf16.msra.mxu0 0
        %2224 = vmatprep.subr.bf16.mxu0 0
        %2225 = vmatpush2.bf16.msra.mxu0 0
        %2226 = vmatprep.subr.bf16.mxu0 0
        %2227 = vmatpush2.bf16.msra.mxu0 0
        %2228 = vmatprep.subr.bf16.mxu0 0
        %2229 = vmatpush2.bf16.msra.mxu0 0
        %2230 = vmatprep.subr.bf16.mxu0 0
        %2231 = vmatpush2.bf16.msra.mxu0 0
        %2232 = vmatprep.mubr.bf16.mxu0 0
        %2233 = vmatmul.mubr.bf16.gmra.mxu0 %v2192
        %v2234 = vpop.f32.mrf.mxu0
        %v2235 = vadd.f32 0.0, %v2234
        %v2236 = vpop.f32.mrf.mxu0
        %v2237 = vadd.f32 0.0, %v2236
        %v2238 = vpop.f32.mrf.mxu0
        %v2239 = vadd.f32 0.0, %v2238
        %v2240 = vpop.f32.mrf.mxu0
        %v2241 = vadd.f32 0.0, %v2240
        %2242 = vdwg.mxu0
        %v2243 = vadd.f32 %v2117, %v2235
        %v2244 = vadd.f32 %v2118, %v2237
        %v2245 = vadd.f32 %v2119, %v2239
        %v2246 = vadd.f32 %v2120, %v2241
        %s2247 = scalar_lea.vmem %s7, 352
        %v2248 = vld [vmem:[%s2247] sm:$0xff]
        %v2249 = vld [vmem:[%s2247 + $0x8] sm:$0xff]
        %v2250 = vld [vmem:[%s2247 + $0x10] sm:$0xff]
        %v2251 = vld [vmem:[%s2247 + $0x18] sm:$0xff]
        %v2252 = vld [vmem:[%s2247 + $0x20] sm:$0xff]
        %v2253 = vld [vmem:[%s2247 + $0x28] sm:$0xff]
        %v2254 = vld [vmem:[%s2247 + $0x30] sm:$0xff]
        %v2255 = vld [vmem:[%s2247 + $0x38] sm:$0xff]
        %v2256 = vld [vmem:[%s2247 + $0x40] sm:$0xff]
        %v2257 = vld [vmem:[%s2247 + $0x48] sm:$0xff]
        %v2258 = vld [vmem:[%s2247 + $0x50] sm:$0x33]
        %v2259 = vrot.slane %v1750, 2
        %v2271 = vunpack.c.l.b16 %v2248
        %v2272 = vunpack.c.h.b16 %v2248
        %v2273 = vunpack.c.l.b16 %v2249
        %v2274 = vunpack.c.h.b16 %v2249
        %v2275 = vunpack.c.l.b16 %v2250
        %v2276 = vunpack.c.h.b16 %v2250
        %v2277 = vunpack.c.l.b16 %v2251
        %v2278 = vunpack.c.h.b16 %v2251
        %v2279 = vunpack.c.l.b16 %v2252
        %v2280 = vunpack.c.h.b16 %v2252
        %v2281 = vunpack.c.l.b16 %v2253
        %v2282 = vunpack.c.h.b16 %v2253
        %v2283 = vunpack.c.l.b16 %v2254
        %v2284 = vunpack.c.h.b16 %v2254
        %v2285 = vunpack.c.l.b16 %v2255
        %v2286 = vunpack.c.h.b16 %v2255
        %v2287 = vunpack.c.l.b16 %v2256
        %v2288 = vunpack.c.h.b16 %v2256
        %v2289 = vunpack.c.l.b16 %v2257
        %v2290 = vunpack.c.h.b16 %v2257
        %v2291 = vunpack.c.l.b16 %v2258
        %v2292 = vunpack.c.h.b16 %v2258
        %v2293 = vpack.c.b16 %v2273, %v2271
        %v2294 = vpack.c.b16 %v2274, %v2272
        %v2295 = vpack.c.b16 %v2277, %v2275
        %v2296 = vpack.c.b16 %v2278, %v2276
        %v2297 = vpack.c.b16 %v2281, %v2279
        %v2298 = vpack.c.b16 %v2282, %v2280
        %v2299 = vpack.c.b16 %v2285, %v2283
        %v2300 = vpack.c.b16 %v2286, %v2284
        %v2301 = vpack.c.b16 %v2289, %v2287
        %v2302 = vpack.c.b16 %v2290, %v2288
        %v2303 = vpack.c.b16 %v2291, %v2291
        %v2304 = vpack.c.b16 %v2292, %v2292
        %v2316 = vsel %vm1836, %v2259, 0
        %v2319 = vsel %vm1840, %v2303, 0
        %v2322 = vsel %vm1840, %v2304, 0
        %2324 = vmatprep.subr.bf16.mxu0 0
        %2325 = vmatpush1.bf16.msra.mxu0 0
        %2326 = vmatprep.subr.bf16.mxu0 0
        %2327 = vmatpush1.bf16.msra.mxu0 0
        %2328 = vmatprep.subr.bf16.mxu0 %v2322
        %2329 = vmatpush1.bf16.msra.mxu0 %v2319
        %2330 = vmatprep.subr.bf16.mxu0 %v2302
        %2331 = vmatpush1.bf16.msra.mxu0 %v2301
        %2332 = vmatprep.subr.bf16.mxu0 %v2300
        %2333 = vmatpush1.bf16.msra.mxu0 %v2299
        %2334 = vmatprep.subr.bf16.mxu0 %v2298
        %2335 = vmatpush1.bf16.msra.mxu0 %v2297
        %2336 = vmatprep.subr.bf16.mxu0 %v2296
        %2337 = vmatpush1.bf16.msra.mxu0 %v2295
        %2338 = vmatprep.subr.bf16.mxu0 %v2294
        %2339 = vmatpush1.bf16.msra.mxu0 %v2293
        %2340 = vmatprep.subr.bf16.mxu0 0
        %2341 = vmatpush2.bf16.msra.mxu0 0
        %2342 = vmatprep.subr.bf16.mxu0 0
        %2343 = vmatpush2.bf16.msra.mxu0 0
        %2344 = vmatprep.subr.bf16.mxu0 0
        %2345 = vmatpush2.bf16.msra.mxu0 0
        %2346 = vmatprep.subr.bf16.mxu0 0
        %2347 = vmatpush2.bf16.msra.mxu0 0
        %2348 = vmatprep.subr.bf16.mxu0 0
        %2349 = vmatpush2.bf16.msra.mxu0 0
        %2350 = vmatprep.subr.bf16.mxu0 0
        %2351 = vmatpush2.bf16.msra.mxu0 0
        %2352 = vmatprep.subr.bf16.mxu0 0
        %2353 = vmatpush2.bf16.msra.mxu0 0
        %2354 = vmatprep.subr.bf16.mxu0 0
        %2355 = vmatpush2.bf16.msra.mxu0 0
        %2356 = vmatprep.mubr.bf16.mxu0 0
        %2357 = vmatmul.mubr.bf16.gmra.mxu0 %v2316
        %v2358 = vpop.f32.mrf.mxu0
        %v2359 = vadd.f32 0.0, %v2358
        %v2360 = vpop.f32.mrf.mxu0
        %v2361 = vadd.f32 0.0, %v2360
        %v2362 = vpop.f32.mrf.mxu0
        %v2363 = vadd.f32 0.0, %v2362
        %v2364 = vpop.f32.mrf.mxu0
        %v2365 = vadd.f32 0.0, %v2364
        %2366 = vdwg.mxu0
        %v2367 = vadd.f32 %v2243, %v2359
        %v2368 = vadd.f32 %v2244, %v2361
        %v2369 = vadd.f32 %v2245, %v2363
        %v2370 = vadd.f32 %v2246, %v2365
        %v2371 = vld [vmem:[%s8] sm:$0x3]
        %v2373 = vlaneseq
        %v2374 = vshrl.u32 %v2373, 7
        %v2375 = vsub.s32 0, %v2374
        %v2376 = vrot.slane %v2371, %v2375
        %v2377 = vlaneseq
        %v2378 = vshrl.u32 %v2377, 7
        %v2379 = vsub.s32 1, %v2378
        %v2380 = vrot.slane %v2371, %v2379
        %v2383 = vadd.f32 %v2367, %v2376
        %v2384 = vadd.f32 %v2368, %v2380
        %v2385 = vadd.f32 %v2369, %v2376
        %v2386 = vadd.f32 %v2370, %v2380
        %v2387 = vmax.f32 %v2383, 0.0
        %v2388 = vmax.f32 %v2384, 0.0
        %v2389 = vmax.f32 %v2385, 0.0
        %v2390 = vmax.f32 %v2386, 0.0
        %v2391 = vpack.c.bf16 %v2389, %v2387
        %v2392 = vpack.c.bf16 %v2390, %v2388
        %v2393 = vld [vmem:[%s9] sm:$0xf]
        %v2394 = vld [vmem:[%s9 + $0x4] sm:$0xf]
        %v2395 = vld [vmem:[%s9 + $0x8] sm:$0xf]
        %v2396 = vld [vmem:[%s9 + $0xc] sm:$0xf]
        %v2397 = vld [vmem:[%s9 + $0x10] sm:$0xf]
        %v2398 = vld [vmem:[%s9 + $0x14] sm:$0xf]
        %v2399 = vld [vmem:[%s9 + $0x18] sm:$0xf]
        %v2400 = vld [vmem:[%s9 + $0x1c] sm:$0xf]
        %v2401 = vld [vmem:[%s9 + $0x20] sm:$0xf]
        %v2402 = vld [vmem:[%s9 + $0x24] sm:$0xf]
        %v2403 = vld [vmem:[%s9 + $0x28] sm:$0xf]
        %v2404 = vld [vmem:[%s9 + $0x2c] sm:$0xf]
        %v2405 = vld [vmem:[%s9 + $0x30] sm:$0xf]
        %v2406 = vld [vmem:[%s9 + $0x34] sm:$0xf]
        %v2407 = vld [vmem:[%s9 + $0x38] sm:$0xf]
        %v2408 = vld [vmem:[%s9 + $0x3c] sm:$0xf]
        %v2409 = vld [vmem:[%s9 + $0x40] sm:$0xf]
        %v2410 = vld [vmem:[%s9 + $0x44] sm:$0xf]
        %v2411 = vld [vmem:[%s9 + $0x48] sm:$0xf]
        %v2412 = vld [vmem:[%s9 + $0x4c] sm:$0xf]
        %v2433 = vunpack.c.l.b16 %v2393
        %v2434 = vunpack.c.l.b16 %v2394
        %v2435 = vunpack.c.l.b16 %v2395
        %v2436 = vunpack.c.l.b16 %v2396
        %v2437 = vunpack.c.l.b16 %v2397
        %v2438 = vunpack.c.l.b16 %v2398
        %v2439 = vunpack.c.l.b16 %v2399
        %v2440 = vunpack.c.l.b16 %v2400
        %v2441 = vunpack.c.l.b16 %v2401
        %v2442 = vunpack.c.l.b16 %v2402
        %v2443 = vunpack.c.l.b16 %v2403
        %v2444 = vunpack.c.l.b16 %v2404
        %v2445 = vunpack.c.l.b16 %v2405
        %v2446 = vunpack.c.l.b16 %v2406
        %v2447 = vunpack.c.l.b16 %v2407
        %v2448 = vunpack.c.l.b16 %v2408
        %v2449 = vunpack.c.l.b16 %v2409
        %v2450 = vunpack.c.l.b16 %v2410
        %v2451 = vunpack.c.l.b16 %v2411
        %v2452 = vunpack.c.l.b16 %v2412
        %v2453 = vpack.c.b16 %v2434, %v2433
        %v2454 = vpack.c.b16 %v2436, %v2435
        %v2455 = vpack.c.b16 %v2438, %v2437
        %v2456 = vpack.c.b16 %v2440, %v2439
        %v2457 = vpack.c.b16 %v2442, %v2441
        %v2458 = vpack.c.b16 %v2444, %v2443
        %v2459 = vpack.c.b16 %v2446, %v2445
        %v2460 = vpack.c.b16 %v2448, %v2447
        %v2461 = vpack.c.b16 %v2450, %v2449
        %v2462 = vpack.c.b16 %v2452, %v2451
        %vm2473 = vcmask 261120
        %v2475 = vsel %vm2473, %v2392, 0
        %2477 = vmatprep.subr.bf16.mxu0 0
        %2478 = vmatpush1.bf16.msra.mxu0 %v2460
        %2479 = vmatprep.subr.bf16.mxu0 0
        %2480 = vmatpush1.bf16.msra.mxu0 %v2459
        %2481 = vmatprep.subr.bf16.mxu0 0
        %2482 = vmatpush1.bf16.msra.mxu0 %v2458
        %2483 = vmatprep.subr.bf16.mxu0 0
        %2484 = vmatpush1.bf16.msra.mxu0 %v2457
        %2485 = vmatprep.subr.bf16.mxu0 0
        %2486 = vmatpush1.bf16.msra.mxu0 %v2456
        %2487 = vmatprep.subr.bf16.mxu0 0
        %2488 = vmatpush1.bf16.msra.mxu0 %v2455
        %2489 = vmatprep.subr.bf16.mxu0 0
        %2490 = vmatpush1.bf16.msra.mxu0 %v2454
        %2491 = vmatprep.subr.bf16.mxu0 0
        %2492 = vmatpush1.bf16.msra.mxu0 %v2453
        %2493 = vmatprep.subr.bf16.mxu0 0
        %2494 = vmatpush2.bf16.msra.mxu0 0
        %2495 = vmatprep.subr.bf16.mxu0 0
        %2496 = vmatpush2.bf16.msra.mxu0 0
        %2497 = vmatprep.subr.bf16.mxu0 0
        %2498 = vmatpush2.bf16.msra.mxu0 0
        %2499 = vmatprep.subr.bf16.mxu0 0
        %2500 = vmatpush2.bf16.msra.mxu0 0
        %2501 = vmatprep.subr.bf16.mxu0 0
        %2502 = vmatpush2.bf16.msra.mxu0 0
        %2503 = vmatprep.subr.bf16.mxu0 0
        %2504 = vmatpush2.bf16.msra.mxu0 0
        %2505 = vmatprep.subr.bf16.mxu0 0
        %2506 = vmatpush2.bf16.msra.mxu0 %v2462
        %2507 = vmatprep.subr.bf16.mxu0 0
        %2508 = vmatpush2.bf16.msra.mxu0 %v2461
        %2509 = vmatprep.mubr.bf16.mxu0 %v2475
        %2510 = vmatmul.mubr.bf16.gmra.mxu0 %v2391
        %v2511 = vpop.f32.mrf.mxu0
        %v2512 = vadd.f32 0.0, %v2511
        %v2513 = vpop.f32.mrf.mxu0
        %v2514 = vpop.f32.mrf.mxu0
        %v2515 = vadd.f32 0.0, %v2514
        %v2516 = vpop.f32.mrf.mxu0
        %2517 = vdwg.mxu0
        %v2518 = vld [vmem:[%s10] sm:$0xf]
        %v2519 = vld [vmem:[%s10 + $0x4] sm:$0xf]
        %v2520 = vld [vmem:[%s10 + $0x8] sm:$0xf]
        %v2521 = vld [vmem:[%s10 + $0xc] sm:$0xf]
        %v2522 = vld [vmem:[%s10 + $0x10] sm:$0xf]
        %v2523 = vld [vmem:[%s10 + $0x14] sm:$0xf]
        %v2524 = vld [vmem:[%s10 + $0x18] sm:$0xf]
        %v2525 = vld [vmem:[%s10 + $0x1c] sm:$0xf]
        %v2526 = vld [vmem:[%s10 + $0x20] sm:$0xf]
        %v2527 = vld [vmem:[%s10 + $0x24] sm:$0xf]
        %v2528 = vld [vmem:[%s10 + $0x28] sm:$0xf]
        %v2529 = vld [vmem:[%s10 + $0x2c] sm:$0xf]
        %v2530 = vld [vmem:[%s10 + $0x30] sm:$0xf]
        %v2531 = vld [vmem:[%s10 + $0x34] sm:$0xf]
        %v2532 = vld [vmem:[%s10 + $0x38] sm:$0xf]
        %v2533 = vld [vmem:[%s10 + $0x3c] sm:$0xf]
        %v2534 = vld [vmem:[%s10 + $0x40] sm:$0xf]
        %v2535 = vld [vmem:[%s10 + $0x44] sm:$0xf]
        %v2536 = vld [vmem:[%s10 + $0x48] sm:$0xf]
        %v2537 = vld [vmem:[%s10 + $0x4c] sm:$0xf]
        %v2558 = vunpack.c.l.b16 %v2518
        %v2559 = vunpack.c.l.b16 %v2519
        %v2560 = vunpack.c.l.b16 %v2520
        %v2561 = vunpack.c.l.b16 %v2521
        %v2562 = vunpack.c.l.b16 %v2522
        %v2563 = vunpack.c.l.b16 %v2523
        %v2564 = vunpack.c.l.b16 %v2524
        %v2565 = vunpack.c.l.b16 %v2525
        %v2566 = vunpack.c.l.b16 %v2526
        %v2567 = vunpack.c.l.b16 %v2527
        %v2568 = vunpack.c.l.b16 %v2528
        %v2569 = vunpack.c.l.b16 %v2529
        %v2570 = vunpack.c.l.b16 %v2530
        %v2571 = vunpack.c.l.b16 %v2531
        %v2572 = vunpack.c.l.b16 %v2532
        %v2573 = vunpack.c.l.b16 %v2533
        %v2574 = vunpack.c.l.b16 %v2534
        %v2575 = vunpack.c.l.b16 %v2535
        %v2576 = vunpack.c.l.b16 %v2536
        %v2577 = vunpack.c.l.b16 %v2537
        %v2578 = vpack.c.b16 %v2559, %v2558
        %v2579 = vpack.c.b16 %v2561, %v2560
        %v2580 = vpack.c.b16 %v2563, %v2562
        %v2581 = vpack.c.b16 %v2565, %v2564
        %v2582 = vpack.c.b16 %v2567, %v2566
        %v2583 = vpack.c.b16 %v2569, %v2568
        %v2584 = vpack.c.b16 %v2571, %v2570
        %v2585 = vpack.c.b16 %v2573, %v2572
        %v2586 = vpack.c.b16 %v2575, %v2574
        %v2587 = vpack.c.b16 %v2577, %v2576
        %2598 = vmatprep.subr.bf16.mxu0 0
        %2599 = vmatpush1.bf16.msra.mxu0 %v2585
        %2600 = vmatprep.subr.bf16.mxu0 0
        %2601 = vmatpush1.bf16.msra.mxu0 %v2584
        %2602 = vmatprep.subr.bf16.mxu0 0
        %2603 = vmatpush1.bf16.msra.mxu0 %v2583
        %2604 = vmatprep.subr.bf16.mxu0 0
        %2605 = vmatpush1.bf16.msra.mxu0 %v2582
        %2606 = vmatprep.subr.bf16.mxu0 0
        %2607 = vmatpush1.bf16.msra.mxu0 %v2581
        %2608 = vmatprep.subr.bf16.mxu0 0
        %2609 = vmatpush1.bf16.msra.mxu0 %v2580
        %2610 = vmatprep.subr.bf16.mxu0 0
        %2611 = vmatpush1.bf16.msra.mxu0 %v2579
        %2612 = vmatprep.subr.bf16.mxu0 0
        %2613 = vmatpush1.bf16.msra.mxu0 %v2578
        %2614 = vmatprep.subr.bf16.mxu0 0
        %2615 = vmatpush2.bf16.msra.mxu0 0
        %2616 = vmatprep.subr.bf16.mxu0 0
        %2617 = vmatpush2.bf16.msra.mxu0 0
        %2618 = vmatprep.subr.bf16.mxu0 0
        %2619 = vmatpush2.bf16.msra.mxu0 0
        %2620 = vmatprep.subr.bf16.mxu0 0
        %2621 = vmatpush2.bf16.msra.mxu0 0
        %2622 = vmatprep.subr.bf16.mxu0 0
        %2623 = vmatpush2.bf16.msra.mxu0 0
        %2624 = vmatprep.subr.bf16.mxu0 0
        %2625 = vmatpush2.bf16.msra.mxu0 0
        %2626 = vmatprep.subr.bf16.mxu0 0
        %2627 = vmatpush2.bf16.msra.mxu0 %v2587
        %2628 = vmatprep.subr.bf16.mxu0 0
        %2629 = vmatpush2.bf16.msra.mxu0 %v2586
        %2630 = vmatprep.mubr.bf16.mxu0 %v2475
        %2631 = vmatmul.mubr.bf16.gmra.mxu0 %v2391
        %v2632 = vpop.f32.mrf.mxu0
        %v2633 = vadd.f32 0.0, %v2632
        %v2634 = vpop.f32.mrf.mxu0
        %v2635 = vpop.f32.mrf.mxu0
        %v2636 = vadd.f32 0.0, %v2635
        %v2637 = vpop.f32.mrf.mxu0
        %2638 = vdwg.mxu0
        %v2639 = vmax.f32 %v2512, %v2633
        %v2640 = vmax.f32 %v2515, %v2636
        %v2641 = vpack.c.bf16 %v2640, %v2639
        %v2642 = vld [vmem:[%s11] sm:$0x7]
        %vm2643 = vcmask 80896
        %v2645 = vsel %vm2643, %v2642, 0
        %vm2647 = vcmask 1044480
        %v2649 = vsel %vm2647, %v2641, 0
        %2651 = vmatprep.subr.bf16.mxu0 0
        %2652 = vmatpush1.bf16.msra.mxu0 0
        %2653 = vmatprep.subr.bf16.mxu0 0
        %2654 = vmatpush1.bf16.msra.mxu0 0
        %2655 = vmatprep.subr.bf16.mxu0 0
        %2656 = vmatpush1.bf16.msra.mxu0 0
        %2657 = vmatprep.subr.bf16.mxu0 0
        %2658 = vmatpush1.bf16.msra.mxu0 0
        %2659 = vmatprep.subr.bf16.mxu0 0
        %2660 = vmatpush1.bf16.msra.mxu0 0
        %2661 = vmatprep.subr.bf16.mxu0 0
        %2662 = vmatpush1.bf16.msra.mxu0 0
        %2663 = vmatprep.subr.bf16.mxu0 0
        %2664 = vmatpush1.bf16.msra.mxu0 0
        %2665 = vmatprep.subr.bf16.mxu0 0
        %2666 = vmatpush1.bf16.msra.mxu0 %v2649
        %2667 = vmatprep.subr.bf16.mxu0 0
        %2668 = vmatpush2.bf16.msra.mxu0 0
        %2669 = vmatprep.subr.bf16.mxu0 0
        %2670 = vmatpush2.bf16.msra.mxu0 0
        %2671 = vmatprep.subr.bf16.mxu0 0
        %2672 = vmatpush2.bf16.msra.mxu0 0
        %2673 = vmatprep.subr.bf16.mxu0 0
        %2674 = vmatpush2.bf16.msra.mxu0 0
        %2675 = vmatprep.subr.bf16.mxu0 0
        %2676 = vmatpush2.bf16.msra.mxu0 0
        %2677 = vmatprep.subr.bf16.mxu0 0
        %2678 = vmatpush2.bf16.msra.mxu0 0
        %2679 = vmatprep.subr.bf16.mxu0 0
        %2680 = vmatpush2.bf16.msra.mxu0 0
        %2681 = vmatprep.subr.bf16.mxu0 0
        %2682 = vmatpush2.bf16.msra.mxu0 0
        %2683 = vmatprep.mubr.bf16.mxu0 0
        %2684 = vmatmul.mubr.bf16.gmra.mxu0 %v2645
        %v2685 = vpop.f32.mrf.mxu0
        %v2686 = vadd.f32 0.0, %v2685
        %v2687 = vpop.f32.mrf.mxu0
        %v2688 = vpop.f32.mrf.mxu0
        %v2689 = vpop.f32.mrf.mxu0
        %2690 = vdwg.mxu0
        %v2691 = vld [vmem:[%s12] sm:$0x7]
        %v2693 = vsel %vm2643, %v2691, 0
        %2695 = vmatprep.subr.bf16.mxu0 0
        %2696 = vmatpush1.bf16.msra.mxu0 0
        %2697 = vmatprep.subr.bf16.mxu0 0
        %2698 = vmatpush1.bf16.msra.mxu0 0
        %2699 = vmatprep.subr.bf16.mxu0 0
        %2700 = vmatpush1.bf16.msra.mxu0 0
        %2701 = vmatprep.subr.bf16.mxu0 0
        %2702 = vmatpush1.bf16.msra.mxu0 0
        %2703 = vmatprep.subr.bf16.mxu0 0
        %2704 = vmatpush1.bf16.msra.mxu0 0
        %2705 = vmatprep.subr.bf16.mxu0 0
        %2706 = vmatpush1.bf16.msra.mxu0 0
        %2707 = vmatprep.subr.bf16.mxu0 0
        %2708 = vmatpush1.bf16.msra.mxu0 0
        %2709 = vmatprep.subr.bf16.mxu0 0
        %2710 = vmatpush1.bf16.msra.mxu0 %v2649
        %2711 = vmatprep.subr.bf16.mxu0 0
        %2712 = vmatpush2.bf16.msra.mxu0 0
        %2713 = vmatprep.subr.bf16.mxu0 0
        %2714 = vmatpush2.bf16.msra.mxu0 0
        %2715 = vmatprep.subr.bf16.mxu0 0
        %2716 = vmatpush2.bf16.msra.mxu0 0
        %2717 = vmatprep.subr.bf16.mxu0 0
        %2718 = vmatpush2.bf16.msra.mxu0 0
        %2719 = vmatprep.subr.bf16.mxu0 0
        %2720 = vmatpush2.bf16.msra.mxu0 0
        %2721 = vmatprep.subr.bf16.mxu0 0
        %2722 = vmatpush2.bf16.msra.mxu0 0
        %2723 = vmatprep.subr.bf16.mxu0 0
        %2724 = vmatpush2.bf16.msra.mxu0 0
        %2725 = vmatprep.subr.bf16.mxu0 0
        %2726 = vmatpush2.bf16.msra.mxu0 0
        %2727 = vmatprep.mubr.bf16.mxu0 0
        %2728 = vmatmul.mubr.bf16.gmra.mxu0 %v2693
        %v2729 = vpop.f32.mrf.mxu0
        %v2730 = vadd.f32 0.0, %v2729
        %v2731 = vpop.f32.mrf.mxu0
        %v2732 = vpop.f32.mrf.mxu0
        %v2733 = vpop.f32.mrf.mxu0
        %2734 = vdwg.mxu0
        %v2735 = vmax.f32 %v2686, %v2730
        %v2736 = vpack.c.bf16 %v2735, %v2735
        %v2737 = vld [vmem:[%s13] sm:$0xf]
        %v2738 = vld [vmem:[%s13 + $0x4] sm:$0xf]
        %v2739 = vld [vmem:[%s13 + $0x8] sm:$0xf]
        %v2740 = vld [vmem:[%s13 + $0xc] sm:$0xf]
        %v2741 = vld [vmem:[%s13 + $0x10] sm:$0xf]
        %v2742 = vld [vmem:[%s13 + $0x14] sm:$0xf]
        %v2743 = vld [vmem:[%s13 + $0x18] sm:$0xf]
        %v2744 = vld [vmem:[%s13 + $0x1c] sm:$0xf]
        %v2745 = vld [vmem:[%s13 + $0x20] sm:$0xf]
        %v2746 = vld [vmem:[%s13 + $0x24] sm:$0xf]
        %s2747 = scalar_lea.vmem %s13, 40
        %v2748 = vld [vmem:[%s2747] sm:$0xf]
        %v2749 = vld [vmem:[%s2747 + $0x4] sm:$0xf]
        %v2750 = vld [vmem:[%s2747 + $0x8] sm:$0xf]
        %v2751 = vld [vmem:[%s2747 + $0xc] sm:$0xf]
        %v2752 = vld [vmem:[%s2747 + $0x10] sm:$0xf]
        %v2753 = vld [vmem:[%s2747 + $0x14] sm:$0xf]
        %v2754 = vld [vmem:[%s2747 + $0x18] sm:$0xf]
        %v2755 = vld [vmem:[%s2747 + $0x1c] sm:$0xf]
        %v2756 = vld [vmem:[%s2747 + $0x20] sm:$0xf]
        %v2757 = vld [vmem:[%s2747 + $0x24] sm:$0xf]
        %v2759 = vshrl.u32 %v2736, 16
        %v2771 = vunpack.c.l.b16 %v2748
        %v2772 = vunpack.c.l.b16 %v2749
        %v2773 = vunpack.c.l.b16 %v2750
        %v2774 = vunpack.c.l.b16 %v2751
        %v2775 = vunpack.c.l.b16 %v2752
        %v2776 = vunpack.c.l.b16 %v2753
        %v2777 = vunpack.c.l.b16 %v2754
        %v2778 = vunpack.c.l.b16 %v2755
        %v2779 = vunpack.c.l.b16 %v2756
        %v2780 = vunpack.c.l.b16 %v2757
        %v2781 = vpack.c.b16 %v2772, %v2771
        %v2782 = vpack.c.b16 %v2774, %v2773
        %v2783 = vpack.c.b16 %v2776, %v2775
        %v2784 = vpack.c.b16 %v2778, %v2777
        %v2785 = vpack.c.b16 %v2780, %v2779
        %vm2791 = vcmask 654336
        %v2793 = vsel %vm2791, %v2759, 0
        %2795 = vmatprep.subr.bf16.mxu0 0
        %2796 = vmatpush1.bf16.msra.mxu0 0
        %2797 = vmatprep.subr.bf16.mxu0 0
        %2798 = vmatpush1.bf16.msra.mxu0 0
        %2799 = vmatprep.subr.bf16.mxu0 0
        %2800 = vmatpush1.bf16.msra.mxu0 0
        %2801 = vmatprep.subr.bf16.mxu0 0
        %2802 = vmatpush1.bf16.msra.mxu0 %v2785
        %2803 = vmatprep.subr.bf16.mxu0 0
        %2804 = vmatpush1.bf16.msra.mxu0 %v2784
        %2805 = vmatprep.subr.bf16.mxu0 0
        %2806 = vmatpush1.bf16.msra.mxu0 %v2783
        %2807 = vmatprep.subr.bf16.mxu0 0
        %2808 = vmatpush1.bf16.msra.mxu0 %v2782
        %2809 = vmatprep.subr.bf16.mxu0 0
        %2810 = vmatpush1.bf16.msra.mxu0 %v2781
        %2811 = vmatprep.subr.bf16.mxu0 0
        %2812 = vmatpush2.bf16.msra.mxu0 0
        %2813 = vmatprep.subr.bf16.mxu0 0
        %2814 = vmatpush2.bf16.msra.mxu0 0
        %2815 = vmatprep.subr.bf16.mxu0 0
        %2816 = vmatpush2.bf16.msra.mxu0 0
        %2817 = vmatprep.subr.bf16.mxu0 0
        %2818 = vmatpush2.bf16.msra.mxu0 0
        %2819 = vmatprep.subr.bf16.mxu0 0
        %2820 = vmatpush2.bf16.msra.mxu0 0
        %2821 = vmatprep.subr.bf16.mxu0 0
        %2822 = vmatpush2.bf16.msra.mxu0 0
        %2823 = vmatprep.subr.bf16.mxu0 0
        %2824 = vmatpush2.bf16.msra.mxu0 0
        %2825 = vmatprep.subr.bf16.mxu0 0
        %2826 = vmatpush2.bf16.msra.mxu0 0
        %2827 = vmatprep.mubr.bf16.mxu0 0
        %2828 = vmatmul.mubr.bf16.gmra.mxu0 %v2793
        %v2829 = vpop.f32.mrf.mxu0
        %v2830 = vadd.f32 0.0, %v2829
        %v2831 = vpop.f32.mrf.mxu0
        %v2832 = vpop.f32.mrf.mxu0
        %v2833 = vpop.f32.mrf.mxu0
        %2834 = vdwg.mxu0
        %v2845 = vunpack.c.l.b16 %v2737
        %v2846 = vunpack.c.l.b16 %v2738
        %v2847 = vunpack.c.l.b16 %v2739
        %v2848 = vunpack.c.l.b16 %v2740
        %v2849 = vunpack.c.l.b16 %v2741
        %v2850 = vunpack.c.l.b16 %v2742
        %v2851 = vunpack.c.l.b16 %v2743
        %v2852 = vunpack.c.l.b16 %v2744
        %v2853 = vunpack.c.l.b16 %v2745
        %v2854 = vunpack.c.l.b16 %v2746
        %v2855 = vpack.c.b16 %v2846, %v2845
        %v2856 = vpack.c.b16 %v2848, %v2847
        %v2857 = vpack.c.b16 %v2850, %v2849
        %v2858 = vpack.c.b16 %v2852, %v2851
        %v2859 = vpack.c.b16 %v2854, %v2853
        %v2865 = vsel %vm2791, %v2736, 0
        %2867 = vmatprep.subr.bf16.mxu0 0
        %2868 = vmatpush1.bf16.msra.mxu0 0
        %2869 = vmatprep.subr.bf16.mxu0 0
        %2870 = vmatpush1.bf16.msra.mxu0 0
        %2871 = vmatprep.subr.bf16.mxu0 0
        %2872 = vmatpush1.bf16.msra.mxu0 0
        %2873 = vmatprep.subr.bf16.mxu0 0
        %2874 = vmatpush1.bf16.msra.mxu0 %v2859
        %2875 = vmatprep.subr.bf16.mxu0 0
        %2876 = vmatpush1.bf16.msra.mxu0 %v2858
        %2877 = vmatprep.subr.bf16.mxu0 0
        %2878 = vmatpush1.bf16.msra.mxu0 %v2857
        %2879 = vmatprep.subr.bf16.mxu0 0
        %2880 = vmatpush1.bf16.msra.mxu0 %v2856
        %2881 = vmatprep.subr.bf16.mxu0 0
        %2882 = vmatpush1.bf16.msra.mxu0 %v2855
        %2883 = vmatprep.subr.bf16.mxu0 0
        %2884 = vmatpush2.bf16.msra.mxu0 0
        %2885 = vmatprep.subr.bf16.mxu0 0
        %2886 = vmatpush2.bf16.msra.mxu0 0
        %2887 = vmatprep.subr.bf16.mxu0 0
        %2888 = vmatpush2.bf16.msra.mxu0 0
        %2889 = vmatprep.subr.bf16.mxu0 0
        %2890 = vmatpush2.bf16.msra.mxu0 0
        %2891 = vmatprep.subr.bf16.mxu0 0
        %2892 = vmatpush2.bf16.msra.mxu0 0
        %2893 = vmatprep.subr.bf16.mxu0 0
        %2894 = vmatpush2.bf16.msra.mxu0 0
        %2895 = vmatprep.subr.bf16.mxu0 0
        %2896 = vmatpush2.bf16.msra.mxu0 0
        %2897 = vmatprep.subr.bf16.mxu0 0
        %2898 = vmatpush2.bf16.msra.mxu0 0
        %2899 = vmatprep.mubr.bf16.mxu0 0
        %2900 = vmatmul.mubr.bf16.gmra.mxu0 %v2865
        %v2901 = vpop.f32.mrf.mxu0
        %v2902 = vadd.f32 %v2830, %v2901
        %v2903 = vpop.f32.mrf.mxu0
        %v2904 = vpop.f32.mrf.mxu0
        %v2905 = vpop.f32.mrf.mxu0
        %2906 = vdwg.mxu0
        %s2907 = scalar_lea.vmem %s13, 80
        %v2908 = vld [vmem:[%s2907] sm:$0xf]
        %v2909 = vld [vmem:[%s2907 + $0x4] sm:$0xf]
        %v2910 = vld [vmem:[%s2907 + $0x8] sm:$0xf]
        %v2911 = vld [vmem:[%s2907 + $0xc] sm:$0xf]
        %v2912 = vld [vmem:[%s2907 + $0x10] sm:$0xf]
        %v2913 = vld [vmem:[%s2907 + $0x14] sm:$0xf]
        %v2914 = vld [vmem:[%s2907 + $0x18] sm:$0xf]
        %v2915 = vld [vmem:[%s2907 + $0x1c] sm:$0xf]
        %v2916 = vld [vmem:[%s2907 + $0x20] sm:$0xf]
        %v2917 = vld [vmem:[%s2907 + $0x24] sm:$0xf]
        %v2919 = vrot.slane %v2736, 1
        %v2930 = vunpack.c.l.b16 %v2908
        %v2931 = vunpack.c.l.b16 %v2909
        %v2932 = vunpack.c.l.b16 %v2910
        %v2933 = vunpack.c.l.b16 %v2911
        %v2934 = vunpack.c.l.b16 %v2912
        %v2935 = vunpack.c.l.b16 %v2913
        %v2936 = vunpack.c.l.b16 %v2914
        %v2937 = vunpack.c.l.b16 %v2915
        %v2938 = vunpack.c.l.b16 %v2916
        %v2939 = vunpack.c.l.b16 %v2917
        %v2940 = vpack.c.b16 %v2931, %v2930
        %v2941 = vpack.c.b16 %v2933, %v2932
        %v2942 = vpack.c.b16 %v2935, %v2934
        %v2943 = vpack.c.b16 %v2937, %v2936
        %v2944 = vpack.c.b16 %v2939, %v2938
        %v2951 = vsel %vm2791, %v2919, 0
        %2953 = vmatprep.subr.bf16.mxu0 0
        %2954 = vmatpush1.bf16.msra.mxu0 0
        %2955 = vmatprep.subr.bf16.mxu0 0
        %2956 = vmatpush1.bf16.msra.mxu0 0
        %2957 = vmatprep.subr.bf16.mxu0 0
        %2958 = vmatpush1.bf16.msra.mxu0 0
        %2959 = vmatprep.subr.bf16.mxu0 0
        %2960 = vmatpush1.bf16.msra.mxu0 %v2944
        %2961 = vmatprep.subr.bf16.mxu0 0
        %2962 = vmatpush1.bf16.msra.mxu0 %v2943
        %2963 = vmatprep.subr.bf16.mxu0 0
        %2964 = vmatpush1.bf16.msra.mxu0 %v2942
        %2965 = vmatprep.subr.bf16.mxu0 0
        %2966 = vmatpush1.bf16.msra.mxu0 %v2941
        %2967 = vmatprep.subr.bf16.mxu0 0
        %2968 = vmatpush1.bf16.msra.mxu0 %v2940
        %2969 = vmatprep.subr.bf16.mxu0 0
        %2970 = vmatpush2.bf16.msra.mxu0 0
        %2971 = vmatprep.subr.bf16.mxu0 0
        %2972 = vmatpush2.bf16.msra.mxu0 0
        %2973 = vmatprep.subr.bf16.mxu0 0
        %2974 = vmatpush2.bf16.msra.mxu0 0
        %2975 = vmatprep.subr.bf16.mxu0 0
        %2976 = vmatpush2.bf16.msra.mxu0 0
        %2977 = vmatprep.subr.bf16.mxu0 0
        %2978 = vmatpush2.bf16.msra.mxu0 0
        %2979 = vmatprep.subr.bf16.mxu0 0
        %2980 = vmatpush2.bf16.msra.mxu0 0
        %2981 = vmatprep.subr.bf16.mxu0 0
        %2982 = vmatpush2.bf16.msra.mxu0 0
        %2983 = vmatprep.subr.bf16.mxu0 0
        %2984 = vmatpush2.bf16.msra.mxu0 0
        %2985 = vmatprep.mubr.bf16.mxu0 0
        %2986 = vmatmul.mubr.bf16.gmra.mxu0 %v2951
        %v2987 = vpop.f32.mrf.mxu0
        %v2988 = vadd.f32 0.0, %v2987
        %v2989 = vpop.f32.mrf.mxu0
        %v2990 = vpop.f32.mrf.mxu0
        %v2991 = vpop.f32.mrf.mxu0
        %2992 = vdwg.mxu0
        %v2993 = vadd.f32 %v2902, %v2988
        %s2994 = scalar_lea.vmem %s13, 120
        %v2995 = vld [vmem:[%s2994] sm:$0xf]
        %v2996 = vld [vmem:[%s2994 + $0x4] sm:$0xf]
        %v2997 = vld [vmem:[%s2994 + $0x8] sm:$0xf]
        %v2998 = vld [vmem:[%s2994 + $0xc] sm:$0xf]
        %v2999 = vld [vmem:[%s2994 + $0x10] sm:$0xf]
        %v3000 = vld [vmem:[%s2994 + $0x14] sm:$0xf]
        %v3001 = vld [vmem:[%s2994 + $0x18] sm:$0xf]
        %v3002 = vld [vmem:[%s2994 + $0x1c] sm:$0xf]
        %v3003 = vld [vmem:[%s2994 + $0x20] sm:$0xf]
        %v3004 = vld [vmem:[%s2994 + $0x24] sm:$0xf]
        %v3005 = vrot.slane %v2759, 1
        %v3016 = vunpack.c.l.b16 %v2995
        %v3017 = vunpack.c.l.b16 %v2996
        %v3018 = vunpack.c.l.b16 %v2997
        %v3019 = vunpack.c.l.b16 %v2998
        %v3020 = vunpack.c.l.b16 %v2999
        %v3021 = vunpack.c.l.b16 %v3000
        %v3022 = vunpack.c.l.b16 %v3001
        %v3023 = vunpack.c.l.b16 %v3002
        %v3024 = vunpack.c.l.b16 %v3003
        %v3025 = vunpack.c.l.b16 %v3004
        %v3026 = vpack.c.b16 %v3017, %v3016
        %v3027 = vpack.c.b16 %v3019, %v3018
        %v3028 = vpack.c.b16 %v3021, %v3020
        %v3029 = vpack.c.b16 %v3023, %v3022
        %v3030 = vpack.c.b16 %v3025, %v3024
        %v3037 = vsel %vm2791, %v3005, 0
        %3039 = vmatprep.subr.bf16.mxu0 0
        %3040 = vmatpush1.bf16.msra.mxu0 0
        %3041 = vmatprep.subr.bf16.mxu0 0
        %3042 = vmatpush1.bf16.msra.mxu0 0
        %3043 = vmatprep.subr.bf16.mxu0 0
        %3044 = vmatpush1.bf16.msra.mxu0 0
        %3045 = vmatprep.subr.bf16.mxu0 0
        %3046 = vmatpush1.bf16.msra.mxu0 %v3030
        %3047 = vmatprep.subr.bf16.mxu0 0
        %3048 = vmatpush1.bf16.msra.mxu0 %v3029
        %3049 = vmatprep.subr.bf16.mxu0 0
        %3050 = vmatpush1.bf16.msra.mxu0 %v3028
        %3051 = vmatprep.subr.bf16.mxu0 0
        %3052 = vmatpush1.bf16.msra.mxu0 %v3027
        %3053 = vmatprep.subr.bf16.mxu0 0
        %3054 = vmatpush1.bf16.msra.mxu0 %v3026
        %3055 = vmatprep.subr.bf16.mxu0 0
        %3056 = vmatpush2.bf16.msra.mxu0 0
        %3057 = vmatprep.subr.bf16.mxu0 0
        %3058 = vmatpush2.bf16.msra.mxu0 0
        %3059 = vmatprep.subr.bf16.mxu0 0
        %3060 = vmatpush2.bf16.msra.mxu0 0
        %3061 = vmatprep.subr.bf16.mxu0 0
        %3062 = vmatpush2.bf16.msra.mxu0 0
        %3063 = vmatprep.subr.bf16.mxu0 0
        %3064 = vmatpush2.bf16.msra.mxu0 0
        %3065 = vmatprep.subr.bf16.mxu0 0
        %3066 = vmatpush2.bf16.msra.mxu0 0
        %3067 = vmatprep.subr.bf16.mxu0 0
        %3068 = vmatpush2.bf16.msra.mxu0 0
        %3069 = vmatprep.subr.bf16.mxu0 0
        %3070 = vmatpush2.bf16.msra.mxu0 0
        %3071 = vmatprep.mubr.bf16.mxu0 0
        %3072 = vmatmul.mubr.bf16.gmra.mxu0 %v3037
        %v3073 = vpop.f32.mrf.mxu0
        %v3074 = vadd.f32 0.0, %v3073
        %v3075 = vpop.f32.mrf.mxu0
        %v3076 = vpop.f32.mrf.mxu0
        %v3077 = vpop.f32.mrf.mxu0
        %3078 = vdwg.mxu0
        %v3079 = vadd.f32 %v2993, %v3074
        %s3080 = scalar_lea.vmem %s13, 160
        %v3081 = vld [vmem:[%s3080] sm:$0xf]
        %v3082 = vld [vmem:[%s3080 + $0x4] sm:$0xf]
        %v3083 = vld [vmem:[%s3080 + $0x8] sm:$0xf]
        %v3084 = vld [vmem:[%s3080 + $0xc] sm:$0xf]
        %v3085 = vld [vmem:[%s3080 + $0x10] sm:$0xf]
        %v3086 = vld [vmem:[%s3080 + $0x14] sm:$0xf]
        %v3087 = vld [vmem:[%s3080 + $0x18] sm:$0xf]
        %v3088 = vld [vmem:[%s3080 + $0x1c] sm:$0xf]
        %v3089 = vld [vmem:[%s3080 + $0x20] sm:$0xf]
        %v3090 = vld [vmem:[%s3080 + $0x24] sm:$0xf]
        %v3091 = vrot.slane %v2736, 2
        %v3102 = vunpack.c.l.b16 %v3081
        %v3103 = vunpack.c.l.b16 %v3082
        %v3104 = vunpack.c.l.b16 %v3083
        %v3105 = vunpack.c.l.b16 %v3084
        %v3106 = vunpack.c.l.b16 %v3085
        %v3107 = vunpack.c.l.b16 %v3086
        %v3108 = vunpack.c.l.b16 %v3087
        %v3109 = vunpack.c.l.b16 %v3088
        %v3110 = vunpack.c.l.b16 %v3089
        %v3111 = vunpack.c.l.b16 %v3090
        %v3112 = vpack.c.b16 %v3103, %v3102
        %v3113 = vpack.c.b16 %v3105, %v3104
        %v3114 = vpack.c.b16 %v3107, %v3106
        %v3115 = vpack.c.b16 %v3109, %v3108
        %v3116 = vpack.c.b16 %v3111, %v3110
        %v3123 = vsel %vm2791, %v3091, 0
        %3125 = vmatprep.subr.bf16.mxu0 0
        %3126 = vmatpush1.bf16.msra.mxu0 0
        %3127 = vmatprep.subr.bf16.mxu0 0
        %3128 = vmatpush1.bf16.msra.mxu0 0
        %3129 = vmatprep.subr.bf16.mxu0 0
        %3130 = vmatpush1.bf16.msra.mxu0 0
        %3131 = vmatprep.subr.bf16.mxu0 0
        %3132 = vmatpush1.bf16.msra.mxu0 %v3116
        %3133 = vmatprep.subr.bf16.mxu0 0
        %3134 = vmatpush1.bf16.msra.mxu0 %v3115
        %3135 = vmatprep.subr.bf16.mxu0 0
        %3136 = vmatpush1.bf16.msra.mxu0 %v3114
        %3137 = vmatprep.subr.bf16.mxu0 0
        %3138 = vmatpush1.bf16.msra.mxu0 %v3113
        %3139 = vmatprep.subr.bf16.mxu0 0
        %3140 = vmatpush1.bf16.msra.mxu0 %v3112
        %3141 = vmatprep.subr.bf16.mxu0 0
        %3142 = vmatpush2.bf16.msra.mxu0 0
        %3143 = vmatprep.subr.bf16.mxu0 0
        %3144 = vmatpush2.bf16.msra.mxu0 0
        %3145 = vmatprep.subr.bf16.mxu0 0
        %3146 = vmatpush2.bf16.msra.mxu0 0
        %3147 = vmatprep.subr.bf16.mxu0 0
        %3148 = vmatpush2.bf16.msra.mxu0 0
        %3149 = vmatprep.subr.bf16.mxu0 0
        %3150 = vmatpush2.bf16.msra.mxu0 0
        %3151 = vmatprep.subr.bf16.mxu0 0
        %3152 = vmatpush2.bf16.msra.mxu0 0
        %3153 = vmatprep.subr.bf16.mxu0 0
        %3154 = vmatpush2.bf16.msra.mxu0 0
        %3155 = vmatprep.subr.bf16.mxu0 0
        %3156 = vmatpush2.bf16.msra.mxu0 0
        %3157 = vmatprep.mubr.bf16.mxu0 0
        %3158 = vmatmul.mubr.bf16.gmra.mxu0 %v3123
        %v3159 = vpop.f32.mrf.mxu0
        %v3160 = vadd.f32 0.0, %v3159
        %v3161 = vpop.f32.mrf.mxu0
        %v3162 = vpop.f32.mrf.mxu0
        %v3163 = vpop.f32.mrf.mxu0
        %3164 = vdwg.mxu0
        %v3165 = vadd.f32 %v3079, %v3160
        %v3166 = vld [vmem:[%s14] sm:$0x1]
        %v3167 = vadd.f32 %v3165, %v3166
        %v3168 = vmax.f32 %v3167, 0.0
        %v3169 = vpack.c.bf16 %v3168, %v3168
        %v3170 = vld [vmem:[%s15] sm:$0xf]
        %v3171 = vld [vmem:[%s15 + $0x4] sm:$0xf]
        %v3172 = vld [vmem:[%s15 + $0x8] sm:$0xf]
        %v3173 = vld [vmem:[%s15 + $0xc] sm:$0xf]
        %v3174 = vld [vmem:[%s15 + $0x10] sm:$0xf]
        %v3175 = vld [vmem:[%s15 + $0x14] sm:$0xf]
        %v3176 = vld [vmem:[%s15 + $0x18] sm:$0xf]
        %v3177 = vld [vmem:[%s15 + $0x1c] sm:$0xf]
        %v3178 = vld [vmem:[%s15 + $0x20] sm:$0xf]
        %v3179 = vld [vmem:[%s15 + $0x24] sm:$0xf]
        %v3180 = vld [vmem:[%s15 + $0x28] sm:$0xf]
        %v3181 = vld [vmem:[%s15 + $0x2c] sm:$0xf]
        %v3182 = vld [vmem:[%s15 + $0x30] sm:$0xf]
        %v3183 = vld [vmem:[%s15 + $0x34] sm:$0xf]
        %v3184 = vld [vmem:[%s15 + $0x38] sm:$0xf]
        %v3185 = vld [vmem:[%s16] sm:$0x1]
        %v3201 = vunpack.c.l.b16 %v3170
        %v3202 = vunpack.c.l.b16 %v3171
        %v3203 = vunpack.c.l.b16 %v3172
        %v3204 = vunpack.c.l.b16 %v3173
        %v3205 = vunpack.c.l.b16 %v3174
        %v3206 = vunpack.c.l.b16 %v3175
        %v3207 = vunpack.c.l.b16 %v3176
        %v3208 = vunpack.c.l.b16 %v3177
        %v3209 = vunpack.c.l.b16 %v3178
        %v3210 = vunpack.c.l.b16 %v3179
        %v3211 = vunpack.c.l.b16 %v3180
        %v3212 = vunpack.c.l.b16 %v3181
        %v3213 = vunpack.c.l.b16 %v3182
        %v3214 = vunpack.c.l.b16 %v3183
        %v3215 = vunpack.c.l.b16 %v3184
        %v3216 = vpack.c.b16 %v3202, %v3201
        %v3217 = vpack.c.b16 %v3204, %v3203
        %v3218 = vpack.c.b16 %v3206, %v3205
        %v3219 = vpack.c.b16 %v3208, %v3207
        %v3220 = vpack.c.b16 %v3210, %v3209
        %v3221 = vpack.c.b16 %v3212, %v3211
        %v3222 = vpack.c.b16 %v3214, %v3213
        %v3223 = vpack.c.b16 %v3215, %v3215
        %vm3231 = vcmask 982016
        %v3233 = vsel %vm3231, %v3169, 0
        %v3236 = vsel %vm1446, %v3223, 0
        %3238 = vmatprep.subr.bf16.mxu0 0
        %3239 = vmatpush1.bf16.msra.mxu0 %v3236
        %3240 = vmatprep.subr.bf16.mxu0 0
        %3241 = vmatpush1.bf16.msra.mxu0 %v3222
        %3242 = vmatprep.subr.bf16.mxu0 0
        %3243 = vmatpush1.bf16.msra.mxu0 %v3221
        %3244 = vmatprep.subr.bf16.mxu0 0
        %3245 = vmatpush1.bf16.msra.mxu0 %v3220
        %3246 = vmatprep.subr.bf16.mxu0 0
        %3247 = vmatpush1.bf16.msra.mxu0 %v3219
        %3248 = vmatprep.subr.bf16.mxu0 0
        %3249 = vmatpush1.bf16.msra.mxu0 %v3218
        %3250 = vmatprep.subr.bf16.mxu0 0
        %3251 = vmatpush1.bf16.msra.mxu0 %v3217
        %3252 = vmatprep.subr.bf16.mxu0 0
        %3253 = vmatpush1.bf16.msra.mxu0 %v3216
        %3254 = vmatprep.subr.bf16.mxu0 0
        %3255 = vmatpush2.bf16.msra.mxu0 0
        %3256 = vmatprep.subr.bf16.mxu0 0
        %3257 = vmatpush2.bf16.msra.mxu0 0
        %3258 = vmatprep.subr.bf16.mxu0 0
        %3259 = vmatpush2.bf16.msra.mxu0 0
        %3260 = vmatprep.subr.bf16.mxu0 0
        %3261 = vmatpush2.bf16.msra.mxu0 0
        %3262 = vmatprep.subr.bf16.mxu0 0
        %3263 = vmatpush2.bf16.msra.mxu0 0
        %3264 = vmatprep.subr.bf16.mxu0 0
        %3265 = vmatpush2.bf16.msra.mxu0 0
        %3266 = vmatprep.subr.bf16.mxu0 0
        %3267 = vmatpush2.bf16.msra.mxu0 0
        %3268 = vmatprep.subr.bf16.mxu0 0
        %3269 = vmatpush2.bf16.msra.mxu0 0
        %3270 = vmatprep.mubr.bf16.mxu0 0
        %3271 = vmatmul.mubr.bf16.gmra.mxu0 %v3233
        %v3272 = vpop.f32.mrf.mxu0
        %v3273 = vadd.f32 %v3185, %v3272
        %v3274 = vpop.f32.mrf.mxu0
        %v3275 = vpop.f32.mrf.mxu0
        %v3276 = vpop.f32.mrf.mxu0
        %3277 = vdwg.mxu0
        %v3278 = vmax.f32 %v3273, 0.0
        %v3279 = vpack.c.bf16 %v3278, %v3278
        %v3280 = vld [vmem:[%s17] sm:$0xf]
        %v3281 = vld [vmem:[%s17 + $0x4] sm:$0xf]
        %v3282 = vld [vmem:[%s17 + $0x8] sm:$0xf]
        %v3283 = vld [vmem:[%s17 + $0xc] sm:$0xf]
        %v3284 = vld [vmem:[%s17 + $0x10] sm:$0xf]
        %v3285 = vld [vmem:[%s17 + $0x14] sm:$0xf]
        %v3286 = vld [vmem:[%s17 + $0x18] sm:$0xf]
        %v3287 = vld [vmem:[%s17 + $0x1c] sm:$0xf]
        %v3288 = vld [vmem:[%s17 + $0x20] sm:$0xf]
        %v3289 = vld [vmem:[%s17 + $0x24] sm:$0xf]
        %v3290 = vld [vmem:[%s17 + $0x28] sm:$0x3]
        %v3291 = vld [vmem:[%s18] sm:$0x1]
        %v3303 = vunpack.c.l.b16 %v3280
        %v3304 = vunpack.c.l.b16 %v3281
        %v3305 = vunpack.c.l.b16 %v3282
        %v3306 = vunpack.c.l.b16 %v3283
        %v3307 = vunpack.c.l.b16 %v3284
        %v3308 = vunpack.c.l.b16 %v3285
        %v3309 = vunpack.c.l.b16 %v3286
        %v3310 = vunpack.c.l.b16 %v3287
        %v3311 = vunpack.c.l.b16 %v3288
        %v3312 = vunpack.c.l.b16 %v3289
        %v3313 = vunpack.c.l.b16 %v3290
        %v3314 = vpack.c.b16 %v3304, %v3303
        %v3315 = vpack.c.b16 %v3306, %v3305
        %v3316 = vpack.c.b16 %v3308, %v3307
        %v3317 = vpack.c.b16 %v3310, %v3309
        %v3318 = vpack.c.b16 %v3312, %v3311
        %v3319 = vpack.c.b16 %v3313, %v3313
        %v3326 = vsel %vm1836, %v3279, 0
        %v3329 = vsel %vm1840, %v3319, 0
        %3331 = vmatprep.subr.bf16.mxu0 0
        %3332 = vmatpush1.bf16.msra.mxu0 0
        %3333 = vmatprep.subr.bf16.mxu0 0
        %3334 = vmatpush1.bf16.msra.mxu0 0
        %3335 = vmatprep.subr.bf16.mxu0 0
        %3336 = vmatpush1.bf16.msra.mxu0 %v3329
        %3337 = vmatprep.subr.bf16.mxu0 0
        %3338 = vmatpush1.bf16.msra.mxu0 %v3318
        %3339 = vmatprep.subr.bf16.mxu0 0
        %3340 = vmatpush1.bf16.msra.mxu0 %v3317
        %3341 = vmatprep.subr.bf16.mxu0 0
        %3342 = vmatpush1.bf16.msra.mxu0 %v3316
        %3343 = vmatprep.subr.bf16.mxu0 0
        %3344 = vmatpush1.bf16.msra.mxu0 %v3315
        %3345 = vmatprep.subr.bf16.mxu0 0
        %3346 = vmatpush1.bf16.msra.mxu0 %v3314
        %3347 = vmatprep.subr.bf16.mxu0 0
        %3348 = vmatpush2.bf16.msra.mxu0 0
        %3349 = vmatprep.subr.bf16.mxu0 0
        %3350 = vmatpush2.bf16.msra.mxu0 0
        %3351 = vmatprep.subr.bf16.mxu0 0
        %3352 = vmatpush2.bf16.msra.mxu0 0
        %3353 = vmatprep.subr.bf16.mxu0 0
        %3354 = vmatpush2.bf16.msra.mxu0 0
        %3355 = vmatprep.subr.bf16.mxu0 0
        %3356 = vmatpush2.bf16.msra.mxu0 0
        %3357 = vmatprep.subr.bf16.mxu0 0
        %3358 = vmatpush2.bf16.msra.mxu0 0
        %3359 = vmatprep.subr.bf16.mxu0 0
        %3360 = vmatpush2.bf16.msra.mxu0 0
        %3361 = vmatprep.subr.bf16.mxu0 0
        %3362 = vmatpush2.bf16.msra.mxu0 0
        %3363 = vmatprep.mubr.bf16.mxu0 0
        %3364 = vmatmul.mubr.bf16.gmra.mxu0 %v3326
        %v3365 = vpop.f32.mrf.mxu0
        %v3366 = vadd.f32 %v3291, %v3365
        %v3367 = vpop.f32.mrf.mxu0
        %v3368 = vpop.f32.mrf.mxu0
        %v3369 = vpop.f32.mrf.mxu0
        %3370 = vdwg.mxu0
        %vm3371 = vcmask 73728
        %3372 = vst.msk [vmem:[%s594] sm:$0x1] %vm3371, %v3366
        %s3373 = sand.u32 %s445, 1
        %s3374 = scalar_lea.sflag [#allocation3], %s3373
        %s3375 = sand.u32 %s445, 1
        %s3376 = scalar_lea.vmem [#allocation2], %s3375
        // Predicated region
        $region97: #{example_cnn_forward.1} parent=95 // pred_check
          %p3377 = pneg %p455
        $region98: #{example_cnn_forward.1} parent=95 // pred_check_branch
          %3379 = sbr.rel (%p3377) target = $region100
        $region99: #{example_cnn_forward.1} parent=95 // pred_region
          %s3381 = ssub.s32 16, 16
          %3382 = vsyncadd %s3374, %s3381
          %s3383 = smul.addr %s33, 16
          %s3384 = scalar_lea.hbm %s19, %s3383
          %s3386 = sshll.u32 %s3376, 4
          %s3387 = int_to_ptr.vmem [resolvable:$true] %s3386
          %3389 = dma.vmem_to_hbm [thread:$0]  %s3387, 16, %s3384, %s3374
        $region100: #{example_cnn_forward.1} parent=95 // pred_fallthru
          _
      $region96: #{example_cnn_forward.1} parent=5 // pred_fallthru
        _
      %p3390 = scmp.le.s32.totalorder 2, %s28
      // Predicated region
      $region101: #{example_cnn_forward.1} parent=5 // pred_check
        %p3391 = pneg %p3390
      $region102: #{example_cnn_forward.1} parent=5 // pred_check_branch
        %3393 = sbr.rel (%p3391) target = $region104
      $region103: #{example_cnn_forward.1} parent=5 // pred_region
        %s3394 = ssub.s32 %s28, 2
        // Predicated region
        $region105: #{example_cnn_forward.1} parent=103 // pred_check
          %p3395 = pneg %p461
        $region106: #{example_cnn_forward.1} parent=103 // pred_check_branch
          %3397 = sbr.rel (%p3395) target = $region108
        $region107: #{example_cnn_forward.1} parent=103 // pred_region
          %s3398 = sand.u32 %s446, 1
          %s3399 = scalar_lea.sflag [#allocation3], %s3398
          %s3400 = sand.u32 %s446, 1
          %s3401 = scalar_lea.vmem [#allocation2], %s3400
          %3402 = dma.done %s3399, 16
        $region108: #{example_cnn_forward.1} parent=103 // pred_fallthru
          _
      $region104: #{example_cnn_forward.1} parent=5 // pred_fallthru
        _
    $region6: #{example_cnn_forward.1} parent=1 // loop_footer
      %s32 = sadd.s32 1, %s28
    $region7: #{example_cnn_forward.1} parent=1 // loop_footer_branch
      %27 = sbr.rel target = $region3
    $region8: #{example_cnn_forward.1} parent=1 // loop_exit
      _
    %3403 = vsyncpa [#allocation3], 1
    %s3404 = scalar_lea.sflag [#allocation3], 1
    %3405 = vsyncpa %s3404, 1

</llo_original>
